<compile_context>
chip_gen: v5e
topology: v5e:2x2
jax: 0.10.0
libtpu: 0.0.40
codegen_flags: <defaults>
</compile_context>

<pallas_src>
import functools
import math

import jax
import jax.numpy as jnp
from jax import lax
from jax.experimental import pallas as pl
from jax.experimental.pallas import tpu as pltpu

BN_EPS = 1e-5      # PyTorch BatchNorm2d default
CHUNK = 128        # rows processed per inner-loop step
PAD_TOP = 32       # flat-row halo above the image block (must be >= (W+2)+1), sublane aligned
PAD_BOT = 32       # flat-row halo below the last processed row


def _predictor_kernel(B, H, W, ncls, nchunk,
                      xflat_ref, mask_ref, w1_ref, b1_ref, gamma_ref, beta_ref,
                      w2_ref, b2_ref,
                      logits_ref, probs_ref,
                      a1_ref, h_ref):
    Wp2 = W + 2
    n_px = B * H * W                                   # rows entering the BN statistics
    c_hid = w1_ref.shape[2]
    c_out = w2_ref.shape[2]
    offs = [(ky - 1) * Wp2 + (kx - 1) for ky in range(3) for kx in range(3)]

    def conv3x3(src_ref, w_ref, row0):
        """3x3 'same' conv for one CHUNK of flattened rows: 9 shifted-row bf16 matmuls."""
        acc = jnp.zeros((CHUNK, w_ref.shape[2]), jnp.float32)
        for t, d in enumerate(offs):                   # statically unrolled taps
            xs = src_ref[pl.ds(row0 + PAD_TOP + d, CHUNK), :].astype(jnp.bfloat16)
            acc = acc + jnp.dot(xs, w_ref[t], preferred_element_type=jnp.float32)
        return acc

    # ---- pass 1: conv1 -> a1 scratch, masked per-channel sum (BN mean) ----
    def pass1(i, s1):
        row0 = pl.multiple_of(i * CHUNK, CHUNK)
        acc = conv3x3(xflat_ref, w1_ref, row0) + b1_ref[...]
        a1_ref[pl.ds(row0, CHUNK), :] = acc
        return s1 + jnp.sum(acc * mask_ref[pl.ds(row0, CHUNK), :], axis=0, keepdims=True)

    s1 = lax.fori_loop(0, nchunk, pass1, jnp.zeros((1, c_hid), jnp.float32))
    mean = s1 * (1.0 / n_px)

    # ---- pass 2: two-pass (centered) variance over the VMEM-resident conv1 output ----
    def pass2(i, s2):
        row0 = pl.multiple_of(i * CHUNK, CHUNK)
        d = (a1_ref[pl.ds(row0, CHUNK), :] - mean) * mask_ref[pl.ds(row0, CHUNK), :]
        return s2 + jnp.sum(d * d, axis=0, keepdims=True)

    s2 = lax.fori_loop(0, nchunk, pass2, jnp.zeros((1, c_hid), jnp.float32))
    var = s2 * (1.0 / n_px)
    scale = gamma_ref[...] * lax.rsqrt(var + BN_EPS)               # rsqrt -> EUP slot
    shift = beta_ref[...] - mean * scale

    # ---- pass 3: BN + ReLU -> halo-padded h scratch (mask zeroes conv-padding rows) ----
    h_ref[:PAD_TOP, :] = jnp.zeros((PAD_TOP, c_hid), jnp.float32)  # zero only the halo
    bot = PAD_TOP + nchunk * CHUNK
    h_ref[bot:, :] = jnp.zeros((h_ref.shape[0] - bot, c_hid), jnp.float32)

    def pass3(i, carry):
        row0 = pl.multiple_of(i * CHUNK, CHUNK)
        a = a1_ref[pl.ds(row0, CHUNK), :]
        m = mask_ref[pl.ds(row0, CHUNK), :]
        h_ref[pl.ds(PAD_TOP + row0, CHUNK), :] = jnp.maximum(a * scale + shift, 0.0) * m
        return carry

    lax.fori_loop(0, nchunk, pass3, 0)

    # ---- pass 4: conv2 -> logits, masked softmax over the class lanes ----
    lane_ok = lax.broadcasted_iota(jnp.int32, (CHUNK, c_out), 1) < ncls

    def pass4(i, carry):
        row0 = pl.multiple_of(i * CHUNK, CHUNK)
        logits = conv3x3(h_ref, w2_ref, row0) + b2_ref[...]
        logits_ref[pl.ds(row0, CHUNK), :] = logits
        ml = jnp.where(lane_ok, logits, -jnp.inf)
        mx = jnp.max(ml, axis=-1, keepdims=True)
        e = jnp.exp(ml - mx)                                       # padded lanes -> 0
        s = jnp.sum(e, axis=-1, keepdims=True)
        probs_ref[pl.ds(row0, CHUNK), :] = e * pl.reciprocal(s, approx=True)
        return carry

    lax.fori_loop(0, nchunk, pass4, 0)


# ------------------------------- host-side wrapper ------------------------------ #
def predictor_forward(params, x):
    """x: [B, C_in, H, W] float32 (NCHW, like PyTorch). Returns (logits, softmax) NCHW."""
    cin = params["input_ch"]
    ncls = params["num_classes"]
    c_hid = params["w1"].shape[2]
    c_out = params["w2"].shape[2]

    B, C, H, W = x.shape
    assert C == cin
    Hp2, Wp2 = H + 2, W + 2
    assert Wp2 + 1 <= PAD_TOP, "image width too large for the fixed flat halo"

    r_img = Hp2 * Wp2
    r_core = B * r_img
    nchunk = pl.cdiv(r_core, CHUNK)
    r_pad = nchunk * CHUNK
    r_tot = PAD_TOP + r_pad + PAD_BOT

    # NCHW -> NHWC, spatial zero-pad by 1 ("same" conv), flatten rows, add flat halo rows.
    x_nhwc = jnp.transpose(x, (0, 2, 3, 1)).astype(jnp.float32)
    xpad = jnp.pad(x_nhwc, ((0, 0), (1, 1), (1, 1), (0, 0)))
    xflat = jnp.pad(xpad.reshape(r_core, cin),
                    ((PAD_TOP, r_tot - PAD_TOP - r_core), (0, 0)))

    # row validity mask: 1.0 for real pixels, 0.0 for conv-padding rows / tail rows.
    yy = jnp.arange(Hp2)[:, None]
    xx = jnp.arange(Wp2)[None, :]
    m_img = ((yy >= 1) & (yy <= H) & (xx >= 1) & (xx <= W)).astype(jnp.float32)
    mask = jnp.broadcast_to(m_img[None], (B, Hp2, Wp2)).reshape(r_core, 1)
    mask = jnp.pad(mask, ((0, r_pad - r_core), (0, 0)))

    vmem = pl.BlockSpec(memory_space=pltpu.MemorySpace.VMEM)
    cost = pl.CostEstimate(
        flops=2 * r_pad * 9 * (cin * c_hid + c_hid * c_out),
        transcendentals=r_pad * (c_out + 1) + c_hid,
        bytes_accessed=4 * (xflat.size + mask.size + 2 * r_pad * c_out
                            + params["b1"].size + params["b2"].size
                            + params["gamma"].size + params["beta"].size)
        + 2 * (params["w1"].size + params["w2"].size))

    logits_f, probs_f = pl.pallas_call(
        functools.partial(_predictor_kernel, B, H, W, ncls, nchunk),
        out_shape=(jax.ShapeDtypeStruct((r_pad, c_out), jnp.float32),
                   jax.ShapeDtypeStruct((r_pad, c_out), jnp.float32)),
        in_specs=[vmem] * 8,
        out_specs=(vmem, vmem),
        scratch_shapes=[pltpu.VMEM((r_pad, c_hid), jnp.float32),    # conv1 output
                        pltpu.VMEM((r_tot, c_hid), jnp.float32)],   # BN+ReLU (halo padded)
        cost_estimate=cost,
    )(xflat, mask, params["w1"], params["b1"], params["gamma"], params["beta"],
      params["w2"], params["b2"])

    def unflatten(o):
        o = o[:r_core].reshape(B, Hp2, Wp2, c_out)[:, 1:H + 1, 1:W + 1, :ncls]
        return jnp.transpose(o, (0, 3, 1, 2))

    return unflatten(logits_f), unflatten(probs_f)


# ------------------------------- parameter setup -------------------------------- #
def init_predictor_params(key, input_ch=32, num_classes=8, c_out_pad=32):
    """nn.Conv2d default init; weights stored [9, Cin, Cout] in bf16, vectors (1, C) f32."""
    assert num_classes <= c_out_pad
    k1, k2, k3, k4 = jax.random.split(key, 4)
    fan_in = input_ch * 9
    bound = 1.0 / math.sqrt(fan_in)

    w1 = jax.random.uniform(k1, (3, 3, input_ch, input_ch), jnp.float32, -bound, bound)
    b1 = jax.random.uniform(k2, (input_ch,), jnp.float32, -bound, bound)
    w2 = jax.random.uniform(k3, (3, 3, input_ch, num_classes), jnp.float32, -bound, bound)
    b2 = jax.random.uniform(k4, (num_classes,), jnp.float32, -bound, bound)

    w2p = jnp.pad(w2.reshape(9, input_ch, num_classes),
                  ((0, 0), (0, 0), (0, c_out_pad - num_classes)))
    return {
        "w1": w1.reshape(9, input_ch, input_ch).astype(jnp.bfloat16),
        "b1": b1.reshape(1, input_ch),
        "gamma": jnp.ones((1, input_ch), jnp.float32),   # BN weight init
        "beta": jnp.zeros((1, input_ch), jnp.float32),   # BN bias init
        "w2": w2p.astype(jnp.bfloat16),
        "b2": jnp.pad(b2, (0, c_out_pad - num_classes)).reshape(1, c_out_pad),
        "input_ch": input_ch,
        "num_classes": num_classes,
    }


# --------------------------- pure-JAX reference (check) -------------------------- #
def predictor_reference(params, x):
    cin = params["input_ch"]
    ncls = params["num_classes"]
    w1 = params["w1"].astype(jnp.float32).reshape(3, 3, cin, cin)
    w2 = params["w2"].astype(jnp.float32)[..., :ncls].reshape(3, 3, cin, ncls)
    dn = ("NCHW", "HWIO", "NCHW")
    y = lax.conv_general_dilated(x, w1, (1, 1), "SAME", dimension_numbers=dn)
    y = y + params["b1"].reshape(1, cin, 1, 1)
    mean = jnp.mean(y, axis=(0, 2, 3), keepdims=True)
    var = jnp.mean((y - mean) ** 2, axis=(0, 2, 3), keepdims=True)
    y = (y - mean) * lax.rsqrt(var + BN_EPS)
    y = y * params["gamma"].reshape(1, cin, 1, 1) + params["beta"].reshape(1, cin, 1, 1)
    y = jnp.maximum(y, 0.0)
    logits = lax.conv_general_dilated(y, w2, (1, 1), "SAME", dimension_numbers=dn)
    logits = logits + params["b2"][:, :ncls].reshape(1, ncls, 1, 1)
    return logits, jax.nn.softmax(logits, axis=1)


# ------------------------------------ main --------------------------------------- #
if __name__ == "__main__":
    key = jax.random.PRNGKey(0)
    kx, kp = jax.random.split(key)

    input_ch, num_classes = 32, 8
    B, H, W = 2, 16, 16

    x = jax.random.normal(kx, (B, input_ch, H, W), jnp.float32)
    params = init_predictor_params(kp, input_ch=input_ch, num_classes=num_classes)

    logits, probs = predictor_forward(params, x)
    jax.block_until_ready((logits, probs))

    assert logits.shape == (B, num_classes, H, W)
    assert probs.shape == (B, num_classes, H, W)

    # sanity vs. pure-JAX reference (bf16 MXU operands + approx reciprocal => loose tol)
    l_ref, p_ref = predictor_reference(params, x)
    assert bool(jnp.all(jnp.isfinite(probs)))
    assert float(jnp.max(jnp.abs(logits - l_ref))) < 5e-2
    assert float(jnp.max(jnp.abs(probs - p_ref))) < 2e-2

    print("KERNEL_OK")
</pallas_src>

<mosaic_0001>
module attributes {stable_mosaic.version = 11 : i64} {
  func.func @_predictor_kernel(%arg0: memref<832x32xf32, #tpu.memory_space<vmem>>, %arg1: memref<768x1xf32, #tpu.memory_space<vmem>>, %arg2: memref<9x32x32xbf16, #tpu.memory_space<vmem>>, %arg3: memref<1x32xf32, #tpu.memory_space<vmem>>, %arg4: memref<1x32xf32, #tpu.memory_space<vmem>>, %arg5: memref<1x32xf32, #tpu.memory_space<vmem>>, %arg6: memref<9x32x32xbf16, #tpu.memory_space<vmem>>, %arg7: memref<1x32xf32, #tpu.memory_space<vmem>>, %arg8: memref<768x32xf32, #tpu.memory_space<vmem>>, %arg9: memref<768x32xf32, #tpu.memory_space<vmem>>, %arg10: memref<768x32xf32, #tpu.memory_space<vmem>>, %arg11: memref<832x32xf32, #tpu.memory_space<vmem>>) attributes {dimension_semantics = [], scalar_prefetch = 0 : i64, scratch_operands = 2 : i64, tpu.core_type = #tpu.core_type<tc>} {
    %cst = arith.constant 0.000000e+00 : f32
    %0 = vector.broadcast %cst : f32 to vector<1x32xf32>
    %c0_i32 = arith.constant 0 : i32
    %c6_i32 = arith.constant 6 : i32
    %1 = arith.addi %c0_i32, %c6_i32 : i32
    %c1_i32 = arith.constant 1 : i32
    %2 = scf.for %arg12 = %c0_i32 to %1 step %c1_i32 iter_args(%arg13 = %0) -> (vector<1x32xf32>)  : i32 {
      %c128_i32 = arith.constant 128 : i32
      %27 = arith.muli %arg12, %c128_i32 : i32
      %28 = tpu.assume_multiple %27, 128 : i32
      %cst_25 = arith.constant 0.000000e+00 : f32
      %29 = vector.broadcast %cst_25 : f32 to vector<128x32xf32>
      %c32_i32 = arith.constant 32 : i32
      %30 = arith.addi %28, %c32_i32 : i32
      %c-19_i32 = arith.constant -19 : i32
      %31 = arith.addi %30, %c-19_i32 : i32
      %32 = arith.index_cast %31 : i32 to index
      %c0_26 = arith.constant 0 : index
      %33 = vector.load %arg0[%32, %c0_26] : memref<832x32xf32, #tpu.memory_space<vmem>>, vector<128x32xf32>
      %34 = arith.truncf %33 : vector<128x32xf32> to vector<128x32xbf16>
      %c0_27 = arith.constant 0 : index
      %c0_28 = arith.constant 0 : index
      %c0_29 = arith.constant 0 : index
      %35 = vector.load %arg2[%c0_27, %c0_28, %c0_29] : memref<9x32x32xbf16, #tpu.memory_space<vmem>>, vector<1x32x32xbf16>
      %36 = vector.shape_cast %35 : vector<1x32x32xbf16> to vector<32x32xbf16>
      %cst_30 = arith.constant dense<0.000000e+00> : vector<128x32xf32>
      %37 = tpu.matmul %34, %36, %cst_30 {dimension_numbers = #tpu.dot_dimension_numbers<[1], [0], [0], [1], [0, 0, 1, 1], [], []>} : vector<128x32xbf16>, vector<32x32xbf16>, vector<128x32xf32> -> vector<128x32xf32>
      %38 = arith.addf %29, %37 : vector<128x32xf32>
      %c32_i32_31 = arith.constant 32 : i32
      %39 = arith.addi %28, %c32_i32_31 : i32
      %c-18_i32 = arith.constant -18 : i32
      %40 = arith.addi %39, %c-18_i32 : i32
      %41 = arith.index_cast %40 : i32 to index
      %c0_32 = arith.constant 0 : index
      %42 = vector.load %arg0[%41, %c0_32] : memref<832x32xf32, #tpu.memory_space<vmem>>, vector<128x32xf32>
      %43 = arith.truncf %42 : vector<128x32xf32> to vector<128x32xbf16>
      %c1 = arith.constant 1 : index
      %c0_33 = arith.constant 0 : index
      %c0_34 = arith.constant 0 : index
      %44 = vector.load %arg2[%c1, %c0_33, %c0_34] : memref<9x32x32xbf16, #tpu.memory_space<vmem>>, vector<1x32x32xbf16>
      %45 = vector.shape_cast %44 : vector<1x32x32xbf16> to vector<32x32xbf16>
      %cst_35 = arith.constant dense<0.000000e+00> : vector<128x32xf32>
      %46 = tpu.matmul %43, %45, %cst_35 {dimension_numbers = #tpu.dot_dimension_numbers<[1], [0], [0], [1], [0, 0, 1, 1], [], []>} : vector<128x32xbf16>, vector<32x32xbf16>, vector<128x32xf32> -> vector<128x32xf32>
      %47 = arith.addf %38, %46 : vector<128x32xf32>
      %c32_i32_36 = arith.constant 32 : i32
      %48 = arith.addi %28, %c32_i32_36 : i32
      %c-17_i32 = arith.constant -17 : i32
      %49 = arith.addi %48, %c-17_i32 : i32
      %50 = arith.index_cast %49 : i32 to index
      %c0_37 = arith.constant 0 : index
      %51 = vector.load %arg0[%50, %c0_37] : memref<832x32xf32, #tpu.memory_space<vmem>>, vector<128x32xf32>
      %52 = arith.truncf %51 : vector<128x32xf32> to vector<128x32xbf16>
      %c2 = arith.constant 2 : index
      %c0_38 = arith.constant 0 : index
      %c0_39 = arith.constant 0 : index
      %53 = vector.load %arg2[%c2, %c0_38, %c0_39] : memref<9x32x32xbf16, #tpu.memory_space<vmem>>, vector<1x32x32xbf16>
      %54 = vector.shape_cast %53 : vector<1x32x32xbf16> to vector<32x32xbf16>
      %cst_40 = arith.constant dense<0.000000e+00> : vector<128x32xf32>
      %55 = tpu.matmul %52, %54, %cst_40 {dimension_numbers = #tpu.dot_dimension_numbers<[1], [0], [0], [1], [0, 0, 1, 1], [], []>} : vector<128x32xbf16>, vector<32x32xbf16>, vector<128x32xf32> -> vector<128x32xf32>
      %56 = arith.addf %47, %55 : vector<128x32xf32>
      %c32_i32_41 = arith.constant 32 : i32
      %57 = arith.addi %28, %c32_i32_41 : i32
      %c-1_i32 = arith.constant -1 : i32
      %58 = arith.addi %57, %c-1_i32 : i32
      %59 = arith.index_cast %58 : i32 to index
      %c0_42 = arith.constant 0 : index
      %60 = vector.load %arg0[%59, %c0_42] : memref<832x32xf32, #tpu.memory_space<vmem>>, vector<128x32xf32>
      %61 = arith.truncf %60 : vector<128x32xf32> to vector<128x32xbf16>
      %c3 = arith.constant 3 : index
      %c0_43 = arith.constant 0 : index
      %c0_44 = arith.constant 0 : index
      %62 = vector.load %arg2[%c3, %c0_43, %c0_44] : memref<9x32x32xbf16, #tpu.memory_space<vmem>>, vector<1x32x32xbf16>
      %63 = vector.shape_cast %62 : vector<1x32x32xbf16> to vector<32x32xbf16>
      %cst_45 = arith.constant dense<0.000000e+00> : vector<128x32xf32>
      %64 = tpu.matmul %61, %63, %cst_45 {dimension_numbers = #tpu.dot_dimension_numbers<[1], [0], [0], [1], [0, 0, 1, 1], [], []>} : vector<128x32xbf16>, vector<32x32xbf16>, vector<128x32xf32> -> vector<128x32xf32>
      %65 = arith.addf %56, %64 : vector<128x32xf32>
      %c32_i32_46 = arith.constant 32 : i32
      %66 = arith.addi %28, %c32_i32_46 : i32
      %c0_i32_47 = arith.constant 0 : i32
      %67 = arith.addi %66, %c0_i32_47 : i32
      %68 = arith.index_cast %67 : i32 to index
      %c0_48 = arith.constant 0 : index
      %69 = vector.load %arg0[%68, %c0_48] : memref<832x32xf32, #tpu.memory_space<vmem>>, vector<128x32xf32>
      %70 = arith.truncf %69 : vector<128x32xf32> to vector<128x32xbf16>
      %c4 = arith.constant 4 : index
      %c0_49 = arith.constant 0 : index
      %c0_50 = arith.constant 0 : index
      %71 = vector.load %arg2[%c4, %c0_49, %c0_50] : memref<9x32x32xbf16, #tpu.memory_space<vmem>>, vector<1x32x32xbf16>
      %72 = vector.shape_cast %71 : vector<1x32x32xbf16> to vector<32x32xbf16>
      %cst_51 = arith.constant dense<0.000000e+00> : vector<128x32xf32>
      %73 = tpu.matmul %70, %72, %cst_51 {dimension_numbers = #tpu.dot_dimension_numbers<[1], [0], [0], [1], [0, 0, 1, 1], [], []>} : vector<128x32xbf16>, vector<32x32xbf16>, vector<128x32xf32> -> vector<128x32xf32>
      %74 = arith.addf %65, %73 : vector<128x32xf32>
      %c32_i32_52 = arith.constant 32 : i32
      %75 = arith.addi %28, %c32_i32_52 : i32
      %c1_i32_53 = arith.constant 1 : i32
      %76 = arith.addi %75, %c1_i32_53 : i32
      %77 = arith.index_cast %76 : i32 to index
      %c0_54 = arith.constant 0 : index
      %78 = vector.load %arg0[%77, %c0_54] : memref<832x32xf32, #tpu.memory_space<vmem>>, vector<128x32xf32>
      %79 = arith.truncf %78 : vector<128x32xf32> to vector<128x32xbf16>
      %c5 = arith.constant 5 : index
      %c0_55 = arith.constant 0 : index
      %c0_56 = arith.constant 0 : index
      %80 = vector.load %arg2[%c5, %c0_55, %c0_56] : memref<9x32x32xbf16, #tpu.memory_space<vmem>>, vector<1x32x32xbf16>
      %81 = vector.shape_cast %80 : vector<1x32x32xbf16> to vector<32x32xbf16>
      %cst_57 = arith.constant dense<0.000000e+00> : vector<128x32xf32>
      %82 = tpu.matmul %79, %81, %cst_57 {dimension_numbers = #tpu.dot_dimension_numbers<[1], [0], [0], [1], [0, 0, 1, 1], [], []>} : vector<128x32xbf16>, vector<32x32xbf16>, vector<128x32xf32> -> vector<128x32xf32>
      %83 = arith.addf %74, %82 : vector<128x32xf32>
      %c32_i32_58 = arith.constant 32 : i32
      %84 = arith.addi %28, %c32_i32_58 : i32
      %c17_i32 = arith.constant 17 : i32
      %85 = arith.addi %84, %c17_i32 : i32
      %86 = arith.index_cast %85 : i32 to index
      %c0_59 = arith.constant 0 : index
      %87 = vector.load %arg0[%86, %c0_59] : memref<832x32xf32, #tpu.memory_space<vmem>>, vector<128x32xf32>
      %88 = arith.truncf %87 : vector<128x32xf32> to vector<128x32xbf16>
      %c6 = arith.constant 6 : index
      %c0_60 = arith.constant 0 : index
      %c0_61 = arith.constant 0 : index
      %89 = vector.load %arg2[%c6, %c0_60, %c0_61] : memref<9x32x32xbf16, #tpu.memory_space<vmem>>, vector<1x32x32xbf16>
      %90 = vector.shape_cast %89 : vector<1x32x32xbf16> to vector<32x32xbf16>
      %cst_62 = arith.constant dense<0.000000e+00> : vector<128x32xf32>
      %91 = tpu.matmul %88, %90, %cst_62 {dimension_numbers = #tpu.dot_dimension_numbers<[1], [0], [0], [1], [0, 0, 1, 1], [], []>} : vector<128x32xbf16>, vector<32x32xbf16>, vector<128x32xf32> -> vector<128x32xf32>
      %92 = arith.addf %83, %91 : vector<128x32xf32>
      %c32_i32_63 = arith.constant 32 : i32
      %93 = arith.addi %28, %c32_i32_63 : i32
      %c18_i32 = arith.constant 18 : i32
      %94 = arith.addi %93, %c18_i32 : i32
      %95 = arith.index_cast %94 : i32 to index
      %c0_64 = arith.constant 0 : index
      %96 = vector.load %arg0[%95, %c0_64] : memref<832x32xf32, #tpu.memory_space<vmem>>, vector<128x32xf32>
      %97 = arith.truncf %96 : vector<128x32xf32> to vector<128x32xbf16>
      %c7 = arith.constant 7 : index
      %c0_65 = arith.constant 0 : index
      %c0_66 = arith.constant 0 : index
      %98 = vector.load %arg2[%c7, %c0_65, %c0_66] : memref<9x32x32xbf16, #tpu.memory_space<vmem>>, vector<1x32x32xbf16>
      %99 = vector.shape_cast %98 : vector<1x32x32xbf16> to vector<32x32xbf16>
      %cst_67 = arith.constant dense<0.000000e+00> : vector<128x32xf32>
      %100 = tpu.matmul %97, %99, %cst_67 {dimension_numbers = #tpu.dot_dimension_numbers<[1], [0], [0], [1], [0, 0, 1, 1], [], []>} : vector<128x32xbf16>, vector<32x32xbf16>, vector<128x32xf32> -> vector<128x32xf32>
      %101 = arith.addf %92, %100 : vector<128x32xf32>
      %c32_i32_68 = arith.constant 32 : i32
      %102 = arith.addi %28, %c32_i32_68 : i32
      %c19_i32 = arith.constant 19 : i32
      %103 = arith.addi %102, %c19_i32 : i32
      %104 = arith.index_cast %103 : i32 to index
      %c0_69 = arith.constant 0 : index
      %105 = vector.load %arg0[%104, %c0_69] : memref<832x32xf32, #tpu.memory_space<vmem>>, vector<128x32xf32>
      %106 = arith.truncf %105 : vector<128x32xf32> to vector<128x32xbf16>
      %c8 = arith.constant 8 : index
      %c0_70 = arith.constant 0 : index
      %c0_71 = arith.constant 0 : index
      %107 = vector.load %arg2[%c8, %c0_70, %c0_71] : memref<9x32x32xbf16, #tpu.memory_space<vmem>>, vector<1x32x32xbf16>
      %108 = vector.shape_cast %107 : vector<1x32x32xbf16> to vector<32x32xbf16>
      %cst_72 = arith.constant dense<0.000000e+00> : vector<128x32xf32>
      %109 = tpu.matmul %106, %108, %cst_72 {dimension_numbers = #tpu.dot_dimension_numbers<[1], [0], [0], [1], [0, 0, 1, 1], [], []>} : vector<128x32xbf16>, vector<32x32xbf16>, vector<128x32xf32> -> vector<128x32xf32>
      %110 = arith.addf %101, %109 : vector<128x32xf32>
      %c0_73 = arith.constant 0 : index
      %c0_74 = arith.constant 0 : index
      %111 = vector.load %arg3[%c0_73, %c0_74] : memref<1x32xf32, #tpu.memory_space<vmem>>, vector<1x32xf32>
      %112 = vector.broadcast %111 : vector<1x32xf32> to vector<128x32xf32>
      %113 = arith.addf %110, %112 : vector<128x32xf32>
      %114 = arith.index_cast %28 : i32 to index
      %c0_75 = arith.constant 0 : index
      %115 = vector.load %arg10[%114, %c0_75] : memref<768x32xf32, #tpu.memory_space<vmem>>, vector<128x32xf32>
      tpu.vector_store %arg10[%114, %c0_75], %113 {strides = array<i32>} : memref<768x32xf32, #tpu.memory_space<vmem>>, vector<128x32xf32>,
      %116 = arith.index_cast %28 : i32 to index
      %c0_76 = arith.constant 0 : index
      %117 = vector.load %arg1[%116, %c0_76] : memref<768x1xf32, #tpu.memory_space<vmem>>, vector<128x1xf32>
      %118 = vector.broadcast %117 : vector<128x1xf32> to vector<128x32xf32>
      %119 = arith.mulf %113, %118 : vector<128x32xf32>
      %cst_77 = arith.constant dense<0.000000e+00> : vector<32xf32>
      %120 = vector.multi_reduction <add>, %119, %cst_77 [0] : vector<128x32xf32> to vector<32xf32>
      %121 = vector.shape_cast %120 : vector<32xf32> to vector<1x32xf32>
      %122 = arith.addf %arg13, %121 : vector<1x32xf32>
      scf.yield %122 : vector<1x32xf32>
    }
    %c6_i32_0 = arith.constant 6 : i32
    %cst_1 = arith.constant 0.001953125 : f32
    %3 = vector.broadcast %cst_1 : f32 to vector<1x32xf32>
    %4 = arith.mulf %2, %3 : vector<1x32xf32>
    %cst_2 = arith.constant 0.000000e+00 : f32
    %5 = vector.broadcast %cst_2 : f32 to vector<1x32xf32>
    %c0_i32_3 = arith.constant 0 : i32
    %c6_i32_4 = arith.constant 6 : i32
    %6 = arith.addi %c0_i32_3, %c6_i32_4 : i32
    %c1_i32_5 = arith.constant 1 : i32
    %7 = scf.for %arg12 = %c0_i32_3 to %6 step %c1_i32_5 iter_args(%arg13 = %5) -> (vector<1x32xf32>)  : i32 {
      %c128_i32 = arith.constant 128 : i32
      %27 = arith.muli %arg12, %c128_i32 : i32
      %28 = tpu.assume_multiple %27, 128 : i32
      %29 = arith.index_cast %28 : i32 to index
      %c0_25 = arith.constant 0 : index
      %30 = vector.load %arg10[%29, %c0_25] : memref<768x32xf32, #tpu.memory_space<vmem>>, vector<128x32xf32>
      %31 = vector.broadcast %4 : vector<1x32xf32> to vector<128x32xf32>
      %32 = arith.subf %30, %31 : vector<128x32xf32>
      %33 = arith.index_cast %28 : i32 to index
      %c0_26 = arith.constant 0 : index
      %34 = vector.load %arg1[%33, %c0_26] : memref<768x1xf32, #tpu.memory_space<vmem>>, vector<128x1xf32>
      %35 = vector.broadcast %34 : vector<128x1xf32> to vector<128x32xf32>
      %36 = arith.mulf %32, %35 : vector<128x32xf32>
      %37 = arith.mulf %36, %36 : vector<128x32xf32>
      %cst_27 = arith.constant dense<0.000000e+00> : vector<32xf32>
      %38 = vector.multi_reduction <add>, %37, %cst_27 [0] : vector<128x32xf32> to vector<32xf32>
      %39 = vector.shape_cast %38 : vector<32xf32> to vector<1x32xf32>
      %40 = arith.addf %arg13, %39 : vector<1x32xf32>
      scf.yield %40 : vector<1x32xf32>
    }
    %c6_i32_6 = arith.constant 6 : i32
    %cst_7 = arith.constant 0.001953125 : f32
    %8 = vector.broadcast %cst_7 : f32 to vector<1x32xf32>
    %9 = arith.mulf %7, %8 : vector<1x32xf32>
    %c0 = arith.constant 0 : index
    %c0_8 = arith.constant 0 : index
    %10 = vector.load %arg4[%c0, %c0_8] : memref<1x32xf32, #tpu.memory_space<vmem>>, vector<1x32xf32>
    %cst_9 = arith.constant 9.99999974E-6 : f32
    %11 = vector.broadcast %cst_9 : f32 to vector<1x32xf32>
    %12 = arith.addf %9, %11 : vector<1x32xf32>
    %13 = math.rsqrt %12 : vector<1x32xf32>
    %14 = arith.mulf %10, %13 : vector<1x32xf32>
    %c0_10 = arith.constant 0 : index
    %c0_11 = arith.constant 0 : index
    %15 = vector.load %arg5[%c0_10, %c0_11] : memref<1x32xf32, #tpu.memory_space<vmem>>, vector<1x32xf32>
    %16 = arith.mulf %4, %14 : vector<1x32xf32>
    %17 = arith.subf %15, %16 : vector<1x32xf32>
    %cst_12 = arith.constant 0.000000e+00 : f32
    %18 = vector.broadcast %cst_12 : f32 to vector<32x32xf32>
    %c0_13 = arith.constant 0 : index
    %c0_14 = arith.constant 0 : index
    %19 = vector.load %arg11[%c0_13, %c0_14] : memref<832x32xf32, #tpu.memory_space<vmem>>, vector<32x32xf32>
    tpu.vector_store %arg11[%c0_13, %c0_14], %18 {strides = array<i32>} : memref<832x32xf32, #tpu.memory_space<vmem>>, vector<32x32xf32>,
    %cst_15 = arith.constant 0.000000e+00 : f32
    %20 = vector.broadcast %cst_15 : f32 to vector<32x32xf32>
    %c800 = arith.constant 800 : index
    %c0_16 = arith.constant 0 : index
    %21 = vector.load %arg11[%c800, %c0_16] : memref<832x32xf32, #tpu.memory_space<vmem>>, vector<32x32xf32>
    tpu.vector_store %arg11[%c800, %c0_16], %20 {strides = array<i32>} : memref<832x32xf32, #tpu.memory_space<vmem>>, vector<32x32xf32>,
    %c0_i32_17 = arith.constant 0 : i32
    %c6_i32_18 = arith.constant 6 : i32
    %22 = arith.addi %c0_i32_17, %c6_i32_18 : i32
    %c1_i32_19 = arith.constant 1 : i32
    scf.for %arg12 = %c0_i32_17 to %22 step %c1_i32_19  : i32 {
      %c128_i32 = arith.constant 128 : i32
      %27 = arith.muli %arg12, %c128_i32 : i32
      %28 = tpu.assume_multiple %27, 128 : i32
      %29 = arith.index_cast %28 : i32 to index
      %c0_25 = arith.constant 0 : index
      %30 = vector.load %arg10[%29, %c0_25] : memref<768x32xf32, #tpu.memory_space<vmem>>, vector<128x32xf32>
      %31 = arith.index_cast %28 : i32 to index
      %c0_26 = arith.constant 0 : index
      %32 = vector.load %arg1[%31, %c0_26] : memref<768x1xf32, #tpu.memory_space<vmem>>, vector<128x1xf32>
      %33 = vector.broadcast %14 : vector<1x32xf32> to vector<128x32xf32>
      %34 = arith.mulf %30, %33 : vector<128x32xf32>
      %35 = vector.broadcast %17 : vector<1x32xf32> to vector<128x32xf32>
      %36 = arith.addf %34, %35 : vector<128x32xf32>
      %cst_27 = arith.constant 0.000000e+00 : f32
      %37 = vector.broadcast %cst_27 : f32 to vector<128x32xf32>
      %38 = arith.maximumf %36, %37 : vector<128x32xf32>
      %39 = vector.broadcast %32 : vector<128x1xf32> to vector<128x32xf32>
      %40 = arith.mulf %38, %39 : vector<128x32xf32>
      %c32_i32 = arith.constant 32 : i32
      %41 = arith.addi %c32_i32, %28 : i32
      %42 = arith.index_cast %41 : i32 to index
      %c0_28 = arith.constant 0 : index
      %43 = vector.load %arg11[%42, %c0_28] : memref<832x32xf32, #tpu.memory_space<vmem>>, vector<128x32xf32>
      tpu.vector_store %arg11[%42, %c0_28], %40 {strides = array<i32>} : memref<832x32xf32, #tpu.memory_space<vmem>>, vector<128x32xf32>,
    }
    %c6_i32_20 = arith.constant 6 : i32
    %23 = tpu.iota {dimensions = array<i32: 1>} : vector<128x32xi32>
    %c8_i32 = arith.constant 8 : i32
    %24 = vector.broadcast %c8_i32 : i32 to vector<128x32xi32>
    %25 = arith.cmpi slt, %23, %24 : vector<128x32xi32>
    %c0_i32_21 = arith.constant 0 : i32
    %c6_i32_22 = arith.constant 6 : i32
    %26 = arith.addi %c0_i32_21, %c6_i32_22 : i32
    %c1_i32_23 = arith.constant 1 : i32
    scf.for %arg12 = %c0_i32_21 to %26 step %c1_i32_23  : i32 {
      %c128_i32 = arith.constant 128 : i32
      %27 = arith.muli %arg12, %c128_i32 : i32
      %28 = tpu.assume_multiple %27, 128 : i32
      %cst_25 = arith.constant 0.000000e+00 : f32
      %29 = vector.broadcast %cst_25 : f32 to vector<128x32xf32>
      %c32_i32 = arith.constant 32 : i32
      %30 = arith.addi %28, %c32_i32 : i32
      %c-19_i32 = arith.constant -19 : i32
      %31 = arith.addi %30, %c-19_i32 : i32
      %32 = arith.index_cast %31 : i32 to index
      %c0_26 = arith.constant 0 : index
      %33 = vector.load %arg11[%32, %c0_26] : memref<832x32xf32, #tpu.memory_space<vmem>>, vector<128x32xf32>
      %34 = arith.truncf %33 : vector<128x32xf32> to vector<128x32xbf16>
      %c0_27 = arith.constant 0 : index
      %c0_28 = arith.constant 0 : index
      %c0_29 = arith.constant 0 : index
      %35 = vector.load %arg6[%c0_27, %c0_28, %c0_29] : memref<9x32x32xbf16, #tpu.memory_space<vmem>>, vector<1x32x32xbf16>
      %36 = vector.shape_cast %35 : vector<1x32x32xbf16> to vector<32x32xbf16>
      %cst_30 = arith.constant dense<0.000000e+00> : vector<128x32xf32>
      %37 = tpu.matmul %34, %36, %cst_30 {dimension_numbers = #tpu.dot_dimension_numbers<[1], [0], [0], [1], [0, 0, 1, 1], [], []>} : vector<128x32xbf16>, vector<32x32xbf16>, vector<128x32xf32> -> vector<128x32xf32>
      %38 = arith.addf %29, %37 : vector<128x32xf32>
      %c32_i32_31 = arith.constant 32 : i32
      %39 = arith.addi %28, %c32_i32_31 : i32
      %c-18_i32 = arith.constant -18 : i32
      %40 = arith.addi %39, %c-18_i32 : i32
      %41 = arith.index_cast %40 : i32 to index
      %c0_32 = arith.constant 0 : index
      %42 = vector.load %arg11[%41, %c0_32] : memref<832x32xf32, #tpu.memory_space<vmem>>, vector<128x32xf32>
      %43 = arith.truncf %42 : vector<128x32xf32> to vector<128x32xbf16>
      %c1 = arith.constant 1 : index
      %c0_33 = arith.constant 0 : index
      %c0_34 = arith.constant 0 : index
      %44 = vector.load %arg6[%c1, %c0_33, %c0_34] : memref<9x32x32xbf16, #tpu.memory_space<vmem>>, vector<1x32x32xbf16>
      %45 = vector.shape_cast %44 : vector<1x32x32xbf16> to vector<32x32xbf16>
      %cst_35 = arith.constant dense<0.000000e+00> : vector<128x32xf32>
      %46 = tpu.matmul %43, %45, %cst_35 {dimension_numbers = #tpu.dot_dimension_numbers<[1], [0], [0], [1], [0, 0, 1, 1], [], []>} : vector<128x32xbf16>, vector<32x32xbf16>, vector<128x32xf32> -> vector<128x32xf32>
      %47 = arith.addf %38, %46 : vector<128x32xf32>
      %c32_i32_36 = arith.constant 32 : i32
      %48 = arith.addi %28, %c32_i32_36 : i32
      %c-17_i32 = arith.constant -17 : i32
      %49 = arith.addi %48, %c-17_i32 : i32
      %50 = arith.index_cast %49 : i32 to index
      %c0_37 = arith.constant 0 : index
      %51 = vector.load %arg11[%50, %c0_37] : memref<832x32xf32, #tpu.memory_space<vmem>>, vector<128x32xf32>
      %52 = arith.truncf %51 : vector<128x32xf32> to vector<128x32xbf16>
      %c2 = arith.constant 2 : index
      %c0_38 = arith.constant 0 : index
      %c0_39 = arith.constant 0 : index
      %53 = vector.load %arg6[%c2, %c0_38, %c0_39] : memref<9x32x32xbf16, #tpu.memory_space<vmem>>, vector<1x32x32xbf16>
      %54 = vector.shape_cast %53 : vector<1x32x32xbf16> to vector<32x32xbf16>
      %cst_40 = arith.constant dense<0.000000e+00> : vector<128x32xf32>
      %55 = tpu.matmul %52, %54, %cst_40 {dimension_numbers = #tpu.dot_dimension_numbers<[1], [0], [0], [1], [0, 0, 1, 1], [], []>} : vector<128x32xbf16>, vector<32x32xbf16>, vector<128x32xf32> -> vector<128x32xf32>
      %56 = arith.addf %47, %55 : vector<128x32xf32>
      %c32_i32_41 = arith.constant 32 : i32
      %57 = arith.addi %28, %c32_i32_41 : i32
      %c-1_i32 = arith.constant -1 : i32
      %58 = arith.addi %57, %c-1_i32 : i32
      %59 = arith.index_cast %58 : i32 to index
      %c0_42 = arith.constant 0 : index
      %60 = vector.load %arg11[%59, %c0_42] : memref<832x32xf32, #tpu.memory_space<vmem>>, vector<128x32xf32>
      %61 = arith.truncf %60 : vector<128x32xf32> to vector<128x32xbf16>
      %c3 = arith.constant 3 : index
      %c0_43 = arith.constant 0 : index
      %c0_44 = arith.constant 0 : index
      %62 = vector.load %arg6[%c3, %c0_43, %c0_44] : memref<9x32x32xbf16, #tpu.memory_space<vmem>>, vector<1x32x32xbf16>
      %63 = vector.shape_cast %62 : vector<1x32x32xbf16> to vector<32x32xbf16>
      %cst_45 = arith.constant dense<0.000000e+00> : vector<128x32xf32>
      %64 = tpu.matmul %61, %63, %cst_45 {dimension_numbers = #tpu.dot_dimension_numbers<[1], [0], [0], [1], [0, 0, 1, 1], [], []>} : vector<128x32xbf16>, vector<32x32xbf16>, vector<128x32xf32> -> vector<128x32xf32>
      %65 = arith.addf %56, %64 : vector<128x32xf32>
      %c32_i32_46 = arith.constant 32 : i32
      %66 = arith.addi %28, %c32_i32_46 : i32
      %c0_i32_47 = arith.constant 0 : i32
      %67 = arith.addi %66, %c0_i32_47 : i32
      %68 = arith.index_cast %67 : i32 to index
      %c0_48 = arith.constant 0 : index
      %69 = vector.load %arg11[%68, %c0_48] : memref<832x32xf32, #tpu.memory_space<vmem>>, vector<128x32xf32>
      %70 = arith.truncf %69 : vector<128x32xf32> to vector<128x32xbf16>
      %c4 = arith.constant 4 : index
      %c0_49 = arith.constant 0 : index
      %c0_50 = arith.constant 0 : index
      %71 = vector.load %arg6[%c4, %c0_49, %c0_50] : memref<9x32x32xbf16, #tpu.memory_space<vmem>>, vector<1x32x32xbf16>
      %72 = vector.shape_cast %71 : vector<1x32x32xbf16> to vector<32x32xbf16>
      %cst_51 = arith.constant dense<0.000000e+00> : vector<128x32xf32>
      %73 = tpu.matmul %70, %72, %cst_51 {dimension_numbers = #tpu.dot_dimension_numbers<[1], [0], [0], [1], [0, 0, 1, 1], [], []>} : vector<128x32xbf16>, vector<32x32xbf16>, vector<128x32xf32> -> vector<128x32xf32>
      %74 = arith.addf %65, %73 : vector<128x32xf32>
      %c32_i32_52 = arith.constant 32 : i32
      %75 = arith.addi %28, %c32_i32_52 : i32
      %c1_i32_53 = arith.constant 1 : i32
      %76 = arith.addi %75, %c1_i32_53 : i32
      %77 = arith.index_cast %76 : i32 to index
      %c0_54 = arith.constant 0 : index
      %78 = vector.load %arg11[%77, %c0_54] : memref<832x32xf32, #tpu.memory_space<vmem>>, vector<128x32xf32>
      %79 = arith.truncf %78 : vector<128x32xf32> to vector<128x32xbf16>
      %c5 = arith.constant 5 : index
      %c0_55 = arith.constant 0 : index
      %c0_56 = arith.constant 0 : index
      %80 = vector.load %arg6[%c5, %c0_55, %c0_56] : memref<9x32x32xbf16, #tpu.memory_space<vmem>>, vector<1x32x32xbf16>
      %81 = vector.shape_cast %80 : vector<1x32x32xbf16> to vector<32x32xbf16>
      %cst_57 = arith.constant dense<0.000000e+00> : vector<128x32xf32>
      %82 = tpu.matmul %79, %81, %cst_57 {dimension_numbers = #tpu.dot_dimension_numbers<[1], [0], [0], [1], [0, 0, 1, 1], [], []>} : vector<128x32xbf16>, vector<32x32xbf16>, vector<128x32xf32> -> vector<128x32xf32>
      %83 = arith.addf %74, %82 : vector<128x32xf32>
      %c32_i32_58 = arith.constant 32 : i32
      %84 = arith.addi %28, %c32_i32_58 : i32
      %c17_i32 = arith.constant 17 : i32
      %85 = arith.addi %84, %c17_i32 : i32
      %86 = arith.index_cast %85 : i32 to index
      %c0_59 = arith.constant 0 : index
      %87 = vector.load %arg11[%86, %c0_59] : memref<832x32xf32, #tpu.memory_space<vmem>>, vector<128x32xf32>
      %88 = arith.truncf %87 : vector<128x32xf32> to vector<128x32xbf16>
      %c6 = arith.constant 6 : index
      %c0_60 = arith.constant 0 : index
      %c0_61 = arith.constant 0 : index
      %89 = vector.load %arg6[%c6, %c0_60, %c0_61] : memref<9x32x32xbf16, #tpu.memory_space<vmem>>, vector<1x32x32xbf16>
      %90 = vector.shape_cast %89 : vector<1x32x32xbf16> to vector<32x32xbf16>
      %cst_62 = arith.constant dense<0.000000e+00> : vector<128x32xf32>
      %91 = tpu.matmul %88, %90, %cst_62 {dimension_numbers = #tpu.dot_dimension_numbers<[1], [0], [0], [1], [0, 0, 1, 1], [], []>} : vector<128x32xbf16>, vector<32x32xbf16>, vector<128x32xf32> -> vector<128x32xf32>
      %92 = arith.addf %83, %91 : vector<128x32xf32>
      %c32_i32_63 = arith.constant 32 : i32
      %93 = arith.addi %28, %c32_i32_63 : i32
      %c18_i32 = arith.constant 18 : i32
      %94 = arith.addi %93, %c18_i32 : i32
      %95 = arith.index_cast %94 : i32 to index
      %c0_64 = arith.constant 0 : index
      %96 = vector.load %arg11[%95, %c0_64] : memref<832x32xf32, #tpu.memory_space<vmem>>, vector<128x32xf32>
      %97 = arith.truncf %96 : vector<128x32xf32> to vector<128x32xbf16>
      %c7 = arith.constant 7 : index
      %c0_65 = arith.constant 0 : index
      %c0_66 = arith.constant 0 : index
      %98 = vector.load %arg6[%c7, %c0_65, %c0_66] : memref<9x32x32xbf16, #tpu.memory_space<vmem>>, vector<1x32x32xbf16>
      %99 = vector.shape_cast %98 : vector<1x32x32xbf16> to vector<32x32xbf16>
      %cst_67 = arith.constant dense<0.000000e+00> : vector<128x32xf32>
      %100 = tpu.matmul %97, %99, %cst_67 {dimension_numbers = #tpu.dot_dimension_numbers<[1], [0], [0], [1], [0, 0, 1, 1], [], []>} : vector<128x32xbf16>, vector<32x32xbf16>, vector<128x32xf32> -> vector<128x32xf32>
      %101 = arith.addf %92, %100 : vector<128x32xf32>
      %c32_i32_68 = arith.constant 32 : i32
      %102 = arith.addi %28, %c32_i32_68 : i32
      %c19_i32 = arith.constant 19 : i32
      %103 = arith.addi %102, %c19_i32 : i32
      %104 = arith.index_cast %103 : i32 to index
      %c0_69 = arith.constant 0 : index
      %105 = vector.load %arg11[%104, %c0_69] : memref<832x32xf32, #tpu.memory_space<vmem>>, vector<128x32xf32>
      %106 = arith.truncf %105 : vector<128x32xf32> to vector<128x32xbf16>
      %c8 = arith.constant 8 : index
      %c0_70 = arith.constant 0 : index
      %c0_71 = arith.constant 0 : index
      %107 = vector.load %arg6[%c8, %c0_70, %c0_71] : memref<9x32x32xbf16, #tpu.memory_space<vmem>>, vector<1x32x32xbf16>
      %108 = vector.shape_cast %107 : vector<1x32x32xbf16> to vector<32x32xbf16>
      %cst_72 = arith.constant dense<0.000000e+00> : vector<128x32xf32>
      %109 = tpu.matmul %106, %108, %cst_72 {dimension_numbers = #tpu.dot_dimension_numbers<[1], [0], [0], [1], [0, 0, 1, 1], [], []>} : vector<128x32xbf16>, vector<32x32xbf16>, vector<128x32xf32> -> vector<128x32xf32>
      %110 = arith.addf %101, %109 : vector<128x32xf32>
      %c0_73 = arith.constant 0 : index
      %c0_74 = arith.constant 0 : index
      %111 = vector.load %arg7[%c0_73, %c0_74] : memref<1x32xf32, #tpu.memory_space<vmem>>, vector<1x32xf32>
      %112 = vector.broadcast %111 : vector<1x32xf32> to vector<128x32xf32>
      %113 = arith.addf %110, %112 : vector<128x32xf32>
      %114 = arith.index_cast %28 : i32 to index
      %c0_75 = arith.constant 0 : index
      %115 = vector.load %arg8[%114, %c0_75] : memref<768x32xf32, #tpu.memory_space<vmem>>, vector<128x32xf32>
      tpu.vector_store %arg8[%114, %c0_75], %113 {strides = array<i32>} : memref<768x32xf32, #tpu.memory_space<vmem>>, vector<128x32xf32>,
      %cst_76 = arith.constant 0xFF800000 : f32
      %116 = vector.broadcast %cst_76 : f32 to vector<128x32xf32>
      %117 = arith.select %25, %113, %116 : vector<128x32xi1>, vector<128x32xf32>
      %cst_77 = arith.constant dense<0xFF800000> : vector<128xf32>
      %118 = vector.multi_reduction <maximumf>, %117, %cst_77 [1] : vector<128x32xf32> to vector<128xf32>
      %119 = vector.shape_cast %118 : vector<128xf32> to vector<128x1xf32>
      %120 = vector.broadcast %119 : vector<128x1xf32> to vector<128x32xf32>
      %121 = arith.subf %117, %120 : vector<128x32xf32>
      %122 = math.exp %121 : vector<128x32xf32>
      %cst_78 = arith.constant dense<0.000000e+00> : vector<128xf32>
      %123 = vector.multi_reduction <add>, %122, %cst_78 [1] : vector<128x32xf32> to vector<128xf32>
      %124 = vector.shape_cast %123 : vector<128xf32> to vector<128x1xf32>
      %125 = tpu.reciprocal %124 {approx = true} : vector<128x1xf32> -> vector<128x1xf32>
      %126 = vector.broadcast %125 : vector<128x1xf32> to vector<128x32xf32>
      %127 = arith.mulf %122, %126 : vector<128x32xf32>
      %128 = arith.index_cast %28 : i32 to index
      %c0_79 = arith.constant 0 : index
      %129 = vector.load %arg9[%128, %c0_79] : memref<768x32xf32, #tpu.memory_space<vmem>>, vector<128x32xf32>
      tpu.vector_store %arg9[%128, %c0_79], %127 {strides = array<i32>} : memref<768x32xf32, #tpu.memory_space<vmem>>, vector<128x32xf32>,
    }
    %c6_i32_24 = arith.constant 6 : i32
    return
  }
}

</mosaic_0001>

<llo_original>
// kernel: tpu_custom_call.1
$region0: #{tpu_custom_call.1}
  #allocation0 [shape = 'u32[]', space=smem, size = 0x4, offset = 0x4, fixed_abs, tag = 'smem constant byte address 0x4 - core index']
  #allocation1 [shape = 'u32[72,128]{1,0:T(1,128)}', space=vmem, size = 0x9000, scoped, tag = 'internal scratch']
  #allocation2 [shape = 'f32[768,32]{1,0:T(8,128)}', space=vmem, size = 0x60000, scoped, tag = 'scratch operand']
  #allocation3 [shape = 'f32[832,32]{1,0:T(8,128)}', space=vmem, size = 0x68000, scoped, tag = 'scratch operand']
  %s0 = inlined_call_operand.vmem [shape: f32[832,32], index: 0, kind: input, shape index: {}]
  %s1 = inlined_call_operand.vmem [shape: f32[768,1], index: 1, kind: input, shape index: {}]
  %s2 = inlined_call_operand.vmem [shape: bf16[9,32,32], index: 2, kind: input, shape index: {}]
  %s3 = inlined_call_operand.vmem [shape: f32[1,32], index: 3, kind: input, shape index: {}]
  %s4 = inlined_call_operand.vmem [shape: f32[1,32], index: 4, kind: input, shape index: {}]
  %s5 = inlined_call_operand.vmem [shape: f32[1,32], index: 5, kind: input, shape index: {}]
  %s6 = inlined_call_operand.vmem [shape: bf16[9,32,32], index: 6, kind: input, shape index: {}]
  %s7 = inlined_call_operand.vmem [shape: f32[1,32], index: 7, kind: input, shape index: {}]
  %s8 = inlined_call_operand.vmem [shape: f32[768,32], index: 8, kind: output, shape index: {0}]
  %s9 = inlined_call_operand.vmem [shape: f32[768,32], index: 9, kind: output, shape index: {1}]
  %10 = xla_tuple %s8, %s9
  %s11 = sld [smem:[#allocation0]]
  $region78: #{tpu_custom_call.1} parent=0
    _
  %s13 = ssub.s32 1, %s11
  %s14 = scalar_select 0, %s13, %s11
  // Predicated region
  $region2: #{tpu_custom_call.1} parent=0 // pred_check
    _
  $region3: #{tpu_custom_call.1} parent=0 // pred_check_branch
    %16 = sbr.rel (0) target = $region5
  $region4: #{tpu_custom_call.1} parent=0 // pred_region
    _
  $region5: #{tpu_custom_call.1} parent=0 // pred_fallthru
    _
  // Predicated region
  $region6: #{tpu_custom_call.1} parent=0 // pred_check
    _
  $region7: #{tpu_custom_call.1} parent=0 // pred_check_branch
    %18 = sbr.rel (0) target = $region9
  $region8: #{tpu_custom_call.1} parent=0 // pred_region
    _
  $region9: #{tpu_custom_call.1} parent=0 // pred_fallthru
    _
  // Predicated region
  $region10: #{tpu_custom_call.1} parent=0 // pred_check
    _
  $region11: #{tpu_custom_call.1} parent=0 // pred_check_branch
    %20 = sbr.rel (0) target = $region13
  $region12: #{tpu_custom_call.1} parent=0 // pred_region
    _
  $region13: #{tpu_custom_call.1} parent=0 // pred_fallthru
    _
  // Predicated region
  $region14: #{tpu_custom_call.1} parent=0 // pred_check
    _
  $region15: #{tpu_custom_call.1} parent=0 // pred_check_branch
    %22 = sbr.rel (0) target = $region17
  $region16: #{tpu_custom_call.1} parent=0 // pred_region
    _
  $region17: #{tpu_custom_call.1} parent=0 // pred_fallthru
    _
  // Predicated region
  $region18: #{tpu_custom_call.1} parent=0 // pred_check
    _
  $region19: #{tpu_custom_call.1} parent=0 // pred_check_branch
    %24 = sbr.rel (0) target = $region21
  $region20: #{tpu_custom_call.1} parent=0 // pred_region
    _
  $region21: #{tpu_custom_call.1} parent=0 // pred_fallthru
    _
  // Predicated region
  $region22: #{tpu_custom_call.1} parent=0 // pred_check
    _
  $region23: #{tpu_custom_call.1} parent=0 // pred_check_branch
    %26 = sbr.rel (0) target = $region25
  $region24: #{tpu_custom_call.1} parent=0 // pred_region
    _
  $region25: #{tpu_custom_call.1} parent=0 // pred_fallthru
    _
  // Predicated region
  $region26: #{tpu_custom_call.1} parent=0 // pred_check
    _
  $region27: #{tpu_custom_call.1} parent=0 // pred_check_branch
    %28 = sbr.rel (0) target = $region29
  $region28: #{tpu_custom_call.1} parent=0 // pred_region
    _
  $region29: #{tpu_custom_call.1} parent=0 // pred_fallthru
    _
  // Predicated region
  $region30: #{tpu_custom_call.1} parent=0 // pred_check
    _
  $region31: #{tpu_custom_call.1} parent=0 // pred_check_branch
    %30 = sbr.rel (0) target = $region33
  $region32: #{tpu_custom_call.1} parent=0 // pred_region
    _
  $region33: #{tpu_custom_call.1} parent=0 // pred_fallthru
    _
  loop: start=0, step=1, limit=6
  $region34: #{tpu_custom_call.1} parent=0 // loop_pre_header
    _
  $region35: #{tpu_custom_call.1} parent=0 // loop_header
    %s33 = sphi 0, %s37
    %p34 = scmp.ge.s32.totalorder %s33, 6
    %v38 = vphi 0.0, %v1383
  $region36: #{tpu_custom_call.1} parent=0 // loop_header_branch
    %36 = sbr.rel (%p34) target = $region40
  $region37: #{tpu_custom_call.1} parent=0 // loop_body
    %s39 = smul.u32 %s33, 128
    %s40 = sadd.s32 %s39, 13
    %s41 = scalar_lea.vmem %s0, %s40
    %v42 = vld [vmem:[%s41] sm:$0xff]
    %v43 = vld [vmem:[%s41 + $0x8] sm:$0xff]
    %v44 = vld [vmem:[%s41 + $0x10] sm:$0xff]
    %v45 = vld [vmem:[%s41 + $0x18] sm:$0xff]
    %v46 = vld [vmem:[%s41 + $0x20] sm:$0xff]
    %v47 = vld [vmem:[%s41 + $0x28] sm:$0xff]
    %v48 = vld [vmem:[%s41 + $0x30] sm:$0xff]
    %v49 = vld [vmem:[%s41 + $0x38] sm:$0xff]
    %v50 = vld [vmem:[%s41 + $0x40] sm:$0xff]
    %v51 = vld [vmem:[%s41 + $0x48] sm:$0xff]
    %v52 = vld [vmem:[%s41 + $0x50] sm:$0xff]
    %v53 = vld [vmem:[%s41 + $0x58] sm:$0xff]
    %v54 = vld [vmem:[%s41 + $0x60] sm:$0xff]
    %v55 = vld [vmem:[%s41 + $0x68] sm:$0xff]
    %v56 = vld [vmem:[%s41 + $0x70] sm:$0xff]
    %v57 = vld [vmem:[%s41 + $0x78] sm:$0xff]
    %v58 = vpack.c.bf16 %v43, %v42
    %v59 = vpack.c.bf16 %v45, %v44
    %v60 = vpack.c.bf16 %v47, %v46
    %v61 = vpack.c.bf16 %v49, %v48
    %v62 = vpack.c.bf16 %v51, %v50
    %v63 = vpack.c.bf16 %v53, %v52
    %v64 = vpack.c.bf16 %v55, %v54
    %v65 = vpack.c.bf16 %v57, %v56
    %v66 = vld [vmem:[%s2] sm:$0xf]
    %v67 = vld [vmem:[%s2 + $0x4] sm:$0xf]
    %v68 = vld [vmem:[%s2 + $0x8] sm:$0xf]
    %v69 = vld [vmem:[%s2 + $0xc] sm:$0xf]
    %s70 = sadd.s32 %s39, 14
    %s71 = scalar_lea.vmem %s0, %s70
    %v72 = vld [vmem:[%s71] sm:$0xff]
    %v73 = vld [vmem:[%s71 + $0x8] sm:$0xff]
    %v74 = vld [vmem:[%s71 + $0x10] sm:$0xff]
    %v75 = vld [vmem:[%s71 + $0x18] sm:$0xff]
    %v76 = vld [vmem:[%s71 + $0x20] sm:$0xff]
    %v77 = vld [vmem:[%s71 + $0x28] sm:$0xff]
    %v78 = vld [vmem:[%s71 + $0x30] sm:$0xff]
    %v79 = vld [vmem:[%s71 + $0x38] sm:$0xff]
    %v80 = vld [vmem:[%s71 + $0x40] sm:$0xff]
    %v81 = vld [vmem:[%s71 + $0x48] sm:$0xff]
    %v82 = vld [vmem:[%s71 + $0x50] sm:$0xff]
    %v83 = vld [vmem:[%s71 + $0x58] sm:$0xff]
    %v84 = vld [vmem:[%s71 + $0x60] sm:$0xff]
    %v85 = vld [vmem:[%s71 + $0x68] sm:$0xff]
    %v86 = vld [vmem:[%s71 + $0x70] sm:$0xff]
    %v87 = vld [vmem:[%s71 + $0x78] sm:$0xff]
    %v88 = vpack.c.bf16 %v73, %v72
    %v89 = vpack.c.bf16 %v75, %v74
    %v90 = vpack.c.bf16 %v77, %v76
    %v91 = vpack.c.bf16 %v79, %v78
    %v92 = vpack.c.bf16 %v81, %v80
    %v93 = vpack.c.bf16 %v83, %v82
    %v94 = vpack.c.bf16 %v85, %v84
    %v95 = vpack.c.bf16 %v87, %v86
    %s96 = scalar_lea.vmem %s2, 16
    %v97 = vld [vmem:[%s96] sm:$0xf]
    %v98 = vld [vmem:[%s96 + $0x4] sm:$0xf]
    %v99 = vld [vmem:[%s96 + $0x8] sm:$0xf]
    %v100 = vld [vmem:[%s96 + $0xc] sm:$0xf]
    %v105 = vunpack.c.l.b16 %v97
    %v106 = vunpack.c.l.b16 %v98
    %v107 = vunpack.c.l.b16 %v99
    %v108 = vunpack.c.l.b16 %v100
    %v109 = vpack.c.b16 %v106, %v105
    %v110 = vpack.c.b16 %v108, %v107
    %vm113 = vcmask 261120
    %v115 = vsel %vm113, %v88, 0
    %v118 = vsel %vm113, %v89, 0
    %v121 = vsel %vm113, %v90, 0
    %v124 = vsel %vm113, %v91, 0
    %v127 = vsel %vm113, %v92, 0
    %v130 = vsel %vm113, %v93, 0
    %v133 = vsel %vm113, %v94, 0
    %v136 = vsel %vm113, %v95, 0
    %138 = vmatpush.bf16.msra.mxu0 0
    %139 = vmatpush.bf16.msra.mxu0 0
    %140 = vmatpush.bf16.msra.mxu0 0
    %141 = vmatpush.bf16.msra.mxu0 0
    %142 = vmatpush.bf16.msra.mxu0 0
    %143 = vmatpush.bf16.msra.mxu0 0
    %144 = vmatpush.bf16.msra.mxu0 %v110
    %145 = vmatpush.bf16.msra.mxu0 %v109
    %146 = vmatmul.bf16.gmra.mxu0 %v115
    %v147 = vpop.f32.mrf.mxu0
    %v148 = vadd.f32 0.0, %v147
    %v149 = vpop.f32.mrf.mxu0
    %v150 = vadd.f32 0.0, %v149
    %151 = vmatmul.bf16.gmra.mxu0 %v118
    %v152 = vpop.f32.mrf.mxu0
    %v153 = vadd.f32 0.0, %v152
    %v154 = vpop.f32.mrf.mxu0
    %v155 = vadd.f32 0.0, %v154
    %156 = vmatmul.bf16.gmra.mxu0 %v121
    %v157 = vpop.f32.mrf.mxu0
    %v158 = vadd.f32 0.0, %v157
    %v159 = vpop.f32.mrf.mxu0
    %v160 = vadd.f32 0.0, %v159
    %161 = vmatmul.bf16.gmra.mxu0 %v124
    %v162 = vpop.f32.mrf.mxu0
    %v163 = vadd.f32 0.0, %v162
    %v164 = vpop.f32.mrf.mxu0
    %v165 = vadd.f32 0.0, %v164
    %166 = vmatmul.bf16.gmra.mxu0 %v127
    %v167 = vpop.f32.mrf.mxu0
    %v168 = vadd.f32 0.0, %v167
    %v169 = vpop.f32.mrf.mxu0
    %v170 = vadd.f32 0.0, %v169
    %171 = vmatmul.bf16.gmra.mxu0 %v130
    %v172 = vpop.f32.mrf.mxu0
    %v173 = vadd.f32 0.0, %v172
    %v174 = vpop.f32.mrf.mxu0
    %v175 = vadd.f32 0.0, %v174
    %176 = vmatmul.bf16.gmra.mxu0 %v133
    %v177 = vpop.f32.mrf.mxu0
    %v178 = vadd.f32 0.0, %v177
    %v179 = vpop.f32.mrf.mxu0
    %v180 = vadd.f32 0.0, %v179
    %181 = vmatmul.bf16.gmra.mxu0 %v136
    %v182 = vpop.f32.mrf.mxu0
    %v183 = vadd.f32 0.0, %v182
    %v184 = vpop.f32.mrf.mxu0
    %v185 = vadd.f32 0.0, %v184
    %186 = vdwg.mxu0
    %v191 = vunpack.c.l.b16 %v66
    %v192 = vunpack.c.l.b16 %v67
    %v193 = vunpack.c.l.b16 %v68
    %v194 = vunpack.c.l.b16 %v69
    %v195 = vpack.c.b16 %v192, %v191
    %v196 = vpack.c.b16 %v194, %v193
    %v200 = vsel %vm113, %v58, 0
    %v203 = vsel %vm113, %v59, 0
    %v206 = vsel %vm113, %v60, 0
    %v209 = vsel %vm113, %v61, 0
    %v212 = vsel %vm113, %v62, 0
    %v215 = vsel %vm113, %v63, 0
    %v218 = vsel %vm113, %v64, 0
    %v221 = vsel %vm113, %v65, 0
    %223 = vmatpush.bf16.msra.mxu0 0
    %224 = vmatpush.bf16.msra.mxu0 0
    %225 = vmatpush.bf16.msra.mxu0 0
    %226 = vmatpush.bf16.msra.mxu0 0
    %227 = vmatpush.bf16.msra.mxu0 0
    %228 = vmatpush.bf16.msra.mxu0 0
    %229 = vmatpush.bf16.msra.mxu0 %v196
    %230 = vmatpush.bf16.msra.mxu0 %v195
    %231 = vmatmul.bf16.gmra.mxu0 %v200
    %v232 = vpop.f32.mrf.mxu0
    %v233 = vadd.f32 %v148, %v232
    %v234 = vpop.f32.mrf.mxu0
    %v235 = vadd.f32 %v150, %v234
    %236 = vmatmul.bf16.gmra.mxu0 %v203
    %v237 = vpop.f32.mrf.mxu0
    %v238 = vadd.f32 %v153, %v237
    %v239 = vpop.f32.mrf.mxu0
    %v240 = vadd.f32 %v155, %v239
    %241 = vmatmul.bf16.gmra.mxu0 %v206
    %v242 = vpop.f32.mrf.mxu0
    %v243 = vadd.f32 %v158, %v242
    %v244 = vpop.f32.mrf.mxu0
    %v245 = vadd.f32 %v160, %v244
    %246 = vmatmul.bf16.gmra.mxu0 %v209
    %v247 = vpop.f32.mrf.mxu0
    %v248 = vadd.f32 %v163, %v247
    %v249 = vpop.f32.mrf.mxu0
    %v250 = vadd.f32 %v165, %v249
    %251 = vmatmul.bf16.gmra.mxu0 %v212
    %v252 = vpop.f32.mrf.mxu0
    %v253 = vadd.f32 %v168, %v252
    %v254 = vpop.f32.mrf.mxu0
    %v255 = vadd.f32 %v170, %v254
    %256 = vmatmul.bf16.gmra.mxu0 %v215
    %v257 = vpop.f32.mrf.mxu0
    %v258 = vadd.f32 %v173, %v257
    %v259 = vpop.f32.mrf.mxu0
    %v260 = vadd.f32 %v175, %v259
    %261 = vmatmul.bf16.gmra.mxu0 %v218
    %v262 = vpop.f32.mrf.mxu0
    %v263 = vadd.f32 %v178, %v262
    %v264 = vpop.f32.mrf.mxu0
    %v265 = vadd.f32 %v180, %v264
    %266 = vmatmul.bf16.gmra.mxu0 %v221
    %v267 = vpop.f32.mrf.mxu0
    %v268 = vadd.f32 %v183, %v267
    %v269 = vpop.f32.mrf.mxu0
    %v270 = vadd.f32 %v185, %v269
    %271 = vdwg.mxu0
    %s272 = sadd.s32 %s39, 15
    %s273 = scalar_lea.vmem %s0, %s272
    %v274 = vld [vmem:[%s273] sm:$0xff]
    %v275 = vld [vmem:[%s273 + $0x8] sm:$0xff]
    %v276 = vld [vmem:[%s273 + $0x10] sm:$0xff]
    %v277 = vld [vmem:[%s273 + $0x18] sm:$0xff]
    %v278 = vld [vmem:[%s273 + $0x20] sm:$0xff]
    %v279 = vld [vmem:[%s273 + $0x28] sm:$0xff]
    %v280 = vld [vmem:[%s273 + $0x30] sm:$0xff]
    %v281 = vld [vmem:[%s273 + $0x38] sm:$0xff]
    %v282 = vld [vmem:[%s273 + $0x40] sm:$0xff]
    %v283 = vld [vmem:[%s273 + $0x48] sm:$0xff]
    %v284 = vld [vmem:[%s273 + $0x50] sm:$0xff]
    %v285 = vld [vmem:[%s273 + $0x58] sm:$0xff]
    %v286 = vld [vmem:[%s273 + $0x60] sm:$0xff]
    %v287 = vld [vmem:[%s273 + $0x68] sm:$0xff]
    %v288 = vld [vmem:[%s273 + $0x70] sm:$0xff]
    %v289 = vld [vmem:[%s273 + $0x78] sm:$0xff]
    %v290 = vpack.c.bf16 %v275, %v274
    %v291 = vpack.c.bf16 %v277, %v276
    %v292 = vpack.c.bf16 %v279, %v278
    %v293 = vpack.c.bf16 %v281, %v280
    %v294 = vpack.c.bf16 %v283, %v282
    %v295 = vpack.c.bf16 %v285, %v284
    %v296 = vpack.c.bf16 %v287, %v286
    %v297 = vpack.c.bf16 %v289, %v288
    %s298 = scalar_lea.vmem %s2, 32
    %v299 = vld [vmem:[%s298] sm:$0xf]
    %v300 = vld [vmem:[%s298 + $0x4] sm:$0xf]
    %v301 = vld [vmem:[%s298 + $0x8] sm:$0xf]
    %v302 = vld [vmem:[%s298 + $0xc] sm:$0xf]
    %v307 = vunpack.c.l.b16 %v299
    %v308 = vunpack.c.l.b16 %v300
    %v309 = vunpack.c.l.b16 %v301
    %v310 = vunpack.c.l.b16 %v302
    %v311 = vpack.c.b16 %v308, %v307
    %v312 = vpack.c.b16 %v310, %v309
    %v316 = vsel %vm113, %v290, 0
    %v319 = vsel %vm113, %v291, 0
    %v322 = vsel %vm113, %v292, 0
    %v325 = vsel %vm113, %v293, 0
    %v328 = vsel %vm113, %v294, 0
    %v331 = vsel %vm113, %v295, 0
    %v334 = vsel %vm113, %v296, 0
    %v337 = vsel %vm113, %v297, 0
    %339 = vmatpush.bf16.msra.mxu0 0
    %340 = vmatpush.bf16.msra.mxu0 0
    %341 = vmatpush.bf16.msra.mxu0 0
    %342 = vmatpush.bf16.msra.mxu0 0
    %343 = vmatpush.bf16.msra.mxu0 0
    %344 = vmatpush.bf16.msra.mxu0 0
    %345 = vmatpush.bf16.msra.mxu0 %v312
    %346 = vmatpush.bf16.msra.mxu0 %v311
    %347 = vmatmul.bf16.gmra.mxu0 %v316
    %v348 = vpop.f32.mrf.mxu0
    %v349 = vadd.f32 0.0, %v348
    %v350 = vpop.f32.mrf.mxu0
    %v351 = vadd.f32 0.0, %v350
    %352 = vmatmul.bf16.gmra.mxu0 %v319
    %v353 = vpop.f32.mrf.mxu0
    %v354 = vadd.f32 0.0, %v353
    %v355 = vpop.f32.mrf.mxu0
    %v356 = vadd.f32 0.0, %v355
    %357 = vmatmul.bf16.gmra.mxu0 %v322
    %v358 = vpop.f32.mrf.mxu0
    %v359 = vadd.f32 0.0, %v358
    %v360 = vpop.f32.mrf.mxu0
    %v361 = vadd.f32 0.0, %v360
    %362 = vmatmul.bf16.gmra.mxu0 %v325
    %v363 = vpop.f32.mrf.mxu0
    %v364 = vadd.f32 0.0, %v363
    %v365 = vpop.f32.mrf.mxu0
    %v366 = vadd.f32 0.0, %v365
    %367 = vmatmul.bf16.gmra.mxu0 %v328
    %v368 = vpop.f32.mrf.mxu0
    %v369 = vadd.f32 0.0, %v368
    %v370 = vpop.f32.mrf.mxu0
    %v371 = vadd.f32 0.0, %v370
    %372 = vmatmul.bf16.gmra.mxu0 %v331
    %v373 = vpop.f32.mrf.mxu0
    %v374 = vadd.f32 0.0, %v373
    %v375 = vpop.f32.mrf.mxu0
    %v376 = vadd.f32 0.0, %v375
    %377 = vmatmul.bf16.gmra.mxu0 %v334
    %v378 = vpop.f32.mrf.mxu0
    %v379 = vadd.f32 0.0, %v378
    %v380 = vpop.f32.mrf.mxu0
    %v381 = vadd.f32 0.0, %v380
    %382 = vmatmul.bf16.gmra.mxu0 %v337
    %v383 = vpop.f32.mrf.mxu0
    %v384 = vadd.f32 0.0, %v383
    %v385 = vpop.f32.mrf.mxu0
    %v386 = vadd.f32 0.0, %v385
    %387 = vdwg.mxu0
    %v388 = vadd.f32 %v233, %v349
    %v389 = vadd.f32 %v235, %v351
    %v390 = vadd.f32 %v238, %v354
    %v391 = vadd.f32 %v240, %v356
    %v392 = vadd.f32 %v243, %v359
    %v393 = vadd.f32 %v245, %v361
    %v394 = vadd.f32 %v248, %v364
    %v395 = vadd.f32 %v250, %v366
    %v396 = vadd.f32 %v253, %v369
    %v397 = vadd.f32 %v255, %v371
    %v398 = vadd.f32 %v258, %v374
    %v399 = vadd.f32 %v260, %v376
    %v400 = vadd.f32 %v263, %v379
    %v401 = vadd.f32 %v265, %v381
    %v402 = vadd.f32 %v268, %v384
    %v403 = vadd.f32 %v270, %v386
    %s404 = sadd.s32 %s39, 31
    %s405 = scalar_lea.vmem %s0, %s404
    %v406 = vld [vmem:[%s405] sm:$0xff]
    %v407 = vld [vmem:[%s405 + $0x8] sm:$0xff]
    %v408 = vld [vmem:[%s405 + $0x10] sm:$0xff]
    %v409 = vld [vmem:[%s405 + $0x18] sm:$0xff]
    %v410 = vld [vmem:[%s405 + $0x20] sm:$0xff]
    %v411 = vld [vmem:[%s405 + $0x28] sm:$0xff]
    %v412 = vld [vmem:[%s405 + $0x30] sm:$0xff]
    %v413 = vld [vmem:[%s405 + $0x38] sm:$0xff]
    %v414 = vld [vmem:[%s405 + $0x40] sm:$0xff]
    %v415 = vld [vmem:[%s405 + $0x48] sm:$0xff]
    %v416 = vld [vmem:[%s405 + $0x50] sm:$0xff]
    %v417 = vld [vmem:[%s405 + $0x58] sm:$0xff]
    %v418 = vld [vmem:[%s405 + $0x60] sm:$0xff]
    %v419 = vld [vmem:[%s405 + $0x68] sm:$0xff]
    %v420 = vld [vmem:[%s405 + $0x70] sm:$0xff]
    %v421 = vld [vmem:[%s405 + $0x78] sm:$0xff]
    %v422 = vpack.c.bf16 %v407, %v406
    %v423 = vpack.c.bf16 %v409, %v408
    %v424 = vpack.c.bf16 %v411, %v410
    %v425 = vpack.c.bf16 %v413, %v412
    %v426 = vpack.c.bf16 %v415, %v414
    %v427 = vpack.c.bf16 %v417, %v416
    %v428 = vpack.c.bf16 %v419, %v418
    %v429 = vpack.c.bf16 %v421, %v420
    %s430 = scalar_lea.vmem %s2, 48
    %v431 = vld [vmem:[%s430] sm:$0xf]
    %v432 = vld [vmem:[%s430 + $0x4] sm:$0xf]
    %v433 = vld [vmem:[%s430 + $0x8] sm:$0xf]
    %v434 = vld [vmem:[%s430 + $0xc] sm:$0xf]
    %v439 = vunpack.c.l.b16 %v431
    %v440 = vunpack.c.l.b16 %v432
    %v441 = vunpack.c.l.b16 %v433
    %v442 = vunpack.c.l.b16 %v434
    %v443 = vpack.c.b16 %v440, %v439
    %v444 = vpack.c.b16 %v442, %v441
    %v448 = vsel %vm113, %v422, 0
    %v451 = vsel %vm113, %v423, 0
    %v454 = vsel %vm113, %v424, 0
    %v457 = vsel %vm113, %v425, 0
    %v460 = vsel %vm113, %v426, 0
    %v463 = vsel %vm113, %v427, 0
    %v466 = vsel %vm113, %v428, 0
    %v469 = vsel %vm113, %v429, 0
    %471 = vmatpush.bf16.msra.mxu0 0
    %472 = vmatpush.bf16.msra.mxu0 0
    %473 = vmatpush.bf16.msra.mxu0 0
    %474 = vmatpush.bf16.msra.mxu0 0
    %475 = vmatpush.bf16.msra.mxu0 0
    %476 = vmatpush.bf16.msra.mxu0 0
    %477 = vmatpush.bf16.msra.mxu0 %v444
    %478 = vmatpush.bf16.msra.mxu0 %v443
    %479 = vmatmul.bf16.gmra.mxu0 %v448
    %v480 = vpop.f32.mrf.mxu0
    %v481 = vadd.f32 0.0, %v480
    %v482 = vpop.f32.mrf.mxu0
    %v483 = vadd.f32 0.0, %v482
    %484 = vmatmul.bf16.gmra.mxu0 %v451
    %v485 = vpop.f32.mrf.mxu0
    %v486 = vadd.f32 0.0, %v485
    %v487 = vpop.f32.mrf.mxu0
    %v488 = vadd.f32 0.0, %v487
    %489 = vmatmul.bf16.gmra.mxu0 %v454
    %v490 = vpop.f32.mrf.mxu0
    %v491 = vadd.f32 0.0, %v490
    %v492 = vpop.f32.mrf.mxu0
    %v493 = vadd.f32 0.0, %v492
    %494 = vmatmul.bf16.gmra.mxu0 %v457
    %v495 = vpop.f32.mrf.mxu0
    %v496 = vadd.f32 0.0, %v495
    %v497 = vpop.f32.mrf.mxu0
    %v498 = vadd.f32 0.0, %v497
    %499 = vmatmul.bf16.gmra.mxu0 %v460
    %v500 = vpop.f32.mrf.mxu0
    %v501 = vadd.f32 0.0, %v500
    %v502 = vpop.f32.mrf.mxu0
    %v503 = vadd.f32 0.0, %v502
    %504 = vmatmul.bf16.gmra.mxu0 %v463
    %v505 = vpop.f32.mrf.mxu0
    %v506 = vadd.f32 0.0, %v505
    %v507 = vpop.f32.mrf.mxu0
    %v508 = vadd.f32 0.0, %v507
    %509 = vmatmul.bf16.gmra.mxu0 %v466
    %v510 = vpop.f32.mrf.mxu0
    %v511 = vadd.f32 0.0, %v510
    %v512 = vpop.f32.mrf.mxu0
    %v513 = vadd.f32 0.0, %v512
    %514 = vmatmul.bf16.gmra.mxu0 %v469
    %v515 = vpop.f32.mrf.mxu0
    %v516 = vadd.f32 0.0, %v515
    %v517 = vpop.f32.mrf.mxu0
    %v518 = vadd.f32 0.0, %v517
    %519 = vdwg.mxu0
    %v520 = vadd.f32 %v388, %v481
    %v521 = vadd.f32 %v389, %v483
    %v522 = vadd.f32 %v390, %v486
    %v523 = vadd.f32 %v391, %v488
    %v524 = vadd.f32 %v392, %v491
    %v525 = vadd.f32 %v393, %v493
    %v526 = vadd.f32 %v394, %v496
    %v527 = vadd.f32 %v395, %v498
    %v528 = vadd.f32 %v396, %v501
    %v529 = vadd.f32 %v397, %v503
    %v530 = vadd.f32 %v398, %v506
    %v531 = vadd.f32 %v399, %v508
    %v532 = vadd.f32 %v400, %v511
    %v533 = vadd.f32 %v401, %v513
    %v534 = vadd.f32 %v402, %v516
    %v535 = vadd.f32 %v403, %v518
    %s536 = sadd.s32 %s39, 32
    %s537 = scalar_lea.vmem %s0, %s536
    %v538 = vld [vmem:[%s537] sm:$0xff]
    %v539 = vld [vmem:[%s537 + $0x8] sm:$0xff]
    %v540 = vld [vmem:[%s537 + $0x10] sm:$0xff]
    %v541 = vld [vmem:[%s537 + $0x18] sm:$0xff]
    %v542 = vld [vmem:[%s537 + $0x20] sm:$0xff]
    %v543 = vld [vmem:[%s537 + $0x28] sm:$0xff]
    %v544 = vld [vmem:[%s537 + $0x30] sm:$0xff]
    %v545 = vld [vmem:[%s537 + $0x38] sm:$0xff]
    %v546 = vld [vmem:[%s537 + $0x40] sm:$0xff]
    %v547 = vld [vmem:[%s537 + $0x48] sm:$0xff]
    %v548 = vld [vmem:[%s537 + $0x50] sm:$0xff]
    %v549 = vld [vmem:[%s537 + $0x58] sm:$0xff]
    %v550 = vld [vmem:[%s537 + $0x60] sm:$0xff]
    %v551 = vld [vmem:[%s537 + $0x68] sm:$0xff]
    %v552 = vld [vmem:[%s537 + $0x70] sm:$0xff]
    %v553 = vld [vmem:[%s537 + $0x78] sm:$0xff]
    %v554 = vpack.c.bf16 %v539, %v538
    %v555 = vpack.c.bf16 %v541, %v540
    %v556 = vpack.c.bf16 %v543, %v542
    %v557 = vpack.c.bf16 %v545, %v544
    %v558 = vpack.c.bf16 %v547, %v546
    %v559 = vpack.c.bf16 %v549, %v548
    %v560 = vpack.c.bf16 %v551, %v550
    %v561 = vpack.c.bf16 %v553, %v552
    %s562 = scalar_lea.vmem %s2, 64
    %v563 = vld [vmem:[%s562] sm:$0xf]
    %v564 = vld [vmem:[%s562 + $0x4] sm:$0xf]
    %v565 = vld [vmem:[%s562 + $0x8] sm:$0xf]
    %v566 = vld [vmem:[%s562 + $0xc] sm:$0xf]
    %v571 = vunpack.c.l.b16 %v563
    %v572 = vunpack.c.l.b16 %v564
    %v573 = vunpack.c.l.b16 %v565
    %v574 = vunpack.c.l.b16 %v566
    %v575 = vpack.c.b16 %v572, %v571
    %v576 = vpack.c.b16 %v574, %v573
    %v580 = vsel %vm113, %v554, 0
    %v583 = vsel %vm113, %v555, 0
    %v586 = vsel %vm113, %v556, 0
    %v589 = vsel %vm113, %v557, 0
    %v592 = vsel %vm113, %v558, 0
    %v595 = vsel %vm113, %v559, 0
    %v598 = vsel %vm113, %v560, 0
    %v601 = vsel %vm113, %v561, 0
    %603 = vmatpush.bf16.msra.mxu0 0
    %604 = vmatpush.bf16.msra.mxu0 0
    %605 = vmatpush.bf16.msra.mxu0 0
    %606 = vmatpush.bf16.msra.mxu0 0
    %607 = vmatpush.bf16.msra.mxu0 0
    %608 = vmatpush.bf16.msra.mxu0 0
    %609 = vmatpush.bf16.msra.mxu0 %v576
    %610 = vmatpush.bf16.msra.mxu0 %v575
    %611 = vmatmul.bf16.gmra.mxu0 %v580
    %v612 = vpop.f32.mrf.mxu0
    %v613 = vadd.f32 0.0, %v612
    %v614 = vpop.f32.mrf.mxu0
    %v615 = vadd.f32 0.0, %v614
    %616 = vmatmul.bf16.gmra.mxu0 %v583
    %v617 = vpop.f32.mrf.mxu0
    %v618 = vadd.f32 0.0, %v617
    %v619 = vpop.f32.mrf.mxu0
    %v620 = vadd.f32 0.0, %v619
    %621 = vmatmul.bf16.gmra.mxu0 %v586
    %v622 = vpop.f32.mrf.mxu0
    %v623 = vadd.f32 0.0, %v622
    %v624 = vpop.f32.mrf.mxu0
    %v625 = vadd.f32 0.0, %v624
    %626 = vmatmul.bf16.gmra.mxu0 %v589
    %v627 = vpop.f32.mrf.mxu0
    %v628 = vadd.f32 0.0, %v627
    %v629 = vpop.f32.mrf.mxu0
    %v630 = vadd.f32 0.0, %v629
    %631 = vmatmul.bf16.gmra.mxu0 %v592
    %v632 = vpop.f32.mrf.mxu0
    %v633 = vadd.f32 0.0, %v632
    %v634 = vpop.f32.mrf.mxu0
    %v635 = vadd.f32 0.0, %v634
    %636 = vmatmul.bf16.gmra.mxu0 %v595
    %v637 = vpop.f32.mrf.mxu0
    %v638 = vadd.f32 0.0, %v637
    %v639 = vpop.f32.mrf.mxu0
    %v640 = vadd.f32 0.0, %v639
    %641 = vmatmul.bf16.gmra.mxu0 %v598
    %v642 = vpop.f32.mrf.mxu0
    %v643 = vadd.f32 0.0, %v642
    %v644 = vpop.f32.mrf.mxu0
    %v645 = vadd.f32 0.0, %v644
    %646 = vmatmul.bf16.gmra.mxu0 %v601
    %v647 = vpop.f32.mrf.mxu0
    %v648 = vadd.f32 0.0, %v647
    %v649 = vpop.f32.mrf.mxu0
    %v650 = vadd.f32 0.0, %v649
    %651 = vdwg.mxu0
    %v652 = vadd.f32 %v520, %v613
    %v653 = vadd.f32 %v521, %v615
    %v654 = vadd.f32 %v522, %v618
    %v655 = vadd.f32 %v523, %v620
    %v656 = vadd.f32 %v524, %v623
    %v657 = vadd.f32 %v525, %v625
    %v658 = vadd.f32 %v526, %v628
    %v659 = vadd.f32 %v527, %v630
    %v660 = vadd.f32 %v528, %v633
    %v661 = vadd.f32 %v529, %v635
    %v662 = vadd.f32 %v530, %v638
    %v663 = vadd.f32 %v531, %v640
    %v664 = vadd.f32 %v532, %v643
    %v665 = vadd.f32 %v533, %v645
    %v666 = vadd.f32 %v534, %v648
    %v667 = vadd.f32 %v535, %v650
    %s668 = sadd.s32 %s39, 33
    %s669 = scalar_lea.vmem %s0, %s668
    %v670 = vld [vmem:[%s669] sm:$0xff]
    %v671 = vld [vmem:[%s669 + $0x8] sm:$0xff]
    %v672 = vld [vmem:[%s669 + $0x10] sm:$0xff]
    %v673 = vld [vmem:[%s669 + $0x18] sm:$0xff]
    %v674 = vld [vmem:[%s669 + $0x20] sm:$0xff]
    %v675 = vld [vmem:[%s669 + $0x28] sm:$0xff]
    %v676 = vld [vmem:[%s669 + $0x30] sm:$0xff]
    %v677 = vld [vmem:[%s669 + $0x38] sm:$0xff]
    %v678 = vld [vmem:[%s669 + $0x40] sm:$0xff]
    %v679 = vld [vmem:[%s669 + $0x48] sm:$0xff]
    %v680 = vld [vmem:[%s669 + $0x50] sm:$0xff]
    %v681 = vld [vmem:[%s669 + $0x58] sm:$0xff]
    %v682 = vld [vmem:[%s669 + $0x60] sm:$0xff]
    %v683 = vld [vmem:[%s669 + $0x68] sm:$0xff]
    %v684 = vld [vmem:[%s669 + $0x70] sm:$0xff]
    %v685 = vld [vmem:[%s669 + $0x78] sm:$0xff]
    %v686 = vpack.c.bf16 %v671, %v670
    %v687 = vpack.c.bf16 %v673, %v672
    %v688 = vpack.c.bf16 %v675, %v674
    %v689 = vpack.c.bf16 %v677, %v676
    %v690 = vpack.c.bf16 %v679, %v678
    %v691 = vpack.c.bf16 %v681, %v680
    %v692 = vpack.c.bf16 %v683, %v682
    %v693 = vpack.c.bf16 %v685, %v684
    %s694 = scalar_lea.vmem %s2, 80
    %v695 = vld [vmem:[%s694] sm:$0xf]
    %v696 = vld [vmem:[%s694 + $0x4] sm:$0xf]
    %v697 = vld [vmem:[%s694 + $0x8] sm:$0xf]
    %v698 = vld [vmem:[%s694 + $0xc] sm:$0xf]
    %v703 = vunpack.c.l.b16 %v695
    %v704 = vunpack.c.l.b16 %v696
    %v705 = vunpack.c.l.b16 %v697
    %v706 = vunpack.c.l.b16 %v698
    %v707 = vpack.c.b16 %v704, %v703
    %v708 = vpack.c.b16 %v706, %v705
    %v712 = vsel %vm113, %v686, 0
    %v715 = vsel %vm113, %v687, 0
    %v718 = vsel %vm113, %v688, 0
    %v721 = vsel %vm113, %v689, 0
    %v724 = vsel %vm113, %v690, 0
    %v727 = vsel %vm113, %v691, 0
    %v730 = vsel %vm113, %v692, 0
    %v733 = vsel %vm113, %v693, 0
    %735 = vmatpush.bf16.msra.mxu0 0
    %736 = vmatpush.bf16.msra.mxu0 0
    %737 = vmatpush.bf16.msra.mxu0 0
    %738 = vmatpush.bf16.msra.mxu0 0
    %739 = vmatpush.bf16.msra.mxu0 0
    %740 = vmatpush.bf16.msra.mxu0 0
    %741 = vmatpush.bf16.msra.mxu0 %v708
    %742 = vmatpush.bf16.msra.mxu0 %v707
    %743 = vmatmul.bf16.gmra.mxu0 %v712
    %v744 = vpop.f32.mrf.mxu0
    %v745 = vadd.f32 0.0, %v744
    %v746 = vpop.f32.mrf.mxu0
    %v747 = vadd.f32 0.0, %v746
    %748 = vmatmul.bf16.gmra.mxu0 %v715
    %v749 = vpop.f32.mrf.mxu0
    %v750 = vadd.f32 0.0, %v749
    %v751 = vpop.f32.mrf.mxu0
    %v752 = vadd.f32 0.0, %v751
    %753 = vmatmul.bf16.gmra.mxu0 %v718
    %v754 = vpop.f32.mrf.mxu0
    %v755 = vadd.f32 0.0, %v754
    %v756 = vpop.f32.mrf.mxu0
    %v757 = vadd.f32 0.0, %v756
    %758 = vmatmul.bf16.gmra.mxu0 %v721
    %v759 = vpop.f32.mrf.mxu0
    %v760 = vadd.f32 0.0, %v759
    %v761 = vpop.f32.mrf.mxu0
    %v762 = vadd.f32 0.0, %v761
    %763 = vmatmul.bf16.gmra.mxu0 %v724
    %v764 = vpop.f32.mrf.mxu0
    %v765 = vadd.f32 0.0, %v764
    %v766 = vpop.f32.mrf.mxu0
    %v767 = vadd.f32 0.0, %v766
    %768 = vmatmul.bf16.gmra.mxu0 %v727
    %v769 = vpop.f32.mrf.mxu0
    %v770 = vadd.f32 0.0, %v769
    %v771 = vpop.f32.mrf.mxu0
    %v772 = vadd.f32 0.0, %v771
    %773 = vmatmul.bf16.gmra.mxu0 %v730
    %v774 = vpop.f32.mrf.mxu0
    %v775 = vadd.f32 0.0, %v774
    %v776 = vpop.f32.mrf.mxu0
    %v777 = vadd.f32 0.0, %v776
    %778 = vmatmul.bf16.gmra.mxu0 %v733
    %v779 = vpop.f32.mrf.mxu0
    %v780 = vadd.f32 0.0, %v779
    %v781 = vpop.f32.mrf.mxu0
    %v782 = vadd.f32 0.0, %v781
    %783 = vdwg.mxu0
    %v784 = vadd.f32 %v652, %v745
    %v785 = vadd.f32 %v653, %v747
    %v786 = vadd.f32 %v654, %v750
    %v787 = vadd.f32 %v655, %v752
    %v788 = vadd.f32 %v656, %v755
    %v789 = vadd.f32 %v657, %v757
    %v790 = vadd.f32 %v658, %v760
    %v791 = vadd.f32 %v659, %v762
    %v792 = vadd.f32 %v660, %v765
    %v793 = vadd.f32 %v661, %v767
    %v794 = vadd.f32 %v662, %v770
    %v795 = vadd.f32 %v663, %v772
    %v796 = vadd.f32 %v664, %v775
    %v797 = vadd.f32 %v665, %v777
    %v798 = vadd.f32 %v666, %v780
    %v799 = vadd.f32 %v667, %v782
    %s800 = sadd.s32 %s39, 49
    %s801 = scalar_lea.vmem %s0, %s800
    %v802 = vld [vmem:[%s801] sm:$0xff]
    %v803 = vld [vmem:[%s801 + $0x8] sm:$0xff]
    %v804 = vld [vmem:[%s801 + $0x10] sm:$0xff]
    %v805 = vld [vmem:[%s801 + $0x18] sm:$0xff]
    %v806 = vld [vmem:[%s801 + $0x20] sm:$0xff]
    %v807 = vld [vmem:[%s801 + $0x28] sm:$0xff]
    %v808 = vld [vmem:[%s801 + $0x30] sm:$0xff]
    %v809 = vld [vmem:[%s801 + $0x38] sm:$0xff]
    %v810 = vld [vmem:[%s801 + $0x40] sm:$0xff]
    %v811 = vld [vmem:[%s801 + $0x48] sm:$0xff]
    %v812 = vld [vmem:[%s801 + $0x50] sm:$0xff]
    %v813 = vld [vmem:[%s801 + $0x58] sm:$0xff]
    %v814 = vld [vmem:[%s801 + $0x60] sm:$0xff]
    %v815 = vld [vmem:[%s801 + $0x68] sm:$0xff]
    %v816 = vld [vmem:[%s801 + $0x70] sm:$0xff]
    %v817 = vld [vmem:[%s801 + $0x78] sm:$0xff]
    %v818 = vpack.c.bf16 %v803, %v802
    %v819 = vpack.c.bf16 %v805, %v804
    %v820 = vpack.c.bf16 %v807, %v806
    %v821 = vpack.c.bf16 %v809, %v808
    %v822 = vpack.c.bf16 %v811, %v810
    %v823 = vpack.c.bf16 %v813, %v812
    %v824 = vpack.c.bf16 %v815, %v814
    %v825 = vpack.c.bf16 %v817, %v816
    %s826 = scalar_lea.vmem %s2, 96
    %v827 = vld [vmem:[%s826] sm:$0xf]
    %v828 = vld [vmem:[%s826 + $0x4] sm:$0xf]
    %v829 = vld [vmem:[%s826 + $0x8] sm:$0xf]
    %v830 = vld [vmem:[%s826 + $0xc] sm:$0xf]
    %v835 = vunpack.c.l.b16 %v827
    %v836 = vunpack.c.l.b16 %v828
    %v837 = vunpack.c.l.b16 %v829
    %v838 = vunpack.c.l.b16 %v830
    %v839 = vpack.c.b16 %v836, %v835
    %v840 = vpack.c.b16 %v838, %v837
    %v844 = vsel %vm113, %v818, 0
    %v847 = vsel %vm113, %v819, 0
    %v850 = vsel %vm113, %v820, 0
    %v853 = vsel %vm113, %v821, 0
    %v856 = vsel %vm113, %v822, 0
    %v859 = vsel %vm113, %v823, 0
    %v862 = vsel %vm113, %v824, 0
    %v865 = vsel %vm113, %v825, 0
    %867 = vmatpush.bf16.msra.mxu0 0
    %868 = vmatpush.bf16.msra.mxu0 0
    %869 = vmatpush.bf16.msra.mxu0 0
    %870 = vmatpush.bf16.msra.mxu0 0
    %871 = vmatpush.bf16.msra.mxu0 0
    %872 = vmatpush.bf16.msra.mxu0 0
    %873 = vmatpush.bf16.msra.mxu0 %v840
    %874 = vmatpush.bf16.msra.mxu0 %v839
    %875 = vmatmul.bf16.gmra.mxu0 %v844
    %v876 = vpop.f32.mrf.mxu0
    %v877 = vadd.f32 0.0, %v876
    %v878 = vpop.f32.mrf.mxu0
    %v879 = vadd.f32 0.0, %v878
    %880 = vmatmul.bf16.gmra.mxu0 %v847
    %v881 = vpop.f32.mrf.mxu0
    %v882 = vadd.f32 0.0, %v881
    %v883 = vpop.f32.mrf.mxu0
    %v884 = vadd.f32 0.0, %v883
    %885 = vmatmul.bf16.gmra.mxu0 %v850
    %v886 = vpop.f32.mrf.mxu0
    %v887 = vadd.f32 0.0, %v886
    %v888 = vpop.f32.mrf.mxu0
    %v889 = vadd.f32 0.0, %v888
    %890 = vmatmul.bf16.gmra.mxu0 %v853
    %v891 = vpop.f32.mrf.mxu0
    %v892 = vadd.f32 0.0, %v891
    %v893 = vpop.f32.mrf.mxu0
    %v894 = vadd.f32 0.0, %v893
    %895 = vmatmul.bf16.gmra.mxu0 %v856
    %v896 = vpop.f32.mrf.mxu0
    %v897 = vadd.f32 0.0, %v896
    %v898 = vpop.f32.mrf.mxu0
    %v899 = vadd.f32 0.0, %v898
    %900 = vmatmul.bf16.gmra.mxu0 %v859
    %v901 = vpop.f32.mrf.mxu0
    %v902 = vadd.f32 0.0, %v901
    %v903 = vpop.f32.mrf.mxu0
    %v904 = vadd.f32 0.0, %v903
    %905 = vmatmul.bf16.gmra.mxu0 %v862
    %v906 = vpop.f32.mrf.mxu0
    %v907 = vadd.f32 0.0, %v906
    %v908 = vpop.f32.mrf.mxu0
    %v909 = vadd.f32 0.0, %v908
    %910 = vmatmul.bf16.gmra.mxu0 %v865
    %v911 = vpop.f32.mrf.mxu0
    %v912 = vadd.f32 0.0, %v911
    %v913 = vpop.f32.mrf.mxu0
    %v914 = vadd.f32 0.0, %v913
    %915 = vdwg.mxu0
    %v916 = vadd.f32 %v784, %v877
    %v917 = vadd.f32 %v785, %v879
    %v918 = vadd.f32 %v786, %v882
    %v919 = vadd.f32 %v787, %v884
    %v920 = vadd.f32 %v788, %v887
    %v921 = vadd.f32 %v789, %v889
    %v922 = vadd.f32 %v790, %v892
    %v923 = vadd.f32 %v791, %v894
    %v924 = vadd.f32 %v792, %v897
    %v925 = vadd.f32 %v793, %v899
    %v926 = vadd.f32 %v794, %v902
    %v927 = vadd.f32 %v795, %v904
    %v928 = vadd.f32 %v796, %v907
    %v929 = vadd.f32 %v797, %v909
    %v930 = vadd.f32 %v798, %v912
    %v931 = vadd.f32 %v799, %v914
    %s932 = sadd.s32 %s39, 50
    %s933 = scalar_lea.vmem %s0, %s932
    %v934 = vld [vmem:[%s933] sm:$0xff]
    %v935 = vld [vmem:[%s933 + $0x8] sm:$0xff]
    %v936 = vld [vmem:[%s933 + $0x10] sm:$0xff]
    %v937 = vld [vmem:[%s933 + $0x18] sm:$0xff]
    %v938 = vld [vmem:[%s933 + $0x20] sm:$0xff]
    %v939 = vld [vmem:[%s933 + $0x28] sm:$0xff]
    %v940 = vld [vmem:[%s933 + $0x30] sm:$0xff]
    %v941 = vld [vmem:[%s933 + $0x38] sm:$0xff]
    %v942 = vld [vmem:[%s933 + $0x40] sm:$0xff]
    %v943 = vld [vmem:[%s933 + $0x48] sm:$0xff]
    %v944 = vld [vmem:[%s933 + $0x50] sm:$0xff]
    %v945 = vld [vmem:[%s933 + $0x58] sm:$0xff]
    %v946 = vld [vmem:[%s933 + $0x60] sm:$0xff]
    %v947 = vld [vmem:[%s933 + $0x68] sm:$0xff]
    %v948 = vld [vmem:[%s933 + $0x70] sm:$0xff]
    %v949 = vld [vmem:[%s933 + $0x78] sm:$0xff]
    %v950 = vpack.c.bf16 %v935, %v934
    %v951 = vpack.c.bf16 %v937, %v936
    %v952 = vpack.c.bf16 %v939, %v938
    %v953 = vpack.c.bf16 %v941, %v940
    %v954 = vpack.c.bf16 %v943, %v942
    %v955 = vpack.c.bf16 %v945, %v944
    %v956 = vpack.c.bf16 %v947, %v946
    %v957 = vpack.c.bf16 %v949, %v948
    %s958 = scalar_lea.vmem %s2, 112
    %v959 = vld [vmem:[%s958] sm:$0xf]
    %v960 = vld [vmem:[%s958 + $0x4] sm:$0xf]
    %v961 = vld [vmem:[%s958 + $0x8] sm:$0xf]
    %v962 = vld [vmem:[%s958 + $0xc] sm:$0xf]
    %v967 = vunpack.c.l.b16 %v959
    %v968 = vunpack.c.l.b16 %v960
    %v969 = vunpack.c.l.b16 %v961
    %v970 = vunpack.c.l.b16 %v962
    %v971 = vpack.c.b16 %v968, %v967
    %v972 = vpack.c.b16 %v970, %v969
    %v976 = vsel %vm113, %v950, 0
    %v979 = vsel %vm113, %v951, 0
    %v982 = vsel %vm113, %v952, 0
    %v985 = vsel %vm113, %v953, 0
    %v988 = vsel %vm113, %v954, 0
    %v991 = vsel %vm113, %v955, 0
    %v994 = vsel %vm113, %v956, 0
    %v997 = vsel %vm113, %v957, 0
    %999 = vmatpush.bf16.msra.mxu0 0
    %1000 = vmatpush.bf16.msra.mxu0 0
    %1001 = vmatpush.bf16.msra.mxu0 0
    %1002 = vmatpush.bf16.msra.mxu0 0
    %1003 = vmatpush.bf16.msra.mxu0 0
    %1004 = vmatpush.bf16.msra.mxu0 0
    %1005 = vmatpush.bf16.msra.mxu0 %v972
    %1006 = vmatpush.bf16.msra.mxu0 %v971
    %1007 = vmatmul.bf16.gmra.mxu0 %v976
    %v1008 = vpop.f32.mrf.mxu0
    %v1009 = vadd.f32 0.0, %v1008
    %v1010 = vpop.f32.mrf.mxu0
    %v1011 = vadd.f32 0.0, %v1010
    %1012 = vmatmul.bf16.gmra.mxu0 %v979
    %v1013 = vpop.f32.mrf.mxu0
    %v1014 = vadd.f32 0.0, %v1013
    %v1015 = vpop.f32.mrf.mxu0
    %v1016 = vadd.f32 0.0, %v1015
    %1017 = vmatmul.bf16.gmra.mxu0 %v982
    %v1018 = vpop.f32.mrf.mxu0
    %v1019 = vadd.f32 0.0, %v1018
    %v1020 = vpop.f32.mrf.mxu0
    %v1021 = vadd.f32 0.0, %v1020
    %1022 = vmatmul.bf16.gmra.mxu0 %v985
    %v1023 = vpop.f32.mrf.mxu0
    %v1024 = vadd.f32 0.0, %v1023
    %v1025 = vpop.f32.mrf.mxu0
    %v1026 = vadd.f32 0.0, %v1025
    %1027 = vmatmul.bf16.gmra.mxu0 %v988
    %v1028 = vpop.f32.mrf.mxu0
    %v1029 = vadd.f32 0.0, %v1028
    %v1030 = vpop.f32.mrf.mxu0
    %v1031 = vadd.f32 0.0, %v1030
    %1032 = vmatmul.bf16.gmra.mxu0 %v991
    %v1033 = vpop.f32.mrf.mxu0
    %v1034 = vadd.f32 0.0, %v1033
    %v1035 = vpop.f32.mrf.mxu0
    %v1036 = vadd.f32 0.0, %v1035
    %1037 = vmatmul.bf16.gmra.mxu0 %v994
    %v1038 = vpop.f32.mrf.mxu0
    %v1039 = vadd.f32 0.0, %v1038
    %v1040 = vpop.f32.mrf.mxu0
    %v1041 = vadd.f32 0.0, %v1040
    %1042 = vmatmul.bf16.gmra.mxu0 %v997
    %v1043 = vpop.f32.mrf.mxu0
    %v1044 = vadd.f32 0.0, %v1043
    %v1045 = vpop.f32.mrf.mxu0
    %v1046 = vadd.f32 0.0, %v1045
    %1047 = vdwg.mxu0
    %v1048 = vadd.f32 %v916, %v1009
    %v1049 = vadd.f32 %v917, %v1011
    %v1050 = vadd.f32 %v918, %v1014
    %v1051 = vadd.f32 %v919, %v1016
    %v1052 = vadd.f32 %v920, %v1019
    %v1053 = vadd.f32 %v921, %v1021
    %v1054 = vadd.f32 %v922, %v1024
    %v1055 = vadd.f32 %v923, %v1026
    %v1056 = vadd.f32 %v924, %v1029
    %v1057 = vadd.f32 %v925, %v1031
    %v1058 = vadd.f32 %v926, %v1034
    %v1059 = vadd.f32 %v927, %v1036
    %v1060 = vadd.f32 %v928, %v1039
    %v1061 = vadd.f32 %v929, %v1041
    %v1062 = vadd.f32 %v930, %v1044
    %v1063 = vadd.f32 %v931, %v1046
    %s1064 = sadd.s32 %s39, 51
    %s1065 = scalar_lea.vmem %s0, %s1064
    %v1066 = vld [vmem:[%s1065] sm:$0xff]
    %v1067 = vld [vmem:[%s1065 + $0x8] sm:$0xff]
    %v1068 = vld [vmem:[%s1065 + $0x10] sm:$0xff]
    %v1069 = vld [vmem:[%s1065 + $0x18] sm:$0xff]
    %v1070 = vld [vmem:[%s1065 + $0x20] sm:$0xff]
    %v1071 = vld [vmem:[%s1065 + $0x28] sm:$0xff]
    %v1072 = vld [vmem:[%s1065 + $0x30] sm:$0xff]
    %v1073 = vld [vmem:[%s1065 + $0x38] sm:$0xff]
    %v1074 = vld [vmem:[%s1065 + $0x40] sm:$0xff]
    %v1075 = vld [vmem:[%s1065 + $0x48] sm:$0xff]
    %v1076 = vld [vmem:[%s1065 + $0x50] sm:$0xff]
    %v1077 = vld [vmem:[%s1065 + $0x58] sm:$0xff]
    %v1078 = vld [vmem:[%s1065 + $0x60] sm:$0xff]
    %v1079 = vld [vmem:[%s1065 + $0x68] sm:$0xff]
    %v1080 = vld [vmem:[%s1065 + $0x70] sm:$0xff]
    %v1081 = vld [vmem:[%s1065 + $0x78] sm:$0xff]
    %v1082 = vpack.c.bf16 %v1067, %v1066
    %v1083 = vpack.c.bf16 %v1069, %v1068
    %v1084 = vpack.c.bf16 %v1071, %v1070
    %v1085 = vpack.c.bf16 %v1073, %v1072
    %v1086 = vpack.c.bf16 %v1075, %v1074
    %v1087 = vpack.c.bf16 %v1077, %v1076
    %v1088 = vpack.c.bf16 %v1079, %v1078
    %v1089 = vpack.c.bf16 %v1081, %v1080
    %s1090 = scalar_lea.vmem %s2, 128
    %v1091 = vld [vmem:[%s1090] sm:$0xf]
    %v1092 = vld [vmem:[%s1090 + $0x4] sm:$0xf]
    %v1093 = vld [vmem:[%s1090 + $0x8] sm:$0xf]
    %v1094 = vld [vmem:[%s1090 + $0xc] sm:$0xf]
    %v1099 = vunpack.c.l.b16 %v1091
    %v1100 = vunpack.c.l.b16 %v1092
    %v1101 = vunpack.c.l.b16 %v1093
    %v1102 = vunpack.c.l.b16 %v1094
    %v1103 = vpack.c.b16 %v1100, %v1099
    %v1104 = vpack.c.b16 %v1102, %v1101
    %v1108 = vsel %vm113, %v1082, 0
    %v1111 = vsel %vm113, %v1083, 0
    %v1114 = vsel %vm113, %v1084, 0
    %v1117 = vsel %vm113, %v1085, 0
    %v1120 = vsel %vm113, %v1086, 0
    %v1123 = vsel %vm113, %v1087, 0
    %v1126 = vsel %vm113, %v1088, 0
    %v1129 = vsel %vm113, %v1089, 0
    %1131 = vmatpush.bf16.msra.mxu0 0
    %1132 = vmatpush.bf16.msra.mxu0 0
    %1133 = vmatpush.bf16.msra.mxu0 0
    %1134 = vmatpush.bf16.msra.mxu0 0
    %1135 = vmatpush.bf16.msra.mxu0 0
    %1136 = vmatpush.bf16.msra.mxu0 0
    %1137 = vmatpush.bf16.msra.mxu0 %v1104
    %1138 = vmatpush.bf16.msra.mxu0 %v1103
    %1139 = vmatmul.bf16.gmra.mxu0 %v1108
    %v1140 = vpop.f32.mrf.mxu0
    %v1141 = vadd.f32 0.0, %v1140
    %v1142 = vpop.f32.mrf.mxu0
    %v1143 = vadd.f32 0.0, %v1142
    %1144 = vmatmul.bf16.gmra.mxu0 %v1111
    %v1145 = vpop.f32.mrf.mxu0
    %v1146 = vadd.f32 0.0, %v1145
    %v1147 = vpop.f32.mrf.mxu0
    %v1148 = vadd.f32 0.0, %v1147
    %1149 = vmatmul.bf16.gmra.mxu0 %v1114
    %v1150 = vpop.f32.mrf.mxu0
    %v1151 = vadd.f32 0.0, %v1150
    %v1152 = vpop.f32.mrf.mxu0
    %v1153 = vadd.f32 0.0, %v1152
    %1154 = vmatmul.bf16.gmra.mxu0 %v1117
    %v1155 = vpop.f32.mrf.mxu0
    %v1156 = vadd.f32 0.0, %v1155
    %v1157 = vpop.f32.mrf.mxu0
    %v1158 = vadd.f32 0.0, %v1157
    %1159 = vmatmul.bf16.gmra.mxu0 %v1120
    %v1160 = vpop.f32.mrf.mxu0
    %v1161 = vadd.f32 0.0, %v1160
    %v1162 = vpop.f32.mrf.mxu0
    %v1163 = vadd.f32 0.0, %v1162
    %1164 = vmatmul.bf16.gmra.mxu0 %v1123
    %v1165 = vpop.f32.mrf.mxu0
    %v1166 = vadd.f32 0.0, %v1165
    %v1167 = vpop.f32.mrf.mxu0
    %v1168 = vadd.f32 0.0, %v1167
    %1169 = vmatmul.bf16.gmra.mxu0 %v1126
    %v1170 = vpop.f32.mrf.mxu0
    %v1171 = vadd.f32 0.0, %v1170
    %v1172 = vpop.f32.mrf.mxu0
    %v1173 = vadd.f32 0.0, %v1172
    %1174 = vmatmul.bf16.gmra.mxu0 %v1129
    %v1175 = vpop.f32.mrf.mxu0
    %v1176 = vadd.f32 0.0, %v1175
    %v1177 = vpop.f32.mrf.mxu0
    %v1178 = vadd.f32 0.0, %v1177
    %1179 = vdwg.mxu0
    %v1180 = vadd.f32 %v1048, %v1141
    %v1181 = vadd.f32 %v1049, %v1143
    %v1182 = vadd.f32 %v1050, %v1146
    %v1183 = vadd.f32 %v1051, %v1148
    %v1184 = vadd.f32 %v1052, %v1151
    %v1185 = vadd.f32 %v1053, %v1153
    %v1186 = vadd.f32 %v1054, %v1156
    %v1187 = vadd.f32 %v1055, %v1158
    %v1188 = vadd.f32 %v1056, %v1161
    %v1189 = vadd.f32 %v1057, %v1163
    %v1190 = vadd.f32 %v1058, %v1166
    %v1191 = vadd.f32 %v1059, %v1168
    %v1192 = vadd.f32 %v1060, %v1171
    %v1193 = vadd.f32 %v1061, %v1173
    %v1194 = vadd.f32 %v1062, %v1176
    %v1195 = vadd.f32 %v1063, %v1178
    %v1196 = vld [vmem:[%s3] sm:$0x1]
    %v1198 = vperm.slane %v1196, 0
    %v1200 = vadd.f32 %v1180, %v1198
    %v1201 = vadd.f32 %v1181, %v1198
    %v1202 = vadd.f32 %v1182, %v1198
    %v1203 = vadd.f32 %v1183, %v1198
    %v1204 = vadd.f32 %v1184, %v1198
    %v1205 = vadd.f32 %v1185, %v1198
    %v1206 = vadd.f32 %v1186, %v1198
    %v1207 = vadd.f32 %v1187, %v1198
    %v1208 = vadd.f32 %v1188, %v1198
    %v1209 = vadd.f32 %v1189, %v1198
    %v1210 = vadd.f32 %v1190, %v1198
    %v1211 = vadd.f32 %v1191, %v1198
    %v1212 = vadd.f32 %v1192, %v1198
    %v1213 = vadd.f32 %v1193, %v1198
    %v1214 = vadd.f32 %v1194, %v1198
    %v1215 = vadd.f32 %v1195, %v1198
    %s1216 = scalar_lea.vmem [#allocation2], %s39
    %1217 = vst.msk [vmem:[%s1216] sm:$0xff] %vm113, %v1200
    %1218 = vst.msk [vmem:[%s1216 + $0x8] sm:$0xff] %vm113, %v1201
    %1219 = vst.msk [vmem:[%s1216 + $0x10] sm:$0xff] %vm113, %v1202
    %1220 = vst.msk [vmem:[%s1216 + $0x18] sm:$0xff] %vm113, %v1203
    %1221 = vst.msk [vmem:[%s1216 + $0x20] sm:$0xff] %vm113, %v1204
    %1222 = vst.msk [vmem:[%s1216 + $0x28] sm:$0xff] %vm113, %v1205
    %1223 = vst.msk [vmem:[%s1216 + $0x30] sm:$0xff] %vm113, %v1206
    %1224 = vst.msk [vmem:[%s1216 + $0x38] sm:$0xff] %vm113, %v1207
    %1225 = vst.msk [vmem:[%s1216 + $0x40] sm:$0xff] %vm113, %v1208
    %1226 = vst.msk [vmem:[%s1216 + $0x48] sm:$0xff] %vm113, %v1209
    %1227 = vst.msk [vmem:[%s1216 + $0x50] sm:$0xff] %vm113, %v1210
    %1228 = vst.msk [vmem:[%s1216 + $0x58] sm:$0xff] %vm113, %v1211
    %1229 = vst.msk [vmem:[%s1216 + $0x60] sm:$0xff] %vm113, %v1212
    %1230 = vst.msk [vmem:[%s1216 + $0x68] sm:$0xff] %vm113, %v1213
    %1231 = vst.msk [vmem:[%s1216 + $0x70] sm:$0xff] %vm113, %v1214
    %1232 = vst.msk [vmem:[%s1216 + $0x78] sm:$0xff] %vm113, %v1215
    %s1233 = scalar_lea.vmem %s1, %s39
    %v1234 = vld [vmem:[%s1233] sm:$0xff]
    %v1235 = vld [vmem:[%s1233 + $0x8] sm:$0xff]
    %v1236 = vld [vmem:[%s1233 + $0x10] sm:$0xff]
    %v1237 = vld [vmem:[%s1233 + $0x18] sm:$0xff]
    %v1238 = vld [vmem:[%s1233 + $0x20] sm:$0xff]
    %v1239 = vld [vmem:[%s1233 + $0x28] sm:$0xff]
    %v1240 = vld [vmem:[%s1233 + $0x30] sm:$0xff]
    %v1241 = vld [vmem:[%s1233 + $0x38] sm:$0xff]
    %v1242 = vld [vmem:[%s1233 + $0x40] sm:$0xff]
    %v1243 = vld [vmem:[%s1233 + $0x48] sm:$0xff]
    %v1244 = vld [vmem:[%s1233 + $0x50] sm:$0xff]
    %v1245 = vld [vmem:[%s1233 + $0x58] sm:$0xff]
    %v1246 = vld [vmem:[%s1233 + $0x60] sm:$0xff]
    %v1247 = vld [vmem:[%s1233 + $0x68] sm:$0xff]
    %v1248 = vld [vmem:[%s1233 + $0x70] sm:$0xff]
    %v1249 = vld [vmem:[%s1233 + $0x78] sm:$0xff]
    %1251 = vset.pattern.permute.xlu0 0
    %1252 = vperm.xlu0 %1251, %v1234
    %v1253 = vpop.permute.xlu0 %1252
    %1256 = vset.pattern.permute.xlu0 0
    %1257 = vperm.xlu0 %1256, %v1235
    %v1258 = vpop.permute.xlu0 %1257
    %1261 = vset.pattern.permute.xlu0 0
    %1262 = vperm.xlu0 %1261, %v1236
    %v1263 = vpop.permute.xlu0 %1262
    %1266 = vset.pattern.permute.xlu0 0
    %1267 = vperm.xlu0 %1266, %v1237
    %v1268 = vpop.permute.xlu0 %1267
    %1271 = vset.pattern.permute.xlu0 0
    %1272 = vperm.xlu0 %1271, %v1238
    %v1273 = vpop.permute.xlu0 %1272
    %1276 = vset.pattern.permute.xlu0 0
    %1277 = vperm.xlu0 %1276, %v1239
    %v1278 = vpop.permute.xlu0 %1277
    %1281 = vset.pattern.permute.xlu0 0
    %1282 = vperm.xlu0 %1281, %v1240
    %v1283 = vpop.permute.xlu0 %1282
    %1286 = vset.pattern.permute.xlu0 0
    %1287 = vperm.xlu0 %1286, %v1241
    %v1288 = vpop.permute.xlu0 %1287
    %1291 = vset.pattern.permute.xlu0 0
    %1292 = vperm.xlu0 %1291, %v1242
    %v1293 = vpop.permute.xlu0 %1292
    %1296 = vset.pattern.permute.xlu0 0
    %1297 = vperm.xlu0 %1296, %v1243
    %v1298 = vpop.permute.xlu0 %1297
    %1301 = vset.pattern.permute.xlu0 0
    %1302 = vperm.xlu0 %1301, %v1244
    %v1303 = vpop.permute.xlu0 %1302
    %1306 = vset.pattern.permute.xlu0 0
    %1307 = vperm.xlu0 %1306, %v1245
    %v1308 = vpop.permute.xlu0 %1307
    %1311 = vset.pattern.permute.xlu0 0
    %1312 = vperm.xlu0 %1311, %v1246
    %v1313 = vpop.permute.xlu0 %1312
    %1316 = vset.pattern.permute.xlu0 0
    %1317 = vperm.xlu0 %1316, %v1247
    %v1318 = vpop.permute.xlu0 %1317
    %1321 = vset.pattern.permute.xlu0 0
    %1322 = vperm.xlu0 %1321, %v1248
    %v1323 = vpop.permute.xlu0 %1322
    %1326 = vset.pattern.permute.xlu0 0
    %1327 = vperm.xlu0 %1326, %v1249
    %v1328 = vpop.permute.xlu0 %1327
    %v1330 = vmul.f32 %v1200, %v1253
    %v1331 = vmul.f32 %v1201, %v1258
    %v1332 = vmul.f32 %v1202, %v1263
    %v1333 = vmul.f32 %v1203, %v1268
    %v1334 = vmul.f32 %v1204, %v1273
    %v1335 = vmul.f32 %v1205, %v1278
    %v1336 = vmul.f32 %v1206, %v1283
    %v1337 = vmul.f32 %v1207, %v1288
    %v1338 = vmul.f32 %v1208, %v1293
    %v1339 = vmul.f32 %v1209, %v1298
    %v1340 = vmul.f32 %v1210, %v1303
    %v1341 = vmul.f32 %v1211, %v1308
    %v1342 = vmul.f32 %v1212, %v1313
    %v1343 = vmul.f32 %v1213, %v1318
    %v1344 = vmul.f32 %v1214, %v1323
    %v1345 = vmul.f32 %v1215, %v1328
    %v1346 = vsel %vm113, %v1330, 0.0
    %v1347 = vsel %vm113, %v1331, 0.0
    %v1348 = vadd.f32 %v1346, %v1347
    %v1349 = vsel %vm113, %v1332, 0.0
    %v1350 = vadd.f32 %v1348, %v1349
    %v1351 = vsel %vm113, %v1333, 0.0
    %v1352 = vadd.f32 %v1350, %v1351
    %v1353 = vsel %vm113, %v1334, 0.0
    %v1354 = vadd.f32 %v1352, %v1353
    %v1355 = vsel %vm113, %v1335, 0.0
    %v1356 = vadd.f32 %v1354, %v1355
    %v1357 = vsel %vm113, %v1336, 0.0
    %v1358 = vadd.f32 %v1356, %v1357
    %v1359 = vsel %vm113, %v1337, 0.0
    %v1360 = vadd.f32 %v1358, %v1359
    %v1361 = vsel %vm113, %v1338, 0.0
    %v1362 = vadd.f32 %v1360, %v1361
    %v1363 = vsel %vm113, %v1339, 0.0
    %v1364 = vadd.f32 %v1362, %v1363
    %v1365 = vsel %vm113, %v1340, 0.0
    %v1366 = vadd.f32 %v1364, %v1365
    %v1367 = vsel %vm113, %v1341, 0.0
    %v1368 = vadd.f32 %v1366, %v1367
    %v1369 = vsel %vm113, %v1342, 0.0
    %v1370 = vadd.f32 %v1368, %v1369
    %v1371 = vsel %vm113, %v1343, 0.0
    %v1372 = vadd.f32 %v1370, %v1371
    %v1373 = vsel %vm113, %v1344, 0.0
    %v1374 = vadd.f32 %v1372, %v1373
    %v1375 = vsel %vm113, %v1345, 0.0
    %v1376 = vadd.f32 %v1374, %v1375
    %v1377 = vrot.slane %v1376, 4
    %v1378 = vadd.f32 %v1376, %v1377
    %v1379 = vrot.slane %v1378, 2
    %v1380 = vadd.f32 %v1378, %v1379
    %v1381 = vrot.slane %v1380, 1
    %v1382 = vadd.f32 %v1380, %v1381
    %v1383 = vadd.f32 %v38, %v1382
  $region38: #{tpu_custom_call.1} parent=0 // loop_footer
    %s37 = sadd.s32 1, %s33
  $region39: #{tpu_custom_call.1} parent=0 // loop_footer_branch
    %32 = sbr.rel target = $region35
  $region40: #{tpu_custom_call.1} parent=0 // loop_exit
    _
  %v1384 = vmul.f32 %v38, 0.001953125
  loop: start=0, step=1, limit=6
  $region41: #{tpu_custom_call.1} parent=0 // loop_pre_header
    _
  $region42: #{tpu_custom_call.1} parent=0 // loop_header
    %s1386 = sphi 0, %s1390
    %p1387 = scmp.ge.s32.totalorder %s1386, 6
    %v1391 = vphi 0.0, %v1593
  $region43: #{tpu_custom_call.1} parent=0 // loop_header_branch
    %1389 = sbr.rel (%p1387) target = $region47
  $region44: #{tpu_custom_call.1} parent=0 // loop_body
    %s1392 = smul.u32 %s1386, 128
    %s1393 = scalar_lea.vmem [#allocation2], %s1392
    %v1394 = vld [vmem:[%s1393] sm:$0xff]
    %v1395 = vld [vmem:[%s1393 + $0x8] sm:$0xff]
    %v1396 = vld [vmem:[%s1393 + $0x10] sm:$0xff]
    %v1397 = vld [vmem:[%s1393 + $0x18] sm:$0xff]
    %v1398 = vld [vmem:[%s1393 + $0x20] sm:$0xff]
    %v1399 = vld [vmem:[%s1393 + $0x28] sm:$0xff]
    %v1400 = vld [vmem:[%s1393 + $0x30] sm:$0xff]
    %v1401 = vld [vmem:[%s1393 + $0x38] sm:$0xff]
    %v1402 = vld [vmem:[%s1393 + $0x40] sm:$0xff]
    %v1403 = vld [vmem:[%s1393 + $0x48] sm:$0xff]
    %v1404 = vld [vmem:[%s1393 + $0x50] sm:$0xff]
    %v1405 = vld [vmem:[%s1393 + $0x58] sm:$0xff]
    %v1406 = vld [vmem:[%s1393 + $0x60] sm:$0xff]
    %v1407 = vld [vmem:[%s1393 + $0x68] sm:$0xff]
    %v1408 = vld [vmem:[%s1393 + $0x70] sm:$0xff]
    %v1409 = vld [vmem:[%s1393 + $0x78] sm:$0xff]
    %v1410 = vsub.f32 %v1394, %v1384
    %v1411 = vsub.f32 %v1395, %v1384
    %v1412 = vsub.f32 %v1396, %v1384
    %v1413 = vsub.f32 %v1397, %v1384
    %v1414 = vsub.f32 %v1398, %v1384
    %v1415 = vsub.f32 %v1399, %v1384
    %v1416 = vsub.f32 %v1400, %v1384
    %v1417 = vsub.f32 %v1401, %v1384
    %v1418 = vsub.f32 %v1402, %v1384
    %v1419 = vsub.f32 %v1403, %v1384
    %v1420 = vsub.f32 %v1404, %v1384
    %v1421 = vsub.f32 %v1405, %v1384
    %v1422 = vsub.f32 %v1406, %v1384
    %v1423 = vsub.f32 %v1407, %v1384
    %v1424 = vsub.f32 %v1408, %v1384
    %v1425 = vsub.f32 %v1409, %v1384
    %s1426 = scalar_lea.vmem %s1, %s1392
    %v1427 = vld [vmem:[%s1426] sm:$0xff]
    %v1428 = vld [vmem:[%s1426 + $0x8] sm:$0xff]
    %v1429 = vld [vmem:[%s1426 + $0x10] sm:$0xff]
    %v1430 = vld [vmem:[%s1426 + $0x18] sm:$0xff]
    %v1431 = vld [vmem:[%s1426 + $0x20] sm:$0xff]
    %v1432 = vld [vmem:[%s1426 + $0x28] sm:$0xff]
    %v1433 = vld [vmem:[%s1426 + $0x30] sm:$0xff]
    %v1434 = vld [vmem:[%s1426 + $0x38] sm:$0xff]
    %v1435 = vld [vmem:[%s1426 + $0x40] sm:$0xff]
    %v1436 = vld [vmem:[%s1426 + $0x48] sm:$0xff]
    %v1437 = vld [vmem:[%s1426 + $0x50] sm:$0xff]
    %v1438 = vld [vmem:[%s1426 + $0x58] sm:$0xff]
    %v1439 = vld [vmem:[%s1426 + $0x60] sm:$0xff]
    %v1440 = vld [vmem:[%s1426 + $0x68] sm:$0xff]
    %v1441 = vld [vmem:[%s1426 + $0x70] sm:$0xff]
    %v1442 = vld [vmem:[%s1426 + $0x78] sm:$0xff]
    %1444 = vset.pattern.permute.xlu0 0
    %1445 = vperm.xlu0 %1444, %v1427
    %v1446 = vpop.permute.xlu0 %1445
    %1449 = vset.pattern.permute.xlu0 0
    %1450 = vperm.xlu0 %1449, %v1428
    %v1451 = vpop.permute.xlu0 %1450
    %1454 = vset.pattern.permute.xlu0 0
    %1455 = vperm.xlu0 %1454, %v1429
    %v1456 = vpop.permute.xlu0 %1455
    %1459 = vset.pattern.permute.xlu0 0
    %1460 = vperm.xlu0 %1459, %v1430
    %v1461 = vpop.permute.xlu0 %1460
    %1464 = vset.pattern.permute.xlu0 0
    %1465 = vperm.xlu0 %1464, %v1431
    %v1466 = vpop.permute.xlu0 %1465
    %1469 = vset.pattern.permute.xlu0 0
    %1470 = vperm.xlu0 %1469, %v1432
    %v1471 = vpop.permute.xlu0 %1470
    %1474 = vset.pattern.permute.xlu0 0
    %1475 = vperm.xlu0 %1474, %v1433
    %v1476 = vpop.permute.xlu0 %1475
    %1479 = vset.pattern.permute.xlu0 0
    %1480 = vperm.xlu0 %1479, %v1434
    %v1481 = vpop.permute.xlu0 %1480
    %1484 = vset.pattern.permute.xlu0 0
    %1485 = vperm.xlu0 %1484, %v1435
    %v1486 = vpop.permute.xlu0 %1485
    %1489 = vset.pattern.permute.xlu0 0
    %1490 = vperm.xlu0 %1489, %v1436
    %v1491 = vpop.permute.xlu0 %1490
    %1494 = vset.pattern.permute.xlu0 0
    %1495 = vperm.xlu0 %1494, %v1437
    %v1496 = vpop.permute.xlu0 %1495
    %1499 = vset.pattern.permute.xlu0 0
    %1500 = vperm.xlu0 %1499, %v1438
    %v1501 = vpop.permute.xlu0 %1500
    %1504 = vset.pattern.permute.xlu0 0
    %1505 = vperm.xlu0 %1504, %v1439
    %v1506 = vpop.permute.xlu0 %1505
    %1509 = vset.pattern.permute.xlu0 0
    %1510 = vperm.xlu0 %1509, %v1440
    %v1511 = vpop.permute.xlu0 %1510
    %1514 = vset.pattern.permute.xlu0 0
    %1515 = vperm.xlu0 %1514, %v1441
    %v1516 = vpop.permute.xlu0 %1515
    %1519 = vset.pattern.permute.xlu0 0
    %1520 = vperm.xlu0 %1519, %v1442
    %v1521 = vpop.permute.xlu0 %1520
    %v1523 = vmul.f32 %v1410, %v1446
    %v1524 = vmul.f32 %v1411, %v1451
    %v1525 = vmul.f32 %v1412, %v1456
    %v1526 = vmul.f32 %v1413, %v1461
    %v1527 = vmul.f32 %v1414, %v1466
    %v1528 = vmul.f32 %v1415, %v1471
    %v1529 = vmul.f32 %v1416, %v1476
    %v1530 = vmul.f32 %v1417, %v1481
    %v1531 = vmul.f32 %v1418, %v1486
    %v1532 = vmul.f32 %v1419, %v1491
    %v1533 = vmul.f32 %v1420, %v1496
    %v1534 = vmul.f32 %v1421, %v1501
    %v1535 = vmul.f32 %v1422, %v1506
    %v1536 = vmul.f32 %v1423, %v1511
    %v1537 = vmul.f32 %v1424, %v1516
    %v1538 = vmul.f32 %v1425, %v1521
    %v1539 = vmul.f32 %v1523, %v1523
    %v1540 = vmul.f32 %v1524, %v1524
    %v1541 = vmul.f32 %v1525, %v1525
    %v1542 = vmul.f32 %v1526, %v1526
    %v1543 = vmul.f32 %v1527, %v1527
    %v1544 = vmul.f32 %v1528, %v1528
    %v1545 = vmul.f32 %v1529, %v1529
    %v1546 = vmul.f32 %v1530, %v1530
    %v1547 = vmul.f32 %v1531, %v1531
    %v1548 = vmul.f32 %v1532, %v1532
    %v1549 = vmul.f32 %v1533, %v1533
    %v1550 = vmul.f32 %v1534, %v1534
    %v1551 = vmul.f32 %v1535, %v1535
    %v1552 = vmul.f32 %v1536, %v1536
    %v1553 = vmul.f32 %v1537, %v1537
    %v1554 = vmul.f32 %v1538, %v1538
    %vm1555 = vcmask 261120
    %v1556 = vsel %vm1555, %v1539, 0.0
    %v1557 = vsel %vm1555, %v1540, 0.0
    %v1558 = vadd.f32 %v1556, %v1557
    %v1559 = vsel %vm1555, %v1541, 0.0
    %v1560 = vadd.f32 %v1558, %v1559
    %v1561 = vsel %vm1555, %v1542, 0.0
    %v1562 = vadd.f32 %v1560, %v1561
    %v1563 = vsel %vm1555, %v1543, 0.0
    %v1564 = vadd.f32 %v1562, %v1563
    %v1565 = vsel %vm1555, %v1544, 0.0
    %v1566 = vadd.f32 %v1564, %v1565
    %v1567 = vsel %vm1555, %v1545, 0.0
    %v1568 = vadd.f32 %v1566, %v1567
    %v1569 = vsel %vm1555, %v1546, 0.0
    %v1570 = vadd.f32 %v1568, %v1569
    %v1571 = vsel %vm1555, %v1547, 0.0
    %v1572 = vadd.f32 %v1570, %v1571
    %v1573 = vsel %vm1555, %v1548, 0.0
    %v1574 = vadd.f32 %v1572, %v1573
    %v1575 = vsel %vm1555, %v1549, 0.0
    %v1576 = vadd.f32 %v1574, %v1575
    %v1577 = vsel %vm1555, %v1550, 0.0
    %v1578 = vadd.f32 %v1576, %v1577
    %v1579 = vsel %vm1555, %v1551, 0.0
    %v1580 = vadd.f32 %v1578, %v1579
    %v1581 = vsel %vm1555, %v1552, 0.0
    %v1582 = vadd.f32 %v1580, %v1581
    %v1583 = vsel %vm1555, %v1553, 0.0
    %v1584 = vadd.f32 %v1582, %v1583
    %v1585 = vsel %vm1555, %v1554, 0.0
    %v1586 = vadd.f32 %v1584, %v1585
    %v1587 = vrot.slane %v1586, 4
    %v1588 = vadd.f32 %v1586, %v1587
    %v1589 = vrot.slane %v1588, 2
    %v1590 = vadd.f32 %v1588, %v1589
    %v1591 = vrot.slane %v1590, 1
    %v1592 = vadd.f32 %v1590, %v1591
    %v1593 = vadd.f32 %v1391, %v1592
  $region45: #{tpu_custom_call.1} parent=0 // loop_footer
    %s1390 = sadd.s32 1, %s1386
  $region46: #{tpu_custom_call.1} parent=0 // loop_footer_branch
    %1385 = sbr.rel target = $region42
  $region47: #{tpu_custom_call.1} parent=0 // loop_exit
    _
  %v1594 = vmul.f32 %v1391, 0.001953125
  %v1595 = vld [vmem:[%s4] sm:$0x1]
  %v1596 = vadd.f32 %v1594, 1e-05
  %v1597 = vrsqrt.pop %v1596
  %v1598 = vmul.f32 %v1597, %v1596
  %v1599 = vmul.f32 %v1598, %v1597
  %v1600 = vmul.f32 0.5, %v1599
  %v1601 = vsub.f32 1.5, %v1600
  %v1602 = vmul.f32 %v1597, %v1601
  %vm1603 = vweird.f32 %v1596
  %vm1604 = vweird.f32 %v1597
  %vm1605 = vmor %vm1603, %vm1604
  %v1606 = vsel %vm1605, %v1597, %v1602
  %v1607 = vmul.f32 %v1595, %v1606
  %v1608 = vld [vmem:[%s5] sm:$0x1]
  %v1609 = vmul.f32 %v1384, %v1607
  %v1610 = vsub.f32 %v1608, %v1609
  %vm1611 = vcmask 261120
  %1612 = vst.msk [vmem:[#allocation3] sm:$0xff] %vm1611, 0.0
  %1613 = vst.msk [vmem:[#allocation3 + $0x8] sm:$0xff] %vm1611, 0.0
  %1614 = vst.msk [vmem:[#allocation3 + $0x10] sm:$0xff] %vm1611, 0.0
  %1615 = vst.msk [vmem:[#allocation3 + $0x18] sm:$0xff] %vm1611, 0.0
  %1616 = vst.msk [vmem:[#allocation3 + $0x320] sm:$0xff] %vm1611, 0.0
  %1617 = vst.msk [vmem:[#allocation3 + $0x328] sm:$0xff] %vm1611, 0.0
  %1618 = vst.msk [vmem:[#allocation3 + $0x330] sm:$0xff] %vm1611, 0.0
  %1619 = vst.msk [vmem:[#allocation3 + $0x338] sm:$0xff] %vm1611, 0.0
  loop: start=0, step=1, limit=6
  $region48: #{tpu_custom_call.1} parent=0 // loop_pre_header
    _
  $region49: #{tpu_custom_call.1} parent=0 // loop_header
    %s1621 = sphi 0, %s1625
    %p1622 = scmp.ge.s32.totalorder %s1621, 6
  $region50: #{tpu_custom_call.1} parent=0 // loop_header_branch
    %1624 = sbr.rel (%p1622) target = $region54
  $region51: #{tpu_custom_call.1} parent=0 // loop_body
    %s1626 = smul.u32 %s1621, 128
    %s1627 = scalar_lea.vmem [#allocation2], %s1626
    %v1628 = vld [vmem:[%s1627] sm:$0xff]
    %v1629 = vld [vmem:[%s1627 + $0x8] sm:$0xff]
    %v1630 = vld [vmem:[%s1627 + $0x10] sm:$0xff]
    %v1631 = vld [vmem:[%s1627 + $0x18] sm:$0xff]
    %v1632 = vld [vmem:[%s1627 + $0x20] sm:$0xff]
    %v1633 = vld [vmem:[%s1627 + $0x28] sm:$0xff]
    %v1634 = vld [vmem:[%s1627 + $0x30] sm:$0xff]
    %v1635 = vld [vmem:[%s1627 + $0x38] sm:$0xff]
    %v1636 = vld [vmem:[%s1627 + $0x40] sm:$0xff]
    %v1637 = vld [vmem:[%s1627 + $0x48] sm:$0xff]
    %v1638 = vld [vmem:[%s1627 + $0x50] sm:$0xff]
    %v1639 = vld [vmem:[%s1627 + $0x58] sm:$0xff]
    %v1640 = vld [vmem:[%s1627 + $0x60] sm:$0xff]
    %v1641 = vld [vmem:[%s1627 + $0x68] sm:$0xff]
    %v1642 = vld [vmem:[%s1627 + $0x70] sm:$0xff]
    %v1643 = vld [vmem:[%s1627 + $0x78] sm:$0xff]
    %s1644 = scalar_lea.vmem %s1, %s1626
    %v1645 = vld [vmem:[%s1644] sm:$0xff]
    %v1646 = vld [vmem:[%s1644 + $0x8] sm:$0xff]
    %v1647 = vld [vmem:[%s1644 + $0x10] sm:$0xff]
    %v1648 = vld [vmem:[%s1644 + $0x18] sm:$0xff]
    %v1649 = vld [vmem:[%s1644 + $0x20] sm:$0xff]
    %v1650 = vld [vmem:[%s1644 + $0x28] sm:$0xff]
    %v1651 = vld [vmem:[%s1644 + $0x30] sm:$0xff]
    %v1652 = vld [vmem:[%s1644 + $0x38] sm:$0xff]
    %v1653 = vld [vmem:[%s1644 + $0x40] sm:$0xff]
    %v1654 = vld [vmem:[%s1644 + $0x48] sm:$0xff]
    %v1655 = vld [vmem:[%s1644 + $0x50] sm:$0xff]
    %v1656 = vld [vmem:[%s1644 + $0x58] sm:$0xff]
    %v1657 = vld [vmem:[%s1644 + $0x60] sm:$0xff]
    %v1658 = vld [vmem:[%s1644 + $0x68] sm:$0xff]
    %v1659 = vld [vmem:[%s1644 + $0x70] sm:$0xff]
    %v1660 = vld [vmem:[%s1644 + $0x78] sm:$0xff]
    %v1662 = vperm.slane %v1607, 0
    %v1664 = vmul.f32 %v1628, %v1662
    %v1665 = vmul.f32 %v1629, %v1662
    %v1666 = vmul.f32 %v1630, %v1662
    %v1667 = vmul.f32 %v1631, %v1662
    %v1668 = vmul.f32 %v1632, %v1662
    %v1669 = vmul.f32 %v1633, %v1662
    %v1670 = vmul.f32 %v1634, %v1662
    %v1671 = vmul.f32 %v1635, %v1662
    %v1672 = vmul.f32 %v1636, %v1662
    %v1673 = vmul.f32 %v1637, %v1662
    %v1674 = vmul.f32 %v1638, %v1662
    %v1675 = vmul.f32 %v1639, %v1662
    %v1676 = vmul.f32 %v1640, %v1662
    %v1677 = vmul.f32 %v1641, %v1662
    %v1678 = vmul.f32 %v1642, %v1662
    %v1679 = vmul.f32 %v1643, %v1662
    %v1681 = vperm.slane %v1610, 0
    %v1683 = vadd.f32 %v1664, %v1681
    %v1684 = vadd.f32 %v1665, %v1681
    %v1685 = vadd.f32 %v1666, %v1681
    %v1686 = vadd.f32 %v1667, %v1681
    %v1687 = vadd.f32 %v1668, %v1681
    %v1688 = vadd.f32 %v1669, %v1681
    %v1689 = vadd.f32 %v1670, %v1681
    %v1690 = vadd.f32 %v1671, %v1681
    %v1691 = vadd.f32 %v1672, %v1681
    %v1692 = vadd.f32 %v1673, %v1681
    %v1693 = vadd.f32 %v1674, %v1681
    %v1694 = vadd.f32 %v1675, %v1681
    %v1695 = vadd.f32 %v1676, %v1681
    %v1696 = vadd.f32 %v1677, %v1681
    %v1697 = vadd.f32 %v1678, %v1681
    %v1698 = vadd.f32 %v1679, %v1681
    %v1699 = vmax.f32 %v1683, 0.0
    %v1700 = vmax.f32 %v1684, 0.0
    %v1701 = vmax.f32 %v1685, 0.0
    %v1702 = vmax.f32 %v1686, 0.0
    %v1703 = vmax.f32 %v1687, 0.0
    %v1704 = vmax.f32 %v1688, 0.0
    %v1705 = vmax.f32 %v1689, 0.0
    %v1706 = vmax.f32 %v1690, 0.0
    %v1707 = vmax.f32 %v1691, 0.0
    %v1708 = vmax.f32 %v1692, 0.0
    %v1709 = vmax.f32 %v1693, 0.0
    %v1710 = vmax.f32 %v1694, 0.0
    %v1711 = vmax.f32 %v1695, 0.0
    %v1712 = vmax.f32 %v1696, 0.0
    %v1713 = vmax.f32 %v1697, 0.0
    %v1714 = vmax.f32 %v1698, 0.0
    %1716 = vset.pattern.permute.xlu0 0
    %1717 = vperm.xlu0 %1716, %v1645
    %v1718 = vpop.permute.xlu0 %1717
    %1721 = vset.pattern.permute.xlu0 0
    %1722 = vperm.xlu0 %1721, %v1646
    %v1723 = vpop.permute.xlu0 %1722
    %1726 = vset.pattern.permute.xlu0 0
    %1727 = vperm.xlu0 %1726, %v1647
    %v1728 = vpop.permute.xlu0 %1727
    %1731 = vset.pattern.permute.xlu0 0
    %1732 = vperm.xlu0 %1731, %v1648
    %v1733 = vpop.permute.xlu0 %1732
    %1736 = vset.pattern.permute.xlu0 0
    %1737 = vperm.xlu0 %1736, %v1649
    %v1738 = vpop.permute.xlu0 %1737
    %1741 = vset.pattern.permute.xlu0 0
    %1742 = vperm.xlu0 %1741, %v1650
    %v1743 = vpop.permute.xlu0 %1742
    %1746 = vset.pattern.permute.xlu0 0
    %1747 = vperm.xlu0 %1746, %v1651
    %v1748 = vpop.permute.xlu0 %1747
    %1751 = vset.pattern.permute.xlu0 0
    %1752 = vperm.xlu0 %1751, %v1652
    %v1753 = vpop.permute.xlu0 %1752
    %1756 = vset.pattern.permute.xlu0 0
    %1757 = vperm.xlu0 %1756, %v1653
    %v1758 = vpop.permute.xlu0 %1757
    %1761 = vset.pattern.permute.xlu0 0
    %1762 = vperm.xlu0 %1761, %v1654
    %v1763 = vpop.permute.xlu0 %1762
    %1766 = vset.pattern.permute.xlu0 0
    %1767 = vperm.xlu0 %1766, %v1655
    %v1768 = vpop.permute.xlu0 %1767
    %1771 = vset.pattern.permute.xlu0 0
    %1772 = vperm.xlu0 %1771, %v1656
    %v1773 = vpop.permute.xlu0 %1772
    %1776 = vset.pattern.permute.xlu0 0
    %1777 = vperm.xlu0 %1776, %v1657
    %v1778 = vpop.permute.xlu0 %1777
    %1781 = vset.pattern.permute.xlu0 0
    %1782 = vperm.xlu0 %1781, %v1658
    %v1783 = vpop.permute.xlu0 %1782
    %1786 = vset.pattern.permute.xlu0 0
    %1787 = vperm.xlu0 %1786, %v1659
    %v1788 = vpop.permute.xlu0 %1787
    %1791 = vset.pattern.permute.xlu0 0
    %1792 = vperm.xlu0 %1791, %v1660
    %v1793 = vpop.permute.xlu0 %1792
    %v1795 = vmul.f32 %v1699, %v1718
    %v1796 = vmul.f32 %v1700, %v1723
    %v1797 = vmul.f32 %v1701, %v1728
    %v1798 = vmul.f32 %v1702, %v1733
    %v1799 = vmul.f32 %v1703, %v1738
    %v1800 = vmul.f32 %v1704, %v1743
    %v1801 = vmul.f32 %v1705, %v1748
    %v1802 = vmul.f32 %v1706, %v1753
    %v1803 = vmul.f32 %v1707, %v1758
    %v1804 = vmul.f32 %v1708, %v1763
    %v1805 = vmul.f32 %v1709, %v1768
    %v1806 = vmul.f32 %v1710, %v1773
    %v1807 = vmul.f32 %v1711, %v1778
    %v1808 = vmul.f32 %v1712, %v1783
    %v1809 = vmul.f32 %v1713, %v1788
    %v1810 = vmul.f32 %v1714, %v1793
    %s1811 = sadd.s32 %s1626, 32
    %s1812 = scalar_lea.vmem [#allocation3], %s1811
    %1813 = vst.msk [vmem:[%s1812] sm:$0xff] %vm1611, %v1795
    %1814 = vst.msk [vmem:[%s1812 + $0x8] sm:$0xff] %vm1611, %v1796
    %1815 = vst.msk [vmem:[%s1812 + $0x10] sm:$0xff] %vm1611, %v1797
    %1816 = vst.msk [vmem:[%s1812 + $0x18] sm:$0xff] %vm1611, %v1798
    %1817 = vst.msk [vmem:[%s1812 + $0x20] sm:$0xff] %vm1611, %v1799
    %1818 = vst.msk [vmem:[%s1812 + $0x28] sm:$0xff] %vm1611, %v1800
    %1819 = vst.msk [vmem:[%s1812 + $0x30] sm:$0xff] %vm1611, %v1801
    %1820 = vst.msk [vmem:[%s1812 + $0x38] sm:$0xff] %vm1611, %v1802
    %1821 = vst.msk [vmem:[%s1812 + $0x40] sm:$0xff] %vm1611, %v1803
    %1822 = vst.msk [vmem:[%s1812 + $0x48] sm:$0xff] %vm1611, %v1804
    %1823 = vst.msk [vmem:[%s1812 + $0x50] sm:$0xff] %vm1611, %v1805
    %1824 = vst.msk [vmem:[%s1812 + $0x58] sm:$0xff] %vm1611, %v1806
    %1825 = vst.msk [vmem:[%s1812 + $0x60] sm:$0xff] %vm1611, %v1807
    %1826 = vst.msk [vmem:[%s1812 + $0x68] sm:$0xff] %vm1611, %v1808
    %1827 = vst.msk [vmem:[%s1812 + $0x70] sm:$0xff] %vm1611, %v1809
    %1828 = vst.msk [vmem:[%s1812 + $0x78] sm:$0xff] %vm1611, %v1810
  $region52: #{tpu_custom_call.1} parent=0 // loop_footer
    %s1625 = sadd.s32 1, %s1621
  $region53: #{tpu_custom_call.1} parent=0 // loop_footer_branch
    %1620 = sbr.rel target = $region49
  $region54: #{tpu_custom_call.1} parent=0 // loop_exit
    _
  %v1829 = vlaneseq
  %v1830 = vand.u32 %v1829, 127
  %vm1831 = vcmp.lt.s32.totalorder %v1830, 8
  loop: start=0, step=1, limit=6
  $region55: #{tpu_custom_call.1} parent=0 // loop_pre_header
    _
  $region56: #{tpu_custom_call.1} parent=0 // loop_header
    %s1833 = sphi 0, %s1837
    %p1834 = scmp.ge.s32.totalorder %s1833, 6
  $region57: #{tpu_custom_call.1} parent=0 // loop_header_branch
    %1836 = sbr.rel (%p1834) target = $region61
  $region58: #{tpu_custom_call.1} parent=0 // loop_body
    %s1838 = smul.u32 %s1833, 128
    %s1839 = sadd.s32 %s1838, 13
    %s1840 = scalar_lea.vmem [#allocation3], %s1839
    %v1841 = vld [vmem:[%s1840] sm:$0xff]
    %v1842 = vld [vmem:[%s1840 + $0x8] sm:$0xff]
    %v1843 = vld [vmem:[%s1840 + $0x10] sm:$0xff]
    %v1844 = vld [vmem:[%s1840 + $0x18] sm:$0xff]
    %v1845 = vld [vmem:[%s1840 + $0x20] sm:$0xff]
    %v1846 = vld [vmem:[%s1840 + $0x28] sm:$0xff]
    %v1847 = vld [vmem:[%s1840 + $0x30] sm:$0xff]
    %v1848 = vld [vmem:[%s1840 + $0x38] sm:$0xff]
    %v1849 = vld [vmem:[%s1840 + $0x40] sm:$0xff]
    %v1850 = vld [vmem:[%s1840 + $0x48] sm:$0xff]
    %v1851 = vld [vmem:[%s1840 + $0x50] sm:$0xff]
    %v1852 = vld [vmem:[%s1840 + $0x58] sm:$0xff]
    %v1853 = vld [vmem:[%s1840 + $0x60] sm:$0xff]
    %v1854 = vld [vmem:[%s1840 + $0x68] sm:$0xff]
    %v1855 = vld [vmem:[%s1840 + $0x70] sm:$0xff]
    %v1856 = vld [vmem:[%s1840 + $0x78] sm:$0xff]
    %v1857 = vpack.c.bf16 %v1842, %v1841
    %v1858 = vpack.c.bf16 %v1844, %v1843
    %v1859 = vpack.c.bf16 %v1846, %v1845
    %v1860 = vpack.c.bf16 %v1848, %v1847
    %v1861 = vpack.c.bf16 %v1850, %v1849
    %v1862 = vpack.c.bf16 %v1852, %v1851
    %v1863 = vpack.c.bf16 %v1854, %v1853
    %v1864 = vpack.c.bf16 %v1856, %v1855
    %v1865 = vld [vmem:[%s6] sm:$0xf]
    %v1866 = vld [vmem:[%s6 + $0x4] sm:$0xf]
    %v1867 = vld [vmem:[%s6 + $0x8] sm:$0xf]
    %v1868 = vld [vmem:[%s6 + $0xc] sm:$0xf]
    %s1869 = sadd.s32 %s1838, 14
    %s1870 = scalar_lea.vmem [#allocation3], %s1869
    %v1871 = vld [vmem:[%s1870] sm:$0xff]
    %v1872 = vld [vmem:[%s1870 + $0x8] sm:$0xff]
    %v1873 = vld [vmem:[%s1870 + $0x10] sm:$0xff]
    %v1874 = vld [vmem:[%s1870 + $0x18] sm:$0xff]
    %v1875 = vld [vmem:[%s1870 + $0x20] sm:$0xff]
    %v1876 = vld [vmem:[%s1870 + $0x28] sm:$0xff]
    %v1877 = vld [vmem:[%s1870 + $0x30] sm:$0xff]
    %v1878 = vld [vmem:[%s1870 + $0x38] sm:$0xff]
    %v1879 = vld [vmem:[%s1870 + $0x40] sm:$0xff]
    %v1880 = vld [vmem:[%s1870 + $0x48] sm:$0xff]
    %v1881 = vld [vmem:[%s1870 + $0x50] sm:$0xff]
    %v1882 = vld [vmem:[%s1870 + $0x58] sm:$0xff]
    %v1883 = vld [vmem:[%s1870 + $0x60] sm:$0xff]
    %v1884 = vld [vmem:[%s1870 + $0x68] sm:$0xff]
    %v1885 = vld [vmem:[%s1870 + $0x70] sm:$0xff]
    %v1886 = vld [vmem:[%s1870 + $0x78] sm:$0xff]
    %v1887 = vpack.c.bf16 %v1872, %v1871
    %v1888 = vpack.c.bf16 %v1874, %v1873
    %v1889 = vpack.c.bf16 %v1876, %v1875
    %v1890 = vpack.c.bf16 %v1878, %v1877
    %v1891 = vpack.c.bf16 %v1880, %v1879
    %v1892 = vpack.c.bf16 %v1882, %v1881
    %v1893 = vpack.c.bf16 %v1884, %v1883
    %v1894 = vpack.c.bf16 %v1886, %v1885
    %s1895 = scalar_lea.vmem %s6, 16
    %v1896 = vld [vmem:[%s1895] sm:$0xf]
    %v1897 = vld [vmem:[%s1895 + $0x4] sm:$0xf]
    %v1898 = vld [vmem:[%s1895 + $0x8] sm:$0xf]
    %v1899 = vld [vmem:[%s1895 + $0xc] sm:$0xf]
    %v1904 = vunpack.c.l.b16 %v1896
    %v1905 = vunpack.c.l.b16 %v1897
    %v1906 = vunpack.c.l.b16 %v1898
    %v1907 = vunpack.c.l.b16 %v1899
    %v1908 = vpack.c.b16 %v1905, %v1904
    %v1909 = vpack.c.b16 %v1907, %v1906
    %v1913 = vsel %vm1611, %v1887, 0
    %v1916 = vsel %vm1611, %v1888, 0
    %v1919 = vsel %vm1611, %v1889, 0
    %v1922 = vsel %vm1611, %v1890, 0
    %v1925 = vsel %vm1611, %v1891, 0
    %v1928 = vsel %vm1611, %v1892, 0
    %v1931 = vsel %vm1611, %v1893, 0
    %v1934 = vsel %vm1611, %v1894, 0
    %1936 = vmatpush.bf16.msra.mxu0 0
    %1937 = vmatpush.bf16.msra.mxu0 0
    %1938 = vmatpush.bf16.msra.mxu0 0
    %1939 = vmatpush.bf16.msra.mxu0 0
    %1940 = vmatpush.bf16.msra.mxu0 0
    %1941 = vmatpush.bf16.msra.mxu0 0
    %1942 = vmatpush.bf16.msra.mxu0 %v1909
    %1943 = vmatpush.bf16.msra.mxu0 %v1908
    %1944 = vmatmul.bf16.gmra.mxu0 %v1913
    %v1945 = vpop.f32.mrf.mxu0
    %v1946 = vadd.f32 0.0, %v1945
    %v1947 = vpop.f32.mrf.mxu0
    %v1948 = vadd.f32 0.0, %v1947
    %1949 = vmatmul.bf16.gmra.mxu0 %v1916
    %v1950 = vpop.f32.mrf.mxu0
    %v1951 = vadd.f32 0.0, %v1950
    %v1952 = vpop.f32.mrf.mxu0
    %v1953 = vadd.f32 0.0, %v1952
    %1954 = vmatmul.bf16.gmra.mxu0 %v1919
    %v1955 = vpop.f32.mrf.mxu0
    %v1956 = vadd.f32 0.0, %v1955
    %v1957 = vpop.f32.mrf.mxu0
    %v1958 = vadd.f32 0.0, %v1957
    %1959 = vmatmul.bf16.gmra.mxu0 %v1922
    %v1960 = vpop.f32.mrf.mxu0
    %v1961 = vadd.f32 0.0, %v1960
    %v1962 = vpop.f32.mrf.mxu0
    %v1963 = vadd.f32 0.0, %v1962
    %1964 = vmatmul.bf16.gmra.mxu0 %v1925
    %v1965 = vpop.f32.mrf.mxu0
    %v1966 = vadd.f32 0.0, %v1965
    %v1967 = vpop.f32.mrf.mxu0
    %v1968 = vadd.f32 0.0, %v1967
    %1969 = vmatmul.bf16.gmra.mxu0 %v1928
    %v1970 = vpop.f32.mrf.mxu0
    %v1971 = vadd.f32 0.0, %v1970
    %v1972 = vpop.f32.mrf.mxu0
    %v1973 = vadd.f32 0.0, %v1972
    %1974 = vmatmul.bf16.gmra.mxu0 %v1931
    %v1975 = vpop.f32.mrf.mxu0
    %v1976 = vadd.f32 0.0, %v1975
    %v1977 = vpop.f32.mrf.mxu0
    %v1978 = vadd.f32 0.0, %v1977
    %1979 = vmatmul.bf16.gmra.mxu0 %v1934
    %v1980 = vpop.f32.mrf.mxu0
    %v1981 = vadd.f32 0.0, %v1980
    %v1982 = vpop.f32.mrf.mxu0
    %v1983 = vadd.f32 0.0, %v1982
    %1984 = vdwg.mxu0
    %v1989 = vunpack.c.l.b16 %v1865
    %v1990 = vunpack.c.l.b16 %v1866
    %v1991 = vunpack.c.l.b16 %v1867
    %v1992 = vunpack.c.l.b16 %v1868
    %v1993 = vpack.c.b16 %v1990, %v1989
    %v1994 = vpack.c.b16 %v1992, %v1991
    %v1998 = vsel %vm1611, %v1857, 0
    %v2001 = vsel %vm1611, %v1858, 0
    %v2004 = vsel %vm1611, %v1859, 0
    %v2007 = vsel %vm1611, %v1860, 0
    %v2010 = vsel %vm1611, %v1861, 0
    %v2013 = vsel %vm1611, %v1862, 0
    %v2016 = vsel %vm1611, %v1863, 0
    %v2019 = vsel %vm1611, %v1864, 0
    %2021 = vmatpush.bf16.msra.mxu0 0
    %2022 = vmatpush.bf16.msra.mxu0 0
    %2023 = vmatpush.bf16.msra.mxu0 0
    %2024 = vmatpush.bf16.msra.mxu0 0
    %2025 = vmatpush.bf16.msra.mxu0 0
    %2026 = vmatpush.bf16.msra.mxu0 0
    %2027 = vmatpush.bf16.msra.mxu0 %v1994
    %2028 = vmatpush.bf16.msra.mxu0 %v1993
    %2029 = vmatmul.bf16.gmra.mxu0 %v1998
    %v2030 = vpop.f32.mrf.mxu0
    %v2031 = vadd.f32 %v1946, %v2030
    %v2032 = vpop.f32.mrf.mxu0
    %v2033 = vadd.f32 %v1948, %v2032
    %2034 = vmatmul.bf16.gmra.mxu0 %v2001
    %v2035 = vpop.f32.mrf.mxu0
    %v2036 = vadd.f32 %v1951, %v2035
    %v2037 = vpop.f32.mrf.mxu0
    %v2038 = vadd.f32 %v1953, %v2037
    %2039 = vmatmul.bf16.gmra.mxu0 %v2004
    %v2040 = vpop.f32.mrf.mxu0
    %v2041 = vadd.f32 %v1956, %v2040
    %v2042 = vpop.f32.mrf.mxu0
    %v2043 = vadd.f32 %v1958, %v2042
    %2044 = vmatmul.bf16.gmra.mxu0 %v2007
    %v2045 = vpop.f32.mrf.mxu0
    %v2046 = vadd.f32 %v1961, %v2045
    %v2047 = vpop.f32.mrf.mxu0
    %v2048 = vadd.f32 %v1963, %v2047
    %2049 = vmatmul.bf16.gmra.mxu0 %v2010
    %v2050 = vpop.f32.mrf.mxu0
    %v2051 = vadd.f32 %v1966, %v2050
    %v2052 = vpop.f32.mrf.mxu0
    %v2053 = vadd.f32 %v1968, %v2052
    %2054 = vmatmul.bf16.gmra.mxu0 %v2013
    %v2055 = vpop.f32.mrf.mxu0
    %v2056 = vadd.f32 %v1971, %v2055
    %v2057 = vpop.f32.mrf.mxu0
    %v2058 = vadd.f32 %v1973, %v2057
    %2059 = vmatmul.bf16.gmra.mxu0 %v2016
    %v2060 = vpop.f32.mrf.mxu0
    %v2061 = vadd.f32 %v1976, %v2060
    %v2062 = vpop.f32.mrf.mxu0
    %v2063 = vadd.f32 %v1978, %v2062
    %2064 = vmatmul.bf16.gmra.mxu0 %v2019
    %v2065 = vpop.f32.mrf.mxu0
    %v2066 = vadd.f32 %v1981, %v2065
    %v2067 = vpop.f32.mrf.mxu0
    %v2068 = vadd.f32 %v1983, %v2067
    %2069 = vdwg.mxu0
    %s2070 = sadd.s32 %s1838, 15
    %s2071 = scalar_lea.vmem [#allocation3], %s2070
    %v2072 = vld [vmem:[%s2071] sm:$0xff]
    %v2073 = vld [vmem:[%s2071 + $0x8] sm:$0xff]
    %v2074 = vld [vmem:[%s2071 + $0x10] sm:$0xff]
    %v2075 = vld [vmem:[%s2071 + $0x18] sm:$0xff]
    %v2076 = vld [vmem:[%s2071 + $0x20] sm:$0xff]
    %v2077 = vld [vmem:[%s2071 + $0x28] sm:$0xff]
    %v2078 = vld [vmem:[%s2071 + $0x30] sm:$0xff]
    %v2079 = vld [vmem:[%s2071 + $0x38] sm:$0xff]
    %v2080 = vld [vmem:[%s2071 + $0x40] sm:$0xff]
    %v2081 = vld [vmem:[%s2071 + $0x48] sm:$0xff]
    %v2082 = vld [vmem:[%s2071 + $0x50] sm:$0xff]
    %v2083 = vld [vmem:[%s2071 + $0x58] sm:$0xff]
    %v2084 = vld [vmem:[%s2071 + $0x60] sm:$0xff]
    %v2085 = vld [vmem:[%s2071 + $0x68] sm:$0xff]
    %v2086 = vld [vmem:[%s2071 + $0x70] sm:$0xff]
    %v2087 = vld [vmem:[%s2071 + $0x78] sm:$0xff]
    %v2088 = vpack.c.bf16 %v2073, %v2072
    %v2089 = vpack.c.bf16 %v2075, %v2074
    %v2090 = vpack.c.bf16 %v2077, %v2076
    %v2091 = vpack.c.bf16 %v2079, %v2078
    %v2092 = vpack.c.bf16 %v2081, %v2080
    %v2093 = vpack.c.bf16 %v2083, %v2082
    %v2094 = vpack.c.bf16 %v2085, %v2084
    %v2095 = vpack.c.bf16 %v2087, %v2086
    %s2096 = scalar_lea.vmem %s6, 32
    %v2097 = vld [vmem:[%s2096] sm:$0xf]
    %v2098 = vld [vmem:[%s2096 + $0x4] sm:$0xf]
    %v2099 = vld [vmem:[%s2096 + $0x8] sm:$0xf]
    %v2100 = vld [vmem:[%s2096 + $0xc] sm:$0xf]
    %v2105 = vunpack.c.l.b16 %v2097
    %v2106 = vunpack.c.l.b16 %v2098
    %v2107 = vunpack.c.l.b16 %v2099
    %v2108 = vunpack.c.l.b16 %v2100
    %v2109 = vpack.c.b16 %v2106, %v2105
    %v2110 = vpack.c.b16 %v2108, %v2107
    %v2114 = vsel %vm1611, %v2088, 0
    %v2117 = vsel %vm1611, %v2089, 0
    %v2120 = vsel %vm1611, %v2090, 0
    %v2123 = vsel %vm1611, %v2091, 0
    %v2126 = vsel %vm1611, %v2092, 0
    %v2129 = vsel %vm1611, %v2093, 0
    %v2132 = vsel %vm1611, %v2094, 0
    %v2135 = vsel %vm1611, %v2095, 0
    %2137 = vmatpush.bf16.msra.mxu0 0
    %2138 = vmatpush.bf16.msra.mxu0 0
    %2139 = vmatpush.bf16.msra.mxu0 0
    %2140 = vmatpush.bf16.msra.mxu0 0
    %2141 = vmatpush.bf16.msra.mxu0 0
    %2142 = vmatpush.bf16.msra.mxu0 0
    %2143 = vmatpush.bf16.msra.mxu0 %v2110
    %2144 = vmatpush.bf16.msra.mxu0 %v2109
    %2145 = vmatmul.bf16.gmra.mxu0 %v2114
    %v2146 = vpop.f32.mrf.mxu0
    %v2147 = vadd.f32 0.0, %v2146
    %v2148 = vpop.f32.mrf.mxu0
    %v2149 = vadd.f32 0.0, %v2148
    %2150 = vmatmul.bf16.gmra.mxu0 %v2117
    %v2151 = vpop.f32.mrf.mxu0
    %v2152 = vadd.f32 0.0, %v2151
    %v2153 = vpop.f32.mrf.mxu0
    %v2154 = vadd.f32 0.0, %v2153
    %2155 = vmatmul.bf16.gmra.mxu0 %v2120
    %v2156 = vpop.f32.mrf.mxu0
    %v2157 = vadd.f32 0.0, %v2156
    %v2158 = vpop.f32.mrf.mxu0
    %v2159 = vadd.f32 0.0, %v2158
    %2160 = vmatmul.bf16.gmra.mxu0 %v2123
    %v2161 = vpop.f32.mrf.mxu0
    %v2162 = vadd.f32 0.0, %v2161
    %v2163 = vpop.f32.mrf.mxu0
    %v2164 = vadd.f32 0.0, %v2163
    %2165 = vmatmul.bf16.gmra.mxu0 %v2126
    %v2166 = vpop.f32.mrf.mxu0
    %v2167 = vadd.f32 0.0, %v2166
    %v2168 = vpop.f32.mrf.mxu0
    %v2169 = vadd.f32 0.0, %v2168
    %2170 = vmatmul.bf16.gmra.mxu0 %v2129
    %v2171 = vpop.f32.mrf.mxu0
    %v2172 = vadd.f32 0.0, %v2171
    %v2173 = vpop.f32.mrf.mxu0
    %v2174 = vadd.f32 0.0, %v2173
    %2175 = vmatmul.bf16.gmra.mxu0 %v2132
    %v2176 = vpop.f32.mrf.mxu0
    %v2177 = vadd.f32 0.0, %v2176
    %v2178 = vpop.f32.mrf.mxu0
    %v2179 = vadd.f32 0.0, %v2178
    %2180 = vmatmul.bf16.gmra.mxu0 %v2135
    %v2181 = vpop.f32.mrf.mxu0
    %v2182 = vadd.f32 0.0, %v2181
    %v2183 = vpop.f32.mrf.mxu0
    %v2184 = vadd.f32 0.0, %v2183
    %2185 = vdwg.mxu0
    %v2186 = vadd.f32 %v2031, %v2147
    %v2187 = vadd.f32 %v2033, %v2149
    %v2188 = vadd.f32 %v2036, %v2152
    %v2189 = vadd.f32 %v2038, %v2154
    %v2190 = vadd.f32 %v2041, %v2157
    %v2191 = vadd.f32 %v2043, %v2159
    %v2192 = vadd.f32 %v2046, %v2162
    %v2193 = vadd.f32 %v2048, %v2164
    %v2194 = vadd.f32 %v2051, %v2167
    %v2195 = vadd.f32 %v2053, %v2169
    %v2196 = vadd.f32 %v2056, %v2172
    %v2197 = vadd.f32 %v2058, %v2174
    %v2198 = vadd.f32 %v2061, %v2177
    %v2199 = vadd.f32 %v2063, %v2179
    %v2200 = vadd.f32 %v2066, %v2182
    %v2201 = vadd.f32 %v2068, %v2184
    %s2202 = sadd.s32 %s1838, 31
    %s2203 = scalar_lea.vmem [#allocation3], %s2202
    %v2204 = vld [vmem:[%s2203] sm:$0xff]
    %v2205 = vld [vmem:[%s2203 + $0x8] sm:$0xff]
    %v2206 = vld [vmem:[%s2203 + $0x10] sm:$0xff]
    %v2207 = vld [vmem:[%s2203 + $0x18] sm:$0xff]
    %v2208 = vld [vmem:[%s2203 + $0x20] sm:$0xff]
    %v2209 = vld [vmem:[%s2203 + $0x28] sm:$0xff]
    %v2210 = vld [vmem:[%s2203 + $0x30] sm:$0xff]
    %v2211 = vld [vmem:[%s2203 + $0x38] sm:$0xff]
    %v2212 = vld [vmem:[%s2203 + $0x40] sm:$0xff]
    %v2213 = vld [vmem:[%s2203 + $0x48] sm:$0xff]
    %v2214 = vld [vmem:[%s2203 + $0x50] sm:$0xff]
    %v2215 = vld [vmem:[%s2203 + $0x58] sm:$0xff]
    %v2216 = vld [vmem:[%s2203 + $0x60] sm:$0xff]
    %v2217 = vld [vmem:[%s2203 + $0x68] sm:$0xff]
    %v2218 = vld [vmem:[%s2203 + $0x70] sm:$0xff]
    %v2219 = vld [vmem:[%s2203 + $0x78] sm:$0xff]
    %v2220 = vpack.c.bf16 %v2205, %v2204
    %v2221 = vpack.c.bf16 %v2207, %v2206
    %v2222 = vpack.c.bf16 %v2209, %v2208
    %v2223 = vpack.c.bf16 %v2211, %v2210
    %v2224 = vpack.c.bf16 %v2213, %v2212
    %v2225 = vpack.c.bf16 %v2215, %v2214
    %v2226 = vpack.c.bf16 %v2217, %v2216
    %v2227 = vpack.c.bf16 %v2219, %v2218
    %s2228 = scalar_lea.vmem %s6, 48
    %v2229 = vld [vmem:[%s2228] sm:$0xf]
    %v2230 = vld [vmem:[%s2228 + $0x4] sm:$0xf]
    %v2231 = vld [vmem:[%s2228 + $0x8] sm:$0xf]
    %v2232 = vld [vmem:[%s2228 + $0xc] sm:$0xf]
    %v2237 = vunpack.c.l.b16 %v2229
    %v2238 = vunpack.c.l.b16 %v2230
    %v2239 = vunpack.c.l.b16 %v2231
    %v2240 = vunpack.c.l.b16 %v2232
    %v2241 = vpack.c.b16 %v2238, %v2237
    %v2242 = vpack.c.b16 %v2240, %v2239
    %v2246 = vsel %vm1611, %v2220, 0
    %v2249 = vsel %vm1611, %v2221, 0
    %v2252 = vsel %vm1611, %v2222, 0
    %v2255 = vsel %vm1611, %v2223, 0
    %v2258 = vsel %vm1611, %v2224, 0
    %v2261 = vsel %vm1611, %v2225, 0
    %v2264 = vsel %vm1611, %v2226, 0
    %v2267 = vsel %vm1611, %v2227, 0
    %2269 = vmatpush.bf16.msra.mxu0 0
    %2270 = vmatpush.bf16.msra.mxu0 0
    %2271 = vmatpush.bf16.msra.mxu0 0
    %2272 = vmatpush.bf16.msra.mxu0 0
    %2273 = vmatpush.bf16.msra.mxu0 0
    %2274 = vmatpush.bf16.msra.mxu0 0
    %2275 = vmatpush.bf16.msra.mxu0 %v2242
    %2276 = vmatpush.bf16.msra.mxu0 %v2241
    %2277 = vmatmul.bf16.gmra.mxu0 %v2246
    %v2278 = vpop.f32.mrf.mxu0
    %v2279 = vadd.f32 0.0, %v2278
    %v2280 = vpop.f32.mrf.mxu0
    %v2281 = vadd.f32 0.0, %v2280
    %2282 = vmatmul.bf16.gmra.mxu0 %v2249
    %v2283 = vpop.f32.mrf.mxu0
    %v2284 = vadd.f32 0.0, %v2283
    %v2285 = vpop.f32.mrf.mxu0
    %v2286 = vadd.f32 0.0, %v2285
    %2287 = vmatmul.bf16.gmra.mxu0 %v2252
    %v2288 = vpop.f32.mrf.mxu0
    %v2289 = vadd.f32 0.0, %v2288
    %v2290 = vpop.f32.mrf.mxu0
    %v2291 = vadd.f32 0.0, %v2290
    %2292 = vmatmul.bf16.gmra.mxu0 %v2255
    %v2293 = vpop.f32.mrf.mxu0
    %v2294 = vadd.f32 0.0, %v2293
    %v2295 = vpop.f32.mrf.mxu0
    %v2296 = vadd.f32 0.0, %v2295
    %2297 = vmatmul.bf16.gmra.mxu0 %v2258
    %v2298 = vpop.f32.mrf.mxu0
    %v2299 = vadd.f32 0.0, %v2298
    %v2300 = vpop.f32.mrf.mxu0
    %v2301 = vadd.f32 0.0, %v2300
    %2302 = vmatmul.bf16.gmra.mxu0 %v2261
    %v2303 = vpop.f32.mrf.mxu0
    %v2304 = vadd.f32 0.0, %v2303
    %v2305 = vpop.f32.mrf.mxu0
    %v2306 = vadd.f32 0.0, %v2305
    %2307 = vmatmul.bf16.gmra.mxu0 %v2264
    %v2308 = vpop.f32.mrf.mxu0
    %v2309 = vadd.f32 0.0, %v2308
    %v2310 = vpop.f32.mrf.mxu0
    %v2311 = vadd.f32 0.0, %v2310
    %2312 = vmatmul.bf16.gmra.mxu0 %v2267
    %v2313 = vpop.f32.mrf.mxu0
    %v2314 = vadd.f32 0.0, %v2313
    %v2315 = vpop.f32.mrf.mxu0
    %v2316 = vadd.f32 0.0, %v2315
    %2317 = vdwg.mxu0
    %v2318 = vadd.f32 %v2186, %v2279
    %v2319 = vadd.f32 %v2187, %v2281
    %v2320 = vadd.f32 %v2188, %v2284
    %v2321 = vadd.f32 %v2189, %v2286
    %v2322 = vadd.f32 %v2190, %v2289
    %v2323 = vadd.f32 %v2191, %v2291
    %v2324 = vadd.f32 %v2192, %v2294
    %v2325 = vadd.f32 %v2193, %v2296
    %v2326 = vadd.f32 %v2194, %v2299
    %v2327 = vadd.f32 %v2195, %v2301
    %v2328 = vadd.f32 %v2196, %v2304
    %v2329 = vadd.f32 %v2197, %v2306
    %v2330 = vadd.f32 %v2198, %v2309
    %v2331 = vadd.f32 %v2199, %v2311
    %v2332 = vadd.f32 %v2200, %v2314
    %v2333 = vadd.f32 %v2201, %v2316
    %s2334 = sadd.s32 %s1838, 32
    %s2335 = scalar_lea.vmem [#allocation3], %s2334
    %v2336 = vld [vmem:[%s2335] sm:$0xff]
    %v2337 = vld [vmem:[%s2335 + $0x8] sm:$0xff]
    %v2338 = vld [vmem:[%s2335 + $0x10] sm:$0xff]
    %v2339 = vld [vmem:[%s2335 + $0x18] sm:$0xff]
    %v2340 = vld [vmem:[%s2335 + $0x20] sm:$0xff]
    %v2341 = vld [vmem:[%s2335 + $0x28] sm:$0xff]
    %v2342 = vld [vmem:[%s2335 + $0x30] sm:$0xff]
    %v2343 = vld [vmem:[%s2335 + $0x38] sm:$0xff]
    %v2344 = vld [vmem:[%s2335 + $0x40] sm:$0xff]
    %v2345 = vld [vmem:[%s2335 + $0x48] sm:$0xff]
    %v2346 = vld [vmem:[%s2335 + $0x50] sm:$0xff]
    %v2347 = vld [vmem:[%s2335 + $0x58] sm:$0xff]
    %v2348 = vld [vmem:[%s2335 + $0x60] sm:$0xff]
    %v2349 = vld [vmem:[%s2335 + $0x68] sm:$0xff]
    %v2350 = vld [vmem:[%s2335 + $0x70] sm:$0xff]
    %v2351 = vld [vmem:[%s2335 + $0x78] sm:$0xff]
    %v2352 = vpack.c.bf16 %v2337, %v2336
    %v2353 = vpack.c.bf16 %v2339, %v2338
    %v2354 = vpack.c.bf16 %v2341, %v2340
    %v2355 = vpack.c.bf16 %v2343, %v2342
    %v2356 = vpack.c.bf16 %v2345, %v2344
    %v2357 = vpack.c.bf16 %v2347, %v2346
    %v2358 = vpack.c.bf16 %v2349, %v2348
    %v2359 = vpack.c.bf16 %v2351, %v2350
    %s2360 = scalar_lea.vmem %s6, 64
    %v2361 = vld [vmem:[%s2360] sm:$0xf]
    %v2362 = vld [vmem:[%s2360 + $0x4] sm:$0xf]
    %v2363 = vld [vmem:[%s2360 + $0x8] sm:$0xf]
    %v2364 = vld [vmem:[%s2360 + $0xc] sm:$0xf]
    %v2369 = vunpack.c.l.b16 %v2361
    %v2370 = vunpack.c.l.b16 %v2362
    %v2371 = vunpack.c.l.b16 %v2363
    %v2372 = vunpack.c.l.b16 %v2364
    %v2373 = vpack.c.b16 %v2370, %v2369
    %v2374 = vpack.c.b16 %v2372, %v2371
    %v2378 = vsel %vm1611, %v2352, 0
    %v2381 = vsel %vm1611, %v2353, 0
    %v2384 = vsel %vm1611, %v2354, 0
    %v2387 = vsel %vm1611, %v2355, 0
    %v2390 = vsel %vm1611, %v2356, 0
    %v2393 = vsel %vm1611, %v2357, 0
    %v2396 = vsel %vm1611, %v2358, 0
    %v2399 = vsel %vm1611, %v2359, 0
    %2401 = vmatpush.bf16.msra.mxu0 0
    %2402 = vmatpush.bf16.msra.mxu0 0
    %2403 = vmatpush.bf16.msra.mxu0 0
    %2404 = vmatpush.bf16.msra.mxu0 0
    %2405 = vmatpush.bf16.msra.mxu0 0
    %2406 = vmatpush.bf16.msra.mxu0 0
    %2407 = vmatpush.bf16.msra.mxu0 %v2374
    %2408 = vmatpush.bf16.msra.mxu0 %v2373
    %2409 = vmatmul.bf16.gmra.mxu0 %v2378
    %v2410 = vpop.f32.mrf.mxu0
    %v2411 = vadd.f32 0.0, %v2410
    %v2412 = vpop.f32.mrf.mxu0
    %v2413 = vadd.f32 0.0, %v2412
    %2414 = vmatmul.bf16.gmra.mxu0 %v2381
    %v2415 = vpop.f32.mrf.mxu0
    %v2416 = vadd.f32 0.0, %v2415
    %v2417 = vpop.f32.mrf.mxu0
    %v2418 = vadd.f32 0.0, %v2417
    %2419 = vmatmul.bf16.gmra.mxu0 %v2384
    %v2420 = vpop.f32.mrf.mxu0
    %v2421 = vadd.f32 0.0, %v2420
    %v2422 = vpop.f32.mrf.mxu0
    %v2423 = vadd.f32 0.0, %v2422
    %2424 = vmatmul.bf16.gmra.mxu0 %v2387
    %v2425 = vpop.f32.mrf.mxu0
    %v2426 = vadd.f32 0.0, %v2425
    %v2427 = vpop.f32.mrf.mxu0
    %v2428 = vadd.f32 0.0, %v2427
    %2429 = vmatmul.bf16.gmra.mxu0 %v2390
    %v2430 = vpop.f32.mrf.mxu0
    %v2431 = vadd.f32 0.0, %v2430
    %v2432 = vpop.f32.mrf.mxu0
    %v2433 = vadd.f32 0.0, %v2432
    %2434 = vmatmul.bf16.gmra.mxu0 %v2393
    %v2435 = vpop.f32.mrf.mxu0
    %v2436 = vadd.f32 0.0, %v2435
    %v2437 = vpop.f32.mrf.mxu0
    %v2438 = vadd.f32 0.0, %v2437
    %2439 = vmatmul.bf16.gmra.mxu0 %v2396
    %v2440 = vpop.f32.mrf.mxu0
    %v2441 = vadd.f32 0.0, %v2440
    %v2442 = vpop.f32.mrf.mxu0
    %v2443 = vadd.f32 0.0, %v2442
    %2444 = vmatmul.bf16.gmra.mxu0 %v2399
    %v2445 = vpop.f32.mrf.mxu0
    %v2446 = vadd.f32 0.0, %v2445
    %v2447 = vpop.f32.mrf.mxu0
    %v2448 = vadd.f32 0.0, %v2447
    %2449 = vdwg.mxu0
    %v2450 = vadd.f32 %v2318, %v2411
    %v2451 = vadd.f32 %v2319, %v2413
    %v2452 = vadd.f32 %v2320, %v2416
    %v2453 = vadd.f32 %v2321, %v2418
    %v2454 = vadd.f32 %v2322, %v2421
    %v2455 = vadd.f32 %v2323, %v2423
    %v2456 = vadd.f32 %v2324, %v2426
    %v2457 = vadd.f32 %v2325, %v2428
    %v2458 = vadd.f32 %v2326, %v2431
    %v2459 = vadd.f32 %v2327, %v2433
    %v2460 = vadd.f32 %v2328, %v2436
    %v2461 = vadd.f32 %v2329, %v2438
    %v2462 = vadd.f32 %v2330, %v2441
    %v2463 = vadd.f32 %v2331, %v2443
    %v2464 = vadd.f32 %v2332, %v2446
    %v2465 = vadd.f32 %v2333, %v2448
    %s2466 = sadd.s32 %s1838, 33
    %s2467 = scalar_lea.vmem [#allocation3], %s2466
    %v2468 = vld [vmem:[%s2467] sm:$0xff]
    %v2469 = vld [vmem:[%s2467 + $0x8] sm:$0xff]
    %v2470 = vld [vmem:[%s2467 + $0x10] sm:$0xff]
    %v2471 = vld [vmem:[%s2467 + $0x18] sm:$0xff]
    %v2472 = vld [vmem:[%s2467 + $0x20] sm:$0xff]
    %v2473 = vld [vmem:[%s2467 + $0x28] sm:$0xff]
    %v2474 = vld [vmem:[%s2467 + $0x30] sm:$0xff]
    %v2475 = vld [vmem:[%s2467 + $0x38] sm:$0xff]
    %v2476 = vld [vmem:[%s2467 + $0x40] sm:$0xff]
    %v2477 = vld [vmem:[%s2467 + $0x48] sm:$0xff]
    %v2478 = vld [vmem:[%s2467 + $0x50] sm:$0xff]
    %v2479 = vld [vmem:[%s2467 + $0x58] sm:$0xff]
    %v2480 = vld [vmem:[%s2467 + $0x60] sm:$0xff]
    %v2481 = vld [vmem:[%s2467 + $0x68] sm:$0xff]
    %v2482 = vld [vmem:[%s2467 + $0x70] sm:$0xff]
    %v2483 = vld [vmem:[%s2467 + $0x78] sm:$0xff]
    %v2484 = vpack.c.bf16 %v2469, %v2468
    %v2485 = vpack.c.bf16 %v2471, %v2470
    %v2486 = vpack.c.bf16 %v2473, %v2472
    %v2487 = vpack.c.bf16 %v2475, %v2474
    %v2488 = vpack.c.bf16 %v2477, %v2476
    %v2489 = vpack.c.bf16 %v2479, %v2478
    %v2490 = vpack.c.bf16 %v2481, %v2480
    %v2491 = vpack.c.bf16 %v2483, %v2482
    %s2492 = scalar_lea.vmem %s6, 80
    %v2493 = vld [vmem:[%s2492] sm:$0xf]
    %v2494 = vld [vmem:[%s2492 + $0x4] sm:$0xf]
    %v2495 = vld [vmem:[%s2492 + $0x8] sm:$0xf]
    %v2496 = vld [vmem:[%s2492 + $0xc] sm:$0xf]
    %v2501 = vunpack.c.l.b16 %v2493
    %v2502 = vunpack.c.l.b16 %v2494
    %v2503 = vunpack.c.l.b16 %v2495
    %v2504 = vunpack.c.l.b16 %v2496
    %v2505 = vpack.c.b16 %v2502, %v2501
    %v2506 = vpack.c.b16 %v2504, %v2503
    %v2510 = vsel %vm1611, %v2484, 0
    %v2513 = vsel %vm1611, %v2485, 0
    %v2516 = vsel %vm1611, %v2486, 0
    %v2519 = vsel %vm1611, %v2487, 0
    %v2522 = vsel %vm1611, %v2488, 0
    %v2525 = vsel %vm1611, %v2489, 0
    %v2528 = vsel %vm1611, %v2490, 0
    %v2531 = vsel %vm1611, %v2491, 0
    %2533 = vmatpush.bf16.msra.mxu0 0
    %2534 = vmatpush.bf16.msra.mxu0 0
    %2535 = vmatpush.bf16.msra.mxu0 0
    %2536 = vmatpush.bf16.msra.mxu0 0
    %2537 = vmatpush.bf16.msra.mxu0 0
    %2538 = vmatpush.bf16.msra.mxu0 0
    %2539 = vmatpush.bf16.msra.mxu0 %v2506
    %2540 = vmatpush.bf16.msra.mxu0 %v2505
    %2541 = vmatmul.bf16.gmra.mxu0 %v2510
    %v2542 = vpop.f32.mrf.mxu0
    %v2543 = vadd.f32 0.0, %v2542
    %v2544 = vpop.f32.mrf.mxu0
    %v2545 = vadd.f32 0.0, %v2544
    %2546 = vmatmul.bf16.gmra.mxu0 %v2513
    %v2547 = vpop.f32.mrf.mxu0
    %v2548 = vadd.f32 0.0, %v2547
    %v2549 = vpop.f32.mrf.mxu0
    %v2550 = vadd.f32 0.0, %v2549
    %2551 = vmatmul.bf16.gmra.mxu0 %v2516
    %v2552 = vpop.f32.mrf.mxu0
    %v2553 = vadd.f32 0.0, %v2552
    %v2554 = vpop.f32.mrf.mxu0
    %v2555 = vadd.f32 0.0, %v2554
    %2556 = vmatmul.bf16.gmra.mxu0 %v2519
    %v2557 = vpop.f32.mrf.mxu0
    %v2558 = vadd.f32 0.0, %v2557
    %v2559 = vpop.f32.mrf.mxu0
    %v2560 = vadd.f32 0.0, %v2559
    %2561 = vmatmul.bf16.gmra.mxu0 %v2522
    %v2562 = vpop.f32.mrf.mxu0
    %v2563 = vadd.f32 0.0, %v2562
    %v2564 = vpop.f32.mrf.mxu0
    %v2565 = vadd.f32 0.0, %v2564
    %2566 = vmatmul.bf16.gmra.mxu0 %v2525
    %v2567 = vpop.f32.mrf.mxu0
    %v2568 = vadd.f32 0.0, %v2567
    %v2569 = vpop.f32.mrf.mxu0
    %v2570 = vadd.f32 0.0, %v2569
    %2571 = vmatmul.bf16.gmra.mxu0 %v2528
    %v2572 = vpop.f32.mrf.mxu0
    %v2573 = vadd.f32 0.0, %v2572
    %v2574 = vpop.f32.mrf.mxu0
    %v2575 = vadd.f32 0.0, %v2574
    %2576 = vmatmul.bf16.gmra.mxu0 %v2531
    %v2577 = vpop.f32.mrf.mxu0
    %v2578 = vadd.f32 0.0, %v2577
    %v2579 = vpop.f32.mrf.mxu0
    %v2580 = vadd.f32 0.0, %v2579
    %2581 = vdwg.mxu0
    %v2582 = vadd.f32 %v2450, %v2543
    %v2583 = vadd.f32 %v2451, %v2545
    %v2584 = vadd.f32 %v2452, %v2548
    %v2585 = vadd.f32 %v2453, %v2550
    %v2586 = vadd.f32 %v2454, %v2553
    %v2587 = vadd.f32 %v2455, %v2555
    %v2588 = vadd.f32 %v2456, %v2558
    %v2589 = vadd.f32 %v2457, %v2560
    %v2590 = vadd.f32 %v2458, %v2563
    %v2591 = vadd.f32 %v2459, %v2565
    %v2592 = vadd.f32 %v2460, %v2568
    %v2593 = vadd.f32 %v2461, %v2570
    %v2594 = vadd.f32 %v2462, %v2573
    %v2595 = vadd.f32 %v2463, %v2575
    %v2596 = vadd.f32 %v2464, %v2578
    %v2597 = vadd.f32 %v2465, %v2580
    %s2598 = sadd.s32 %s1838, 49
    %s2599 = scalar_lea.vmem [#allocation3], %s2598
    %v2600 = vld [vmem:[%s2599] sm:$0xff]
    %v2601 = vld [vmem:[%s2599 + $0x8] sm:$0xff]
    %v2602 = vld [vmem:[%s2599 + $0x10] sm:$0xff]
    %v2603 = vld [vmem:[%s2599 + $0x18] sm:$0xff]
    %v2604 = vld [vmem:[%s2599 + $0x20] sm:$0xff]
    %v2605 = vld [vmem:[%s2599 + $0x28] sm:$0xff]
    %v2606 = vld [vmem:[%s2599 + $0x30] sm:$0xff]
    %v2607 = vld [vmem:[%s2599 + $0x38] sm:$0xff]
    %v2608 = vld [vmem:[%s2599 + $0x40] sm:$0xff]
    %v2609 = vld [vmem:[%s2599 + $0x48] sm:$0xff]
    %v2610 = vld [vmem:[%s2599 + $0x50] sm:$0xff]
    %v2611 = vld [vmem:[%s2599 + $0x58] sm:$0xff]
    %v2612 = vld [vmem:[%s2599 + $0x60] sm:$0xff]
    %v2613 = vld [vmem:[%s2599 + $0x68] sm:$0xff]
    %v2614 = vld [vmem:[%s2599 + $0x70] sm:$0xff]
    %v2615 = vld [vmem:[%s2599 + $0x78] sm:$0xff]
    %v2616 = vpack.c.bf16 %v2601, %v2600
    %v2617 = vpack.c.bf16 %v2603, %v2602
    %v2618 = vpack.c.bf16 %v2605, %v2604
    %v2619 = vpack.c.bf16 %v2607, %v2606
    %v2620 = vpack.c.bf16 %v2609, %v2608
    %v2621 = vpack.c.bf16 %v2611, %v2610
    %v2622 = vpack.c.bf16 %v2613, %v2612
    %v2623 = vpack.c.bf16 %v2615, %v2614
    %s2624 = scalar_lea.vmem %s6, 96
    %v2625 = vld [vmem:[%s2624] sm:$0xf]
    %v2626 = vld [vmem:[%s2624 + $0x4] sm:$0xf]
    %v2627 = vld [vmem:[%s2624 + $0x8] sm:$0xf]
    %v2628 = vld [vmem:[%s2624 + $0xc] sm:$0xf]
    %v2633 = vunpack.c.l.b16 %v2625
    %v2634 = vunpack.c.l.b16 %v2626
    %v2635 = vunpack.c.l.b16 %v2627
    %v2636 = vunpack.c.l.b16 %v2628
    %v2637 = vpack.c.b16 %v2634, %v2633
    %v2638 = vpack.c.b16 %v2636, %v2635
    %v2642 = vsel %vm1611, %v2616, 0
    %v2645 = vsel %vm1611, %v2617, 0
    %v2648 = vsel %vm1611, %v2618, 0
    %v2651 = vsel %vm1611, %v2619, 0
    %v2654 = vsel %vm1611, %v2620, 0
    %v2657 = vsel %vm1611, %v2621, 0
    %v2660 = vsel %vm1611, %v2622, 0
    %v2663 = vsel %vm1611, %v2623, 0
    %2665 = vmatpush.bf16.msra.mxu0 0
    %2666 = vmatpush.bf16.msra.mxu0 0
    %2667 = vmatpush.bf16.msra.mxu0 0
    %2668 = vmatpush.bf16.msra.mxu0 0
    %2669 = vmatpush.bf16.msra.mxu0 0
    %2670 = vmatpush.bf16.msra.mxu0 0
    %2671 = vmatpush.bf16.msra.mxu0 %v2638
    %2672 = vmatpush.bf16.msra.mxu0 %v2637
    %2673 = vmatmul.bf16.gmra.mxu0 %v2642
    %v2674 = vpop.f32.mrf.mxu0
    %v2675 = vadd.f32 0.0, %v2674
    %v2676 = vpop.f32.mrf.mxu0
    %v2677 = vadd.f32 0.0, %v2676
    %2678 = vmatmul.bf16.gmra.mxu0 %v2645
    %v2679 = vpop.f32.mrf.mxu0
    %v2680 = vadd.f32 0.0, %v2679
    %v2681 = vpop.f32.mrf.mxu0
    %v2682 = vadd.f32 0.0, %v2681
    %2683 = vmatmul.bf16.gmra.mxu0 %v2648
    %v2684 = vpop.f32.mrf.mxu0
    %v2685 = vadd.f32 0.0, %v2684
    %v2686 = vpop.f32.mrf.mxu0
    %v2687 = vadd.f32 0.0, %v2686
    %2688 = vmatmul.bf16.gmra.mxu0 %v2651
    %v2689 = vpop.f32.mrf.mxu0
    %v2690 = vadd.f32 0.0, %v2689
    %v2691 = vpop.f32.mrf.mxu0
    %v2692 = vadd.f32 0.0, %v2691
    %2693 = vmatmul.bf16.gmra.mxu0 %v2654
    %v2694 = vpop.f32.mrf.mxu0
    %v2695 = vadd.f32 0.0, %v2694
    %v2696 = vpop.f32.mrf.mxu0
    %v2697 = vadd.f32 0.0, %v2696
    %2698 = vmatmul.bf16.gmra.mxu0 %v2657
    %v2699 = vpop.f32.mrf.mxu0
    %v2700 = vadd.f32 0.0, %v2699
    %v2701 = vpop.f32.mrf.mxu0
    %v2702 = vadd.f32 0.0, %v2701
    %2703 = vmatmul.bf16.gmra.mxu0 %v2660
    %v2704 = vpop.f32.mrf.mxu0
    %v2705 = vadd.f32 0.0, %v2704
    %v2706 = vpop.f32.mrf.mxu0
    %v2707 = vadd.f32 0.0, %v2706
    %2708 = vmatmul.bf16.gmra.mxu0 %v2663
    %v2709 = vpop.f32.mrf.mxu0
    %v2710 = vadd.f32 0.0, %v2709
    %v2711 = vpop.f32.mrf.mxu0
    %v2712 = vadd.f32 0.0, %v2711
    %2713 = vdwg.mxu0
    %v2714 = vadd.f32 %v2582, %v2675
    %v2715 = vadd.f32 %v2583, %v2677
    %v2716 = vadd.f32 %v2584, %v2680
    %v2717 = vadd.f32 %v2585, %v2682
    %v2718 = vadd.f32 %v2586, %v2685
    %v2719 = vadd.f32 %v2587, %v2687
    %v2720 = vadd.f32 %v2588, %v2690
    %v2721 = vadd.f32 %v2589, %v2692
    %v2722 = vadd.f32 %v2590, %v2695
    %v2723 = vadd.f32 %v2591, %v2697
    %v2724 = vadd.f32 %v2592, %v2700
    %v2725 = vadd.f32 %v2593, %v2702
    %v2726 = vadd.f32 %v2594, %v2705
    %v2727 = vadd.f32 %v2595, %v2707
    %v2728 = vadd.f32 %v2596, %v2710
    %v2729 = vadd.f32 %v2597, %v2712
    %s2730 = sadd.s32 %s1838, 50
    %s2731 = scalar_lea.vmem [#allocation3], %s2730
    %v2732 = vld [vmem:[%s2731] sm:$0xff]
    %v2733 = vld [vmem:[%s2731 + $0x8] sm:$0xff]
    %v2734 = vld [vmem:[%s2731 + $0x10] sm:$0xff]
    %v2735 = vld [vmem:[%s2731 + $0x18] sm:$0xff]
    %v2736 = vld [vmem:[%s2731 + $0x20] sm:$0xff]
    %v2737 = vld [vmem:[%s2731 + $0x28] sm:$0xff]
    %v2738 = vld [vmem:[%s2731 + $0x30] sm:$0xff]
    %v2739 = vld [vmem:[%s2731 + $0x38] sm:$0xff]
    %v2740 = vld [vmem:[%s2731 + $0x40] sm:$0xff]
    %v2741 = vld [vmem:[%s2731 + $0x48] sm:$0xff]
    %v2742 = vld [vmem:[%s2731 + $0x50] sm:$0xff]
    %v2743 = vld [vmem:[%s2731 + $0x58] sm:$0xff]
    %v2744 = vld [vmem:[%s2731 + $0x60] sm:$0xff]
    %v2745 = vld [vmem:[%s2731 + $0x68] sm:$0xff]
    %v2746 = vld [vmem:[%s2731 + $0x70] sm:$0xff]
    %v2747 = vld [vmem:[%s2731 + $0x78] sm:$0xff]
    %v2748 = vpack.c.bf16 %v2733, %v2732
    %v2749 = vpack.c.bf16 %v2735, %v2734
    %v2750 = vpack.c.bf16 %v2737, %v2736
    %v2751 = vpack.c.bf16 %v2739, %v2738
    %v2752 = vpack.c.bf16 %v2741, %v2740
    %v2753 = vpack.c.bf16 %v2743, %v2742
    %v2754 = vpack.c.bf16 %v2745, %v2744
    %v2755 = vpack.c.bf16 %v2747, %v2746
    %s2756 = scalar_lea.vmem %s6, 112
    %v2757 = vld [vmem:[%s2756] sm:$0xf]
    %v2758 = vld [vmem:[%s2756 + $0x4] sm:$0xf]
    %v2759 = vld [vmem:[%s2756 + $0x8] sm:$0xf]
    %v2760 = vld [vmem:[%s2756 + $0xc] sm:$0xf]
    %v2765 = vunpack.c.l.b16 %v2757
    %v2766 = vunpack.c.l.b16 %v2758
    %v2767 = vunpack.c.l.b16 %v2759
    %v2768 = vunpack.c.l.b16 %v2760
    %v2769 = vpack.c.b16 %v2766, %v2765
    %v2770 = vpack.c.b16 %v2768, %v2767
    %v2774 = vsel %vm1611, %v2748, 0
    %v2777 = vsel %vm1611, %v2749, 0
    %v2780 = vsel %vm1611, %v2750, 0
    %v2783 = vsel %vm1611, %v2751, 0
    %v2786 = vsel %vm1611, %v2752, 0
    %v2789 = vsel %vm1611, %v2753, 0
    %v2792 = vsel %vm1611, %v2754, 0
    %v2795 = vsel %vm1611, %v2755, 0
    %2797 = vmatpush.bf16.msra.mxu0 0
    %2798 = vmatpush.bf16.msra.mxu0 0
    %2799 = vmatpush.bf16.msra.mxu0 0
    %2800 = vmatpush.bf16.msra.mxu0 0
    %2801 = vmatpush.bf16.msra.mxu0 0
    %2802 = vmatpush.bf16.msra.mxu0 0
    %2803 = vmatpush.bf16.msra.mxu0 %v2770
    %2804 = vmatpush.bf16.msra.mxu0 %v2769
    %2805 = vmatmul.bf16.gmra.mxu0 %v2774
    %v2806 = vpop.f32.mrf.mxu0
    %v2807 = vadd.f32 0.0, %v2806
    %v2808 = vpop.f32.mrf.mxu0
    %v2809 = vadd.f32 0.0, %v2808
    %2810 = vmatmul.bf16.gmra.mxu0 %v2777
    %v2811 = vpop.f32.mrf.mxu0
    %v2812 = vadd.f32 0.0, %v2811
    %v2813 = vpop.f32.mrf.mxu0
    %v2814 = vadd.f32 0.0, %v2813
    %2815 = vmatmul.bf16.gmra.mxu0 %v2780
    %v2816 = vpop.f32.mrf.mxu0
    %v2817 = vadd.f32 0.0, %v2816
    %v2818 = vpop.f32.mrf.mxu0
    %v2819 = vadd.f32 0.0, %v2818
    %2820 = vmatmul.bf16.gmra.mxu0 %v2783
    %v2821 = vpop.f32.mrf.mxu0
    %v2822 = vadd.f32 0.0, %v2821
    %v2823 = vpop.f32.mrf.mxu0
    %v2824 = vadd.f32 0.0, %v2823
    %2825 = vmatmul.bf16.gmra.mxu0 %v2786
    %v2826 = vpop.f32.mrf.mxu0
    %v2827 = vadd.f32 0.0, %v2826
    %v2828 = vpop.f32.mrf.mxu0
    %v2829 = vadd.f32 0.0, %v2828
    %2830 = vmatmul.bf16.gmra.mxu0 %v2789
    %v2831 = vpop.f32.mrf.mxu0
    %v2832 = vadd.f32 0.0, %v2831
    %v2833 = vpop.f32.mrf.mxu0
    %v2834 = vadd.f32 0.0, %v2833
    %2835 = vmatmul.bf16.gmra.mxu0 %v2792
    %v2836 = vpop.f32.mrf.mxu0
    %v2837 = vadd.f32 0.0, %v2836
    %v2838 = vpop.f32.mrf.mxu0
    %v2839 = vadd.f32 0.0, %v2838
    %2840 = vmatmul.bf16.gmra.mxu0 %v2795
    %v2841 = vpop.f32.mrf.mxu0
    %v2842 = vadd.f32 0.0, %v2841
    %v2843 = vpop.f32.mrf.mxu0
    %v2844 = vadd.f32 0.0, %v2843
    %2845 = vdwg.mxu0
    %v2846 = vadd.f32 %v2714, %v2807
    %v2847 = vadd.f32 %v2715, %v2809
    %v2848 = vadd.f32 %v2716, %v2812
    %v2849 = vadd.f32 %v2717, %v2814
    %v2850 = vadd.f32 %v2718, %v2817
    %v2851 = vadd.f32 %v2719, %v2819
    %v2852 = vadd.f32 %v2720, %v2822
    %v2853 = vadd.f32 %v2721, %v2824
    %v2854 = vadd.f32 %v2722, %v2827
    %v2855 = vadd.f32 %v2723, %v2829
    %v2856 = vadd.f32 %v2724, %v2832
    %v2857 = vadd.f32 %v2725, %v2834
    %v2858 = vadd.f32 %v2726, %v2837
    %v2859 = vadd.f32 %v2727, %v2839
    %v2860 = vadd.f32 %v2728, %v2842
    %v2861 = vadd.f32 %v2729, %v2844
    %s2862 = sadd.s32 %s1838, 51
    %s2863 = scalar_lea.vmem [#allocation3], %s2862
    %v2864 = vld [vmem:[%s2863] sm:$0xff]
    %v2865 = vld [vmem:[%s2863 + $0x8] sm:$0xff]
    %v2866 = vld [vmem:[%s2863 + $0x10] sm:$0xff]
    %v2867 = vld [vmem:[%s2863 + $0x18] sm:$0xff]
    %v2868 = vld [vmem:[%s2863 + $0x20] sm:$0xff]
    %v2869 = vld [vmem:[%s2863 + $0x28] sm:$0xff]
    %v2870 = vld [vmem:[%s2863 + $0x30] sm:$0xff]
    %v2871 = vld [vmem:[%s2863 + $0x38] sm:$0xff]
    %v2872 = vld [vmem:[%s2863 + $0x40] sm:$0xff]
    %v2873 = vld [vmem:[%s2863 + $0x48] sm:$0xff]
    %v2874 = vld [vmem:[%s2863 + $0x50] sm:$0xff]
    %v2875 = vld [vmem:[%s2863 + $0x58] sm:$0xff]
    %v2876 = vld [vmem:[%s2863 + $0x60] sm:$0xff]
    %v2877 = vld [vmem:[%s2863 + $0x68] sm:$0xff]
    %v2878 = vld [vmem:[%s2863 + $0x70] sm:$0xff]
    %v2879 = vld [vmem:[%s2863 + $0x78] sm:$0xff]
    %v2880 = vpack.c.bf16 %v2865, %v2864
    %v2881 = vpack.c.bf16 %v2867, %v2866
    %v2882 = vpack.c.bf16 %v2869, %v2868
    %v2883 = vpack.c.bf16 %v2871, %v2870
    %v2884 = vpack.c.bf16 %v2873, %v2872
    %v2885 = vpack.c.bf16 %v2875, %v2874
    %v2886 = vpack.c.bf16 %v2877, %v2876
    %v2887 = vpack.c.bf16 %v2879, %v2878
    %s2888 = scalar_lea.vmem %s6, 128
    %v2889 = vld [vmem:[%s2888] sm:$0xf]
    %v2890 = vld [vmem:[%s2888 + $0x4] sm:$0xf]
    %v2891 = vld [vmem:[%s2888 + $0x8] sm:$0xf]
    %v2892 = vld [vmem:[%s2888 + $0xc] sm:$0xf]
    %v2897 = vunpack.c.l.b16 %v2889
    %v2898 = vunpack.c.l.b16 %v2890
    %v2899 = vunpack.c.l.b16 %v2891
    %v2900 = vunpack.c.l.b16 %v2892
    %v2901 = vpack.c.b16 %v2898, %v2897
    %v2902 = vpack.c.b16 %v2900, %v2899
    %v2906 = vsel %vm1611, %v2880, 0
    %v2909 = vsel %vm1611, %v2881, 0
    %v2912 = vsel %vm1611, %v2882, 0
    %v2915 = vsel %vm1611, %v2883, 0
    %v2918 = vsel %vm1611, %v2884, 0
    %v2921 = vsel %vm1611, %v2885, 0
    %v2924 = vsel %vm1611, %v2886, 0
    %v2927 = vsel %vm1611, %v2887, 0
    %2929 = vmatpush.bf16.msra.mxu0 0
    %2930 = vmatpush.bf16.msra.mxu0 0
    %2931 = vmatpush.bf16.msra.mxu0 0
    %2932 = vmatpush.bf16.msra.mxu0 0
    %2933 = vmatpush.bf16.msra.mxu0 0
    %2934 = vmatpush.bf16.msra.mxu0 0
    %2935 = vmatpush.bf16.msra.mxu0 %v2902
    %2936 = vmatpush.bf16.msra.mxu0 %v2901
    %2937 = vmatmul.bf16.gmra.mxu0 %v2906
    %v2938 = vpop.f32.mrf.mxu0
    %v2939 = vadd.f32 0.0, %v2938
    %v2940 = vpop.f32.mrf.mxu0
    %v2941 = vadd.f32 0.0, %v2940
    %2942 = vmatmul.bf16.gmra.mxu0 %v2909
    %v2943 = vpop.f32.mrf.mxu0
    %v2944 = vadd.f32 0.0, %v2943
    %v2945 = vpop.f32.mrf.mxu0
    %v2946 = vadd.f32 0.0, %v2945
    %2947 = vmatmul.bf16.gmra.mxu0 %v2912
    %v2948 = vpop.f32.mrf.mxu0
    %v2949 = vadd.f32 0.0, %v2948
    %v2950 = vpop.f32.mrf.mxu0
    %v2951 = vadd.f32 0.0, %v2950
    %2952 = vmatmul.bf16.gmra.mxu0 %v2915
    %v2953 = vpop.f32.mrf.mxu0
    %v2954 = vadd.f32 0.0, %v2953
    %v2955 = vpop.f32.mrf.mxu0
    %v2956 = vadd.f32 0.0, %v2955
    %2957 = vmatmul.bf16.gmra.mxu0 %v2918
    %v2958 = vpop.f32.mrf.mxu0
    %v2959 = vadd.f32 0.0, %v2958
    %v2960 = vpop.f32.mrf.mxu0
    %v2961 = vadd.f32 0.0, %v2960
    %2962 = vmatmul.bf16.gmra.mxu0 %v2921
    %v2963 = vpop.f32.mrf.mxu0
    %v2964 = vadd.f32 0.0, %v2963
    %v2965 = vpop.f32.mrf.mxu0
    %v2966 = vadd.f32 0.0, %v2965
    %2967 = vmatmul.bf16.gmra.mxu0 %v2924
    %v2968 = vpop.f32.mrf.mxu0
    %v2969 = vadd.f32 0.0, %v2968
    %v2970 = vpop.f32.mrf.mxu0
    %v2971 = vadd.f32 0.0, %v2970
    %2972 = vmatmul.bf16.gmra.mxu0 %v2927
    %v2973 = vpop.f32.mrf.mxu0
    %v2974 = vadd.f32 0.0, %v2973
    %v2975 = vpop.f32.mrf.mxu0
    %v2976 = vadd.f32 0.0, %v2975
    %2977 = vdwg.mxu0
    %v2978 = vadd.f32 %v2846, %v2939
    %v2979 = vadd.f32 %v2847, %v2941
    %v2980 = vadd.f32 %v2848, %v2944
    %v2981 = vadd.f32 %v2849, %v2946
    %v2982 = vadd.f32 %v2850, %v2949
    %v2983 = vadd.f32 %v2851, %v2951
    %v2984 = vadd.f32 %v2852, %v2954
    %v2985 = vadd.f32 %v2853, %v2956
    %v2986 = vadd.f32 %v2854, %v2959
    %v2987 = vadd.f32 %v2855, %v2961
    %v2988 = vadd.f32 %v2856, %v2964
    %v2989 = vadd.f32 %v2857, %v2966
    %v2990 = vadd.f32 %v2858, %v2969
    %v2991 = vadd.f32 %v2859, %v2971
    %v2992 = vadd.f32 %v2860, %v2974
    %v2993 = vadd.f32 %v2861, %v2976
    %v2994 = vld [vmem:[%s7] sm:$0x1]
    %v2996 = vperm.slane %v2994, 0
    %v2998 = vadd.f32 %v2978, %v2996
    %v2999 = vadd.f32 %v2979, %v2996
    %v3000 = vadd.f32 %v2980, %v2996
    %v3001 = vadd.f32 %v2981, %v2996
    %v3002 = vadd.f32 %v2982, %v2996
    %v3003 = vadd.f32 %v2983, %v2996
    %v3004 = vadd.f32 %v2984, %v2996
    %v3005 = vadd.f32 %v2985, %v2996
    %v3006 = vadd.f32 %v2986, %v2996
    %v3007 = vadd.f32 %v2987, %v2996
    %v3008 = vadd.f32 %v2988, %v2996
    %v3009 = vadd.f32 %v2989, %v2996
    %v3010 = vadd.f32 %v2990, %v2996
    %v3011 = vadd.f32 %v2991, %v2996
    %v3012 = vadd.f32 %v2992, %v2996
    %v3013 = vadd.f32 %v2993, %v2996
    %s3014 = scalar_lea.vmem %s8, %s1838
    %3015 = vst.msk [vmem:[%s3014] sm:$0xff] %vm1611, %v2998
    %3016 = vst.msk [vmem:[%s3014 + $0x8] sm:$0xff] %vm1611, %v2999
    %3017 = vst.msk [vmem:[%s3014 + $0x10] sm:$0xff] %vm1611, %v3000
    %3018 = vst.msk [vmem:[%s3014 + $0x18] sm:$0xff] %vm1611, %v3001
    %3019 = vst.msk [vmem:[%s3014 + $0x20] sm:$0xff] %vm1611, %v3002
    %3020 = vst.msk [vmem:[%s3014 + $0x28] sm:$0xff] %vm1611, %v3003
    %3021 = vst.msk [vmem:[%s3014 + $0x30] sm:$0xff] %vm1611, %v3004
    %3022 = vst.msk [vmem:[%s3014 + $0x38] sm:$0xff] %vm1611, %v3005
    %3023 = vst.msk [vmem:[%s3014 + $0x40] sm:$0xff] %vm1611, %v3006
    %3024 = vst.msk [vmem:[%s3014 + $0x48] sm:$0xff] %vm1611, %v3007
    %3025 = vst.msk [vmem:[%s3014 + $0x50] sm:$0xff] %vm1611, %v3008
    %3026 = vst.msk [vmem:[%s3014 + $0x58] sm:$0xff] %vm1611, %v3009
    %3027 = vst.msk [vmem:[%s3014 + $0x60] sm:$0xff] %vm1611, %v3010
    %3028 = vst.msk [vmem:[%s3014 + $0x68] sm:$0xff] %vm1611, %v3011
    %3029 = vst.msk [vmem:[%s3014 + $0x70] sm:$0xff] %vm1611, %v3012
    %3030 = vst.msk [vmem:[%s3014 + $0x78] sm:$0xff] %vm1611, %v3013
    %v3031 = vsel %vm1831, %v2998, -inf
    %v3032 = vsel %vm1831, %v2999, -inf
    %v3033 = vsel %vm1831, %v3000, -inf
    %v3034 = vsel %vm1831, %v3001, -inf
    %v3035 = vsel %vm1831, %v3002, -inf
    %v3036 = vsel %vm1831, %v3003, -inf
    %v3037 = vsel %vm1831, %v3004, -inf
    %v3038 = vsel %vm1831, %v3005, -inf
    %v3039 = vsel %vm1831, %v3006, -inf
    %v3040 = vsel %vm1831, %v3007, -inf
    %v3041 = vsel %vm1831, %v3008, -inf
    %v3042 = vsel %vm1831, %v3009, -inf
    %v3043 = vsel %vm1831, %v3010, -inf
    %v3044 = vsel %vm1831, %v3011, -inf
    %v3045 = vsel %vm1831, %v3012, -inf
    %v3046 = vsel %vm1831, %v3013, -inf
    %v3047 = vsel %vm1611, %v3031, -inf
    %3048 = vmax.xlane.f32.xlu0 %v3047
    %v3049 = vpop.xlane.xlu0 %3048
    %v3050 = vsel %vm1611, %v3032, -inf
    %3051 = vmax.xlane.f32.xlu0 %v3050
    %v3052 = vpop.xlane.xlu0 %3051
    %v3053 = vsel %vm1611, %v3033, -inf
    %3054 = vmax.xlane.f32.xlu0 %v3053
    %v3055 = vpop.xlane.xlu0 %3054
    %v3056 = vsel %vm1611, %v3034, -inf
    %3057 = vmax.xlane.f32.xlu0 %v3056
    %v3058 = vpop.xlane.xlu0 %3057
    %v3059 = vsel %vm1611, %v3035, -inf
    %3060 = vmax.xlane.f32.xlu0 %v3059
    %v3061 = vpop.xlane.xlu0 %3060
    %v3062 = vsel %vm1611, %v3036, -inf
    %3063 = vmax.xlane.f32.xlu0 %v3062
    %v3064 = vpop.xlane.xlu0 %3063
    %v3065 = vsel %vm1611, %v3037, -inf
    %3066 = vmax.xlane.f32.xlu0 %v3065
    %v3067 = vpop.xlane.xlu0 %3066
    %v3068 = vsel %vm1611, %v3038, -inf
    %3069 = vmax.xlane.f32.xlu0 %v3068
    %v3070 = vpop.xlane.xlu0 %3069
    %v3071 = vsel %vm1611, %v3039, -inf
    %3072 = vmax.xlane.f32.xlu0 %v3071
    %v3073 = vpop.xlane.xlu0 %3072
    %v3074 = vsel %vm1611, %v3040, -inf
    %3075 = vmax.xlane.f32.xlu0 %v3074
    %v3076 = vpop.xlane.xlu0 %3075
    %v3077 = vsel %vm1611, %v3041, -inf
    %3078 = vmax.xlane.f32.xlu0 %v3077
    %v3079 = vpop.xlane.xlu0 %3078
    %v3080 = vsel %vm1611, %v3042, -inf
    %3081 = vmax.xlane.f32.xlu0 %v3080
    %v3082 = vpop.xlane.xlu0 %3081
    %v3083 = vsel %vm1611, %v3043, -inf
    %3084 = vmax.xlane.f32.xlu0 %v3083
    %v3085 = vpop.xlane.xlu0 %3084
    %v3086 = vsel %vm1611, %v3044, -inf
    %3087 = vmax.xlane.f32.xlu0 %v3086
    %v3088 = vpop.xlane.xlu0 %3087
    %v3089 = vsel %vm1611, %v3045, -inf
    %3090 = vmax.xlane.f32.xlu0 %v3089
    %v3091 = vpop.xlane.xlu0 %3090
    %v3092 = vsel %vm1611, %v3046, -inf
    %3093 = vmax.xlane.f32.xlu0 %v3092
    %v3094 = vpop.xlane.xlu0 %3093
    %v3095 = vsub.f32 %v3031, %v3049
    %v3096 = vsub.f32 %v3032, %v3052
    %v3097 = vsub.f32 %v3033, %v3055
    %v3098 = vsub.f32 %v3034, %v3058
    %v3099 = vsub.f32 %v3035, %v3061
    %v3100 = vsub.f32 %v3036, %v3064
    %v3101 = vsub.f32 %v3037, %v3067
    %v3102 = vsub.f32 %v3038, %v3070
    %v3103 = vsub.f32 %v3039, %v3073
    %v3104 = vsub.f32 %v3040, %v3076
    %v3105 = vsub.f32 %v3041, %v3079
    %v3106 = vsub.f32 %v3042, %v3082
    %v3107 = vsub.f32 %v3043, %v3085
    %v3108 = vsub.f32 %v3044, %v3088
    %v3109 = vsub.f32 %v3045, %v3091
    %v3110 = vsub.f32 %v3046, %v3094
    %v3111 = vmul.f32 %v3095, 1.442695
    %v3112 = vpow.pop %v3111
    %v3113 = vmul.f32 %v3096, 1.442695
    %v3114 = vpow.pop %v3113
    %v3115 = vmul.f32 %v3097, 1.442695
    %v3116 = vpow.pop %v3115
    %v3117 = vmul.f32 %v3098, 1.442695
    %v3118 = vpow.pop %v3117
    %v3119 = vmul.f32 %v3099, 1.442695
    %v3120 = vpow.pop %v3119
    %v3121 = vmul.f32 %v3100, 1.442695
    %v3122 = vpow.pop %v3121
    %v3123 = vmul.f32 %v3101, 1.442695
    %v3124 = vpow.pop %v3123
    %v3125 = vmul.f32 %v3102, 1.442695
    %v3126 = vpow.pop %v3125
    %v3127 = vmul.f32 %v3103, 1.442695
    %v3128 = vpow.pop %v3127
    %v3129 = vmul.f32 %v3104, 1.442695
    %v3130 = vpow.pop %v3129
    %v3131 = vmul.f32 %v3105, 1.442695
    %v3132 = vpow.pop %v3131
    %v3133 = vmul.f32 %v3106, 1.442695
    %v3134 = vpow.pop %v3133
    %v3135 = vmul.f32 %v3107, 1.442695
    %v3136 = vpow.pop %v3135
    %v3137 = vmul.f32 %v3108, 1.442695
    %v3138 = vpow.pop %v3137
    %v3139 = vmul.f32 %v3109, 1.442695
    %v3140 = vpow.pop %v3139
    %v3141 = vmul.f32 %v3110, 1.442695
    %v3142 = vpow.pop %v3141
    %v3143 = vsel %vm1611, %v3112, 0.0
    %3144 = vadd.xlane.f32.xlu0 %v3143
    %v3145 = vpop.xlane.xlu0 %3144
    %v3146 = vsel %vm1611, %v3114, 0.0
    %3147 = vadd.xlane.f32.xlu0 %v3146
    %v3148 = vpop.xlane.xlu0 %3147
    %v3149 = vsel %vm1611, %v3116, 0.0
    %3150 = vadd.xlane.f32.xlu0 %v3149
    %v3151 = vpop.xlane.xlu0 %3150
    %v3152 = vsel %vm1611, %v3118, 0.0
    %3153 = vadd.xlane.f32.xlu0 %v3152
    %v3154 = vpop.xlane.xlu0 %3153
    %v3155 = vsel %vm1611, %v3120, 0.0
    %3156 = vadd.xlane.f32.xlu0 %v3155
    %v3157 = vpop.xlane.xlu0 %3156
    %v3158 = vsel %vm1611, %v3122, 0.0
    %3159 = vadd.xlane.f32.xlu0 %v3158
    %v3160 = vpop.xlane.xlu0 %3159
    %v3161 = vsel %vm1611, %v3124, 0.0
    %3162 = vadd.xlane.f32.xlu0 %v3161
    %v3163 = vpop.xlane.xlu0 %3162
    %v3164 = vsel %vm1611, %v3126, 0.0
    %3165 = vadd.xlane.f32.xlu0 %v3164
    %v3166 = vpop.xlane.xlu0 %3165
    %v3167 = vsel %vm1611, %v3128, 0.0
    %3168 = vadd.xlane.f32.xlu0 %v3167
    %v3169 = vpop.xlane.xlu0 %3168
    %v3170 = vsel %vm1611, %v3130, 0.0
    %3171 = vadd.xlane.f32.xlu0 %v3170
    %v3172 = vpop.xlane.xlu0 %3171
    %v3173 = vsel %vm1611, %v3132, 0.0
    %3174 = vadd.xlane.f32.xlu0 %v3173
    %v3175 = vpop.xlane.xlu0 %3174
    %v3176 = vsel %vm1611, %v3134, 0.0
    %3177 = vadd.xlane.f32.xlu0 %v3176
    %v3178 = vpop.xlane.xlu0 %3177
    %v3179 = vsel %vm1611, %v3136, 0.0
    %3180 = vadd.xlane.f32.xlu0 %v3179
    %v3181 = vpop.xlane.xlu0 %3180
    %v3182 = vsel %vm1611, %v3138, 0.0
    %3183 = vadd.xlane.f32.xlu0 %v3182
    %v3184 = vpop.xlane.xlu0 %3183
    %v3185 = vsel %vm1611, %v3140, 0.0
    %3186 = vadd.xlane.f32.xlu0 %v3185
    %v3187 = vpop.xlane.xlu0 %3186
    %v3188 = vsel %vm1611, %v3142, 0.0
    %3189 = vadd.xlane.f32.xlu0 %v3188
    %v3190 = vpop.xlane.xlu0 %3189
    %v3191 = vrcp.pop %v3145
    %v3192 = vrcp.pop %v3148
    %v3193 = vrcp.pop %v3151
    %v3194 = vrcp.pop %v3154
    %v3195 = vrcp.pop %v3157
    %v3196 = vrcp.pop %v3160
    %v3197 = vrcp.pop %v3163
    %v3198 = vrcp.pop %v3166
    %v3199 = vrcp.pop %v3169
    %v3200 = vrcp.pop %v3172
    %v3201 = vrcp.pop %v3175
    %v3202 = vrcp.pop %v3178
    %v3203 = vrcp.pop %v3181
    %v3204 = vrcp.pop %v3184
    %v3205 = vrcp.pop %v3187
    %v3206 = vrcp.pop %v3190
    %v3207 = vmul.f32 %v3112, %v3191
    %v3208 = vmul.f32 %v3114, %v3192
    %v3209 = vmul.f32 %v3116, %v3193
    %v3210 = vmul.f32 %v3118, %v3194
    %v3211 = vmul.f32 %v3120, %v3195
    %v3212 = vmul.f32 %v3122, %v3196
    %v3213 = vmul.f32 %v3124, %v3197
    %v3214 = vmul.f32 %v3126, %v3198
    %v3215 = vmul.f32 %v3128, %v3199
    %v3216 = vmul.f32 %v3130, %v3200
    %v3217 = vmul.f32 %v3132, %v3201
    %v3218 = vmul.f32 %v3134, %v3202
    %v3219 = vmul.f32 %v3136, %v3203
    %v3220 = vmul.f32 %v3138, %v3204
    %v3221 = vmul.f32 %v3140, %v3205
    %v3222 = vmul.f32 %v3142, %v3206
    %s3223 = scalar_lea.vmem %s9, %s1838
    %3224 = vst.msk [vmem:[%s3223] sm:$0xff] %vm1611, %v3207
    %3225 = vst.msk [vmem:[%s3223 + $0x8] sm:$0xff] %vm1611, %v3208
    %3226 = vst.msk [vmem:[%s3223 + $0x10] sm:$0xff] %vm1611, %v3209
    %3227 = vst.msk [vmem:[%s3223 + $0x18] sm:$0xff] %vm1611, %v3210
    %3228 = vst.msk [vmem:[%s3223 + $0x20] sm:$0xff] %vm1611, %v3211
    %3229 = vst.msk [vmem:[%s3223 + $0x28] sm:$0xff] %vm1611, %v3212
    %3230 = vst.msk [vmem:[%s3223 + $0x30] sm:$0xff] %vm1611, %v3213
    %3231 = vst.msk [vmem:[%s3223 + $0x38] sm:$0xff] %vm1611, %v3214
    %3232 = vst.msk [vmem:[%s3223 + $0x40] sm:$0xff] %vm1611, %v3215
    %3233 = vst.msk [vmem:[%s3223 + $0x48] sm:$0xff] %vm1611, %v3216
    %3234 = vst.msk [vmem:[%s3223 + $0x50] sm:$0xff] %vm1611, %v3217
    %3235 = vst.msk [vmem:[%s3223 + $0x58] sm:$0xff] %vm1611, %v3218
    %3236 = vst.msk [vmem:[%s3223 + $0x60] sm:$0xff] %vm1611, %v3219
    %3237 = vst.msk [vmem:[%s3223 + $0x68] sm:$0xff] %vm1611, %v3220
    %3238 = vst.msk [vmem:[%s3223 + $0x70] sm:$0xff] %vm1611, %v3221
    %3239 = vst.msk [vmem:[%s3223 + $0x78] sm:$0xff] %vm1611, %v3222
  $region59: #{tpu_custom_call.1} parent=0 // loop_footer
    %s1837 = sadd.s32 1, %s1833
  $region60: #{tpu_custom_call.1} parent=0 // loop_footer_branch
    %1832 = sbr.rel target = $region56
  $region61: #{tpu_custom_call.1} parent=0 // loop_exit
    _
  // Predicated region
  $region62: #{tpu_custom_call.1} parent=0 // pred_check
    _
  $region63: #{tpu_custom_call.1} parent=0 // pred_check_branch
    %3241 = sbr.rel (0) target = $region65
  $region64: #{tpu_custom_call.1} parent=0 // pred_region
    _
  $region65: #{tpu_custom_call.1} parent=0 // pred_fallthru
    _
  // Predicated region
  $region66: #{tpu_custom_call.1} parent=0 // pred_check
    _
  $region67: #{tpu_custom_call.1} parent=0 // pred_check_branch
    %3243 = sbr.rel (0) target = $region69
  $region68: #{tpu_custom_call.1} parent=0 // pred_region
    _
  $region69: #{tpu_custom_call.1} parent=0 // pred_fallthru
    _
  // Predicated region
  $region70: #{tpu_custom_call.1} parent=0 // pred_check
    _
  $region71: #{tpu_custom_call.1} parent=0 // pred_check_branch
    %3245 = sbr.rel (0) target = $region73
  $region72: #{tpu_custom_call.1} parent=0 // pred_region
    _
  $region73: #{tpu_custom_call.1} parent=0 // pred_fallthru
    _
  // Predicated region
  $region74: #{tpu_custom_call.1} parent=0 // pred_check
    _
  $region75: #{tpu_custom_call.1} parent=0 // pred_check_branch
    %3247 = sbr.rel (0) target = $region77
  $region76: #{tpu_custom_call.1} parent=0 // pred_region
    _
  $region77: #{tpu_custom_call.1} parent=0 // pred_fallthru
    _

</llo_original>
